<compile_context>
chip_gen: v6e
topology: v6e:2x2x1
jax: 0.10.0
libtpu: 0.0.40
codegen_flags: <defaults>
</compile_context>

<pallas_src>
import math
from functools import partial

import jax
import jax.numpy as jnp
from jax import lax
from jax.experimental import pallas as pl
from jax.experimental.pallas import tpu as pltpu

# ---------------- config (small, consistent with the module's forward) -------
B = 2              # batch
S = 16             # sequence length
H = 128            # hidden size (stand-in for 768)
NH = 4             # attention heads
DH = H // NH       # head dim
FF = 256           # intermediate size
LAYERS = 2         # encoder layers
VOCAB = 64
TYPE_VOCAB = 2
N_LABELS = 8
N_OUT_PAD = 128    # lane-dense padded classifier output width
LN_EPS = 1e-12
M = B * S          # rows of the folded activation matrix


# ---------------- shared in-kernel math --------------------------------------
def _layernorm(x, gamma, beta, eps=LN_EPS):
    mean = jnp.mean(x, axis=-1, keepdims=True)
    var = jnp.mean((x - mean) ** 2, axis=-1, keepdims=True)
    return (x - mean) * lax.rsqrt(var + eps) * gamma + beta


def _gelu(x):
    # tanh-approximate GELU (EUP-friendly on TPU)
    return 0.5 * x * (1.0 + jnp.tanh(0.7978845608028654 * (x + 0.044715 * x * x * x)))


# ---------------- fused Pallas kernel -----------------------------------------
def fused_bert_kernel(
        # constant inputs
        x_emb_ref, bias_ref, emb_g_ref, emb_b_ref,
        # stacked per-layer weights (leading axis = layer)
        wqkv_ref, bqkv_ref, wo_ref, bo_ref, ln1g_ref, ln1b_ref,
        w1_ref, b1_ref, w2_ref, b2_ref, ln2g_ref, ln2b_ref,
        # pooler + classifier
        wp_ref, bp_ref, wc_ref, bc_ref,
        # output
        logits_ref):
    bias = bias_ref[...]                                        # (M, M) additive mask

    # --- embedding LayerNorm ------------------------------------------------
    x = _layernorm(x_emb_ref[...], emb_g_ref[...], emb_b_ref[...])   # (M, H) f32

    # --- encoder layers (unrolled; whole stacked weights already in VMEM) ----
    for l in range(LAYERS):
        xb = x.astype(jnp.bfloat16)

        # fused QKV projection (1/sqrt(DH) pre-folded into Q columns)
        qkv = (jnp.dot(xb, wqkv_ref[l], preferred_element_type=jnp.float32)
               + bqkv_ref[l])                                   # (M, 3H) f32
        qkvb = qkv.astype(jnp.bfloat16)                         # cast once

        # batch-folded attention: per head, (M, DH) slices; block-diagonal
        # additive bias excludes cross-batch keys and padded keys.
        ctx_heads = []
        for h in range(NH):
            c0 = h * DH
            q_h = qkvb[:, c0:c0 + DH]                           # (M, DH)
            k_h = qkvb[:, H + c0:H + c0 + DH]                   # (M, DH)
            v_h = qkvb[:, 2 * H + c0:2 * H + c0 + DH]           # (M, DH)

            s = lax.dot_general(q_h, k_h, (((1,), (1,)), ((), ())),
                                preferred_element_type=jnp.float32)   # (M, M)
            s = s + bias
            s = s - jnp.max(s, axis=-1, keepdims=True)
            p = jnp.exp(s)
            p = p * pl.reciprocal(jnp.sum(p, axis=-1, keepdims=True), approx=True)
            ctx_heads.append(jnp.dot(p.astype(jnp.bfloat16), v_h,
                                     preferred_element_type=jnp.float32))

        # lane-dense head reassembly in registers (no scratch, no masked stores)
        ctx = jnp.concatenate(ctx_heads, axis=-1)               # (M, H) f32

        # attention output projection + residual + LN
        attn = jnp.dot(ctx.astype(jnp.bfloat16), wo_ref[l],
                       preferred_element_type=jnp.float32) + bo_ref[l]
        h1 = _layernorm(x + attn, ln1g_ref[l], ln1b_ref[l])

        # feed-forward + residual + LN
        ff = _gelu(jnp.dot(h1.astype(jnp.bfloat16), w1_ref[l],
                           preferred_element_type=jnp.float32) + b1_ref[l])
        ff = jnp.dot(ff.astype(jnp.bfloat16), w2_ref[l],
                     preferred_element_type=jnp.float32) + b2_ref[l]
        x = _layernorm(h1 + ff, ln2g_ref[l], ln2b_ref[l])

    # --- pooler + dropout(eval=identity) + classifier over ALL rows ----------
    # (same single MXU pass; CLS rows are picked out in the wrapper)
    pooled = jnp.tanh(jnp.dot(x.astype(jnp.bfloat16), wp_ref[...],
                              preferred_element_type=jnp.float32) + bp_ref[...])
    logits = jnp.dot(pooled.astype(jnp.bfloat16), wc_ref[...],
                     preferred_element_type=jnp.float32) + bc_ref[...]
    logits_ref[...] = logits                                    # (M, 128) unmasked store


# ---------------- pallas_call wrapper ------------------------------------------
def fused_bert_forward(x_emb, bias, prep):
    vmem = pl.BlockSpec(memory_space=pltpu.MemorySpace.VMEM)
    return pl.pallas_call(
        fused_bert_kernel,
        out_shape=jax.ShapeDtypeStruct((M, N_OUT_PAD), jnp.float32),
        in_specs=[vmem] * 20,
        out_specs=vmem,
    )(x_emb, bias,
      prep["emb_ln_g"], prep["emb_ln_b"],
      prep["wqkv"], prep["bqkv"], prep["wo"], prep["bo"],
      prep["ln1g"], prep["ln1b"],
      prep["w1"], prep["b1"], prep["w2"], prep["b2"],
      prep["ln2g"], prep["ln2b"],
      prep["pooler_w"], prep["pooler_b"], prep["cls_w"], prep["cls_b"])


# ---------------- parameter construction (deterministic) ----------------------
def init_params(key):
    def normal(key, shape, std=0.02):
        return (std * jax.random.normal(key, shape)).astype(jnp.float32)

    keys = iter(jax.random.split(key, 64))
    params = {
        "word_emb": normal(next(keys), (VOCAB, H)),
        "pos_emb": normal(next(keys), (S, H)),
        "type_emb": normal(next(keys), (TYPE_VOCAB, H)),
        "emb_ln_g": jnp.ones((1, H), jnp.float32),
        "emb_ln_b": jnp.zeros((1, H), jnp.float32),
        "layers": [],
        "pooler_w": normal(next(keys), (H, H)),
        "pooler_b": jnp.zeros((1, H), jnp.float32),
        "cls_w": normal(next(keys), (H, N_LABELS)),     # l3: Linear(768, n_labels)
        "cls_b": jnp.zeros((1, N_LABELS), jnp.float32),
    }
    for _ in range(LAYERS):
        params["layers"].append({
            "wqkv": normal(next(keys), (H, 3 * H)),
            "bqkv": jnp.zeros((1, 3 * H), jnp.float32),
            "wo": normal(next(keys), (H, H)),
            "bo": jnp.zeros((1, H), jnp.float32),
            "ln1g": jnp.ones((1, H), jnp.float32),
            "ln1b": jnp.zeros((1, H), jnp.float32),
            "w1": normal(next(keys), (H, FF)),
            "b1": jnp.zeros((1, FF), jnp.float32),
            "w2": normal(next(keys), (FF, H)),
            "b2": jnp.zeros((1, H), jnp.float32),
            "ln2g": jnp.ones((1, H), jnp.float32),
            "ln2b": jnp.zeros((1, H), jnp.float32),
        })
    return params


def prepare_params(params):
    """Stack per-layer weights, fold the attention scale into Q, cast weight
    matrices to bf16, and pad the classifier head to a lane-dense 128 cols."""
    scale = 1.0 / math.sqrt(DH)
    layers = params["layers"]

    def stack(name):
        return jnp.stack([lp[name] for lp in layers], axis=0)

    wqkv = stack("wqkv")                       # (LAYERS, H, 3H)
    wqkv = wqkv.at[:, :, :H].multiply(scale)   # fold 1/sqrt(DH) into Q columns
    bqkv = stack("bqkv")                       # (LAYERS, 1, 3H)
    bqkv = bqkv.at[:, :, :H].multiply(scale)

    cls_w = jnp.zeros((H, N_OUT_PAD), jnp.float32).at[:, :N_LABELS].set(params["cls_w"])
    cls_b = jnp.zeros((1, N_OUT_PAD), jnp.float32).at[:, :N_LABELS].set(params["cls_b"])

    return {
        "word_emb": params["word_emb"],
        "pos_emb": params["pos_emb"],
        "type_emb": params["type_emb"],
        "emb_ln_g": params["emb_ln_g"],
        "emb_ln_b": params["emb_ln_b"],
        "wqkv": wqkv.astype(jnp.bfloat16),
        "bqkv": bqkv,
        "wo": stack("wo").astype(jnp.bfloat16),
        "bo": stack("bo"),
        "ln1g": stack("ln1g"), "ln1b": stack("ln1b"),
        "w1": stack("w1").astype(jnp.bfloat16),
        "b1": stack("b1"),
        "w2": stack("w2").astype(jnp.bfloat16),
        "b2": stack("b2"),
        "ln2g": stack("ln2g"), "ln2b": stack("ln2b"),
        "pooler_w": params["pooler_w"].astype(jnp.bfloat16),
        "pooler_b": params["pooler_b"],
        "cls_w": cls_w.astype(jnp.bfloat16),
        "cls_b": cls_b,
    }


# ---------------- full forward (gathers in JAX, everything else in one kernel) -
@partial(jax.jit, static_argnums=())
def bert_class_forward(prep, ids, mask, token_type_ids):
    # embeddings (data-dependent gathers are glue, left to XLA)
    x = (prep["word_emb"][ids]
         + prep["pos_emb"][None, :, :]
         + prep["type_emb"][token_type_ids])
    x = x.reshape(M, H)

    # Block-diagonal additive attention bias for batch-folded attention:
    #   same batch & valid key  ->      0
    #   same batch & padded key -> -10000   (matches HF's (1-mask)*-1e4)
    #   different batch         -> -10000   (excludes cross-batch keys)
    row_batch = jnp.arange(M, dtype=jnp.int32) // S
    same_batch = (row_batch[:, None] == row_batch[None, :]).astype(jnp.float32)
    key_valid = mask.reshape(M).astype(jnp.float32)
    bias = (same_batch * key_valid[None, :] - 1.0) * 10000.0            # (M, M)

    logits_pad = fused_bert_forward(x, bias, prep)                      # (M, 128)
    # CLS row of each sequence, sliced to the real label count
    return logits_pad.reshape(B, S, N_OUT_PAD)[:, 0, :N_LABELS]


if __name__ == "__main__":
    key = jax.random.PRNGKey(0)
    pkey, ikey, tkey = jax.random.split(key, 3)

    params = init_params(pkey)
    prep = prepare_params(params)

    ids = jax.random.randint(ikey, (B, S), 0, VOCAB, dtype=jnp.int32)
    token_type_ids = jax.random.randint(tkey, (B, S), 0, TYPE_VOCAB, dtype=jnp.int32)
    # attention mask: batch 0 fully valid, batch 1 has last 4 positions padded
    mask = jnp.ones((B, S), dtype=jnp.int32)
    mask = mask.at[1, S - 4:].set(0)

    out = bert_class_forward(prep, ids, mask, token_type_ids)
    out = jax.block_until_ready(out)
    assert out.shape == (B, N_LABELS) and out.dtype == jnp.float32
    assert bool(jnp.all(jnp.isfinite(out)))
    print("KERNEL_OK")
</pallas_src>

<mosaic_0001>
module attributes {stable_mosaic.version = 11 : i64} {
  func.func @fused_bert_kernel(%arg0: memref<32x128xf32, #tpu.memory_space<vmem>>, %arg1: memref<32x32xf32, #tpu.memory_space<vmem>>, %arg2: memref<1x128xf32, #tpu.memory_space<vmem>>, %arg3: memref<1x128xf32, #tpu.memory_space<vmem>>, %arg4: memref<2x128x384xbf16, #tpu.memory_space<vmem>>, %arg5: memref<2x1x384xf32, #tpu.memory_space<vmem>>, %arg6: memref<2x128x128xbf16, #tpu.memory_space<vmem>>, %arg7: memref<2x1x128xf32, #tpu.memory_space<vmem>>, %arg8: memref<2x1x128xf32, #tpu.memory_space<vmem>>, %arg9: memref<2x1x128xf32, #tpu.memory_space<vmem>>, %arg10: memref<2x128x256xbf16, #tpu.memory_space<vmem>>, %arg11: memref<2x1x256xf32, #tpu.memory_space<vmem>>, %arg12: memref<2x256x128xbf16, #tpu.memory_space<vmem>>, %arg13: memref<2x1x128xf32, #tpu.memory_space<vmem>>, %arg14: memref<2x1x128xf32, #tpu.memory_space<vmem>>, %arg15: memref<2x1x128xf32, #tpu.memory_space<vmem>>, %arg16: memref<128x128xbf16, #tpu.memory_space<vmem>>, %arg17: memref<1x128xf32, #tpu.memory_space<vmem>>, %arg18: memref<128x128xbf16, #tpu.memory_space<vmem>>, %arg19: memref<1x128xf32, #tpu.memory_space<vmem>>, %arg20: memref<32x128xf32, #tpu.memory_space<vmem>>) attributes {dimension_semantics = [], scalar_prefetch = 0 : i64, scratch_operands = 0 : i64, tpu.core_type = #tpu.core_type<tc>} {
    %c0 = arith.constant 0 : index
    %c0_0 = arith.constant 0 : index
    %0 = vector.load %arg1[%c0, %c0_0] : memref<32x32xf32, #tpu.memory_space<vmem>>, vector<32x32xf32>
    %c0_1 = arith.constant 0 : index
    %c0_2 = arith.constant 0 : index
    %1 = vector.load %arg0[%c0_1, %c0_2] : memref<32x128xf32, #tpu.memory_space<vmem>>, vector<32x128xf32>
    %c0_3 = arith.constant 0 : index
    %c0_4 = arith.constant 0 : index
    %2 = vector.load %arg2[%c0_3, %c0_4] : memref<1x128xf32, #tpu.memory_space<vmem>>, vector<1x128xf32>
    %c0_5 = arith.constant 0 : index
    %c0_6 = arith.constant 0 : index
    %3 = vector.load %arg3[%c0_5, %c0_6] : memref<1x128xf32, #tpu.memory_space<vmem>>, vector<1x128xf32>
    %cst = arith.constant dense<0.000000e+00> : vector<32xf32>
    %4 = vector.multi_reduction <add>, %1, %cst [1] : vector<32x128xf32> to vector<32xf32>
    %5 = vector.shape_cast %4 : vector<32xf32> to vector<32x1xf32>
    %cst_7 = arith.constant 1.280000e+02 : f32
    %6 = vector.broadcast %cst_7 : f32 to vector<32x1xf32>
    %7 = arith.divf %5, %6 : vector<32x1xf32>
    %8 = vector.broadcast %7 : vector<32x1xf32> to vector<32x128xf32>
    %9 = arith.subf %1, %8 : vector<32x128xf32>
    %10 = arith.mulf %9, %9 : vector<32x128xf32>
    %cst_8 = arith.constant dense<0.000000e+00> : vector<32xf32>
    %11 = vector.multi_reduction <add>, %10, %cst_8 [1] : vector<32x128xf32> to vector<32xf32>
    %12 = vector.shape_cast %11 : vector<32xf32> to vector<32x1xf32>
    %cst_9 = arith.constant 1.280000e+02 : f32
    %13 = vector.broadcast %cst_9 : f32 to vector<32x1xf32>
    %14 = arith.divf %12, %13 : vector<32x1xf32>
    %15 = vector.broadcast %7 : vector<32x1xf32> to vector<32x128xf32>
    %16 = arith.subf %1, %15 : vector<32x128xf32>
    %cst_10 = arith.constant 9.99999996E-13 : f32
    %17 = vector.broadcast %cst_10 : f32 to vector<32x1xf32>
    %18 = arith.addf %14, %17 : vector<32x1xf32>
    %19 = math.rsqrt %18 : vector<32x1xf32>
    %20 = vector.broadcast %19 : vector<32x1xf32> to vector<32x128xf32>
    %21 = arith.mulf %16, %20 : vector<32x128xf32>
    %22 = vector.broadcast %2 : vector<1x128xf32> to vector<32x128xf32>
    %23 = arith.mulf %21, %22 : vector<32x128xf32>
    %24 = vector.broadcast %3 : vector<1x128xf32> to vector<32x128xf32>
    %25 = arith.addf %23, %24 : vector<32x128xf32>
    %26 = arith.truncf %25 : vector<32x128xf32> to vector<32x128xbf16>
    %c0_11 = arith.constant 0 : index
    %c0_12 = arith.constant 0 : index
    %c0_13 = arith.constant 0 : index
    %27 = vector.load %arg4[%c0_11, %c0_12, %c0_13] : memref<2x128x384xbf16, #tpu.memory_space<vmem>>, vector<1x128x384xbf16>
    %28 = vector.shape_cast %27 : vector<1x128x384xbf16> to vector<128x384xbf16>
    %cst_14 = arith.constant dense<0.000000e+00> : vector<32x384xf32>
    %29 = tpu.matmul %26, %28, %cst_14 {dimension_numbers = #tpu.dot_dimension_numbers<[1], [0], [0], [1], [0, 0, 1, 1], [], []>} : vector<32x128xbf16>, vector<128x384xbf16>, vector<32x384xf32> -> vector<32x384xf32>
    %c0_15 = arith.constant 0 : index
    %c0_16 = arith.constant 0 : index
    %c0_17 = arith.constant 0 : index
    %30 = vector.load %arg5[%c0_15, %c0_16, %c0_17] : memref<2x1x384xf32, #tpu.memory_space<vmem>>, vector<1x1x384xf32>
    %31 = vector.shape_cast %30 : vector<1x1x384xf32> to vector<1x384xf32>
    %32 = vector.broadcast %31 : vector<1x384xf32> to vector<32x384xf32>
    %33 = arith.addf %29, %32 : vector<32x384xf32>
    %34 = arith.truncf %33 : vector<32x384xf32> to vector<32x384xbf16>
    %35 = vector.extract_strided_slice %34 {offsets = [0, 0], sizes = [32, 32], strides = [1, 1]} : vector<32x384xbf16> to vector<32x32xbf16>
    %36 = vector.extract_strided_slice %34 {offsets = [0, 128], sizes = [32, 32], strides = [1, 1]} : vector<32x384xbf16> to vector<32x32xbf16>
    %37 = vector.extract_strided_slice %34 {offsets = [0, 256], sizes = [32, 32], strides = [1, 1]} : vector<32x384xbf16> to vector<32x32xbf16>
    %cst_18 = arith.constant dense<0.000000e+00> : vector<32x32xf32>
    %38 = tpu.matmul %35, %36, %cst_18 {dimension_numbers = #tpu.dot_dimension_numbers<[1], [1], [0], [0], [0, 0, 1, 0], [], []>} : vector<32x32xbf16>, vector<32x32xbf16>, vector<32x32xf32> -> vector<32x32xf32>
    %39 = arith.addf %38, %0 : vector<32x32xf32>
    %cst_19 = arith.constant dense<0xFF800000> : vector<32xf32>
    %40 = vector.multi_reduction <maximumf>, %39, %cst_19 [1] : vector<32x32xf32> to vector<32xf32>
    %41 = vector.shape_cast %40 : vector<32xf32> to vector<32x1xf32>
    %42 = vector.broadcast %41 : vector<32x1xf32> to vector<32x32xf32>
    %43 = arith.subf %39, %42 : vector<32x32xf32>
    %44 = math.exp %43 : vector<32x32xf32>
    %cst_20 = arith.constant dense<0.000000e+00> : vector<32xf32>
    %45 = vector.multi_reduction <add>, %44, %cst_20 [1] : vector<32x32xf32> to vector<32xf32>
    %46 = vector.shape_cast %45 : vector<32xf32> to vector<32x1xf32>
    %47 = tpu.reciprocal %46 {approx = true} : vector<32x1xf32> -> vector<32x1xf32>
    %48 = vector.broadcast %47 : vector<32x1xf32> to vector<32x32xf32>
    %49 = arith.mulf %44, %48 : vector<32x32xf32>
    %50 = arith.truncf %49 : vector<32x32xf32> to vector<32x32xbf16>
    %cst_21 = arith.constant dense<0.000000e+00> : vector<32x32xf32>
    %51 = tpu.matmul %50, %37, %cst_21 {dimension_numbers = #tpu.dot_dimension_numbers<[1], [0], [0], [1], [0, 0, 1, 1], [], []>} : vector<32x32xbf16>, vector<32x32xbf16>, vector<32x32xf32> -> vector<32x32xf32>
    %52 = vector.extract_strided_slice %34 {offsets = [0, 32], sizes = [32, 32], strides = [1, 1]} : vector<32x384xbf16> to vector<32x32xbf16>
    %53 = vector.extract_strided_slice %34 {offsets = [0, 160], sizes = [32, 32], strides = [1, 1]} : vector<32x384xbf16> to vector<32x32xbf16>
    %54 = vector.extract_strided_slice %34 {offsets = [0, 288], sizes = [32, 32], strides = [1, 1]} : vector<32x384xbf16> to vector<32x32xbf16>
    %cst_22 = arith.constant dense<0.000000e+00> : vector<32x32xf32>
    %55 = tpu.matmul %52, %53, %cst_22 {dimension_numbers = #tpu.dot_dimension_numbers<[1], [1], [0], [0], [0, 0, 1, 0], [], []>} : vector<32x32xbf16>, vector<32x32xbf16>, vector<32x32xf32> -> vector<32x32xf32>
    %56 = arith.addf %55, %0 : vector<32x32xf32>
    %cst_23 = arith.constant dense<0xFF800000> : vector<32xf32>
    %57 = vector.multi_reduction <maximumf>, %56, %cst_23 [1] : vector<32x32xf32> to vector<32xf32>
    %58 = vector.shape_cast %57 : vector<32xf32> to vector<32x1xf32>
    %59 = vector.broadcast %58 : vector<32x1xf32> to vector<32x32xf32>
    %60 = arith.subf %56, %59 : vector<32x32xf32>
    %61 = math.exp %60 : vector<32x32xf32>
    %cst_24 = arith.constant dense<0.000000e+00> : vector<32xf32>
    %62 = vector.multi_reduction <add>, %61, %cst_24 [1] : vector<32x32xf32> to vector<32xf32>
    %63 = vector.shape_cast %62 : vector<32xf32> to vector<32x1xf32>
    %64 = tpu.reciprocal %63 {approx = true} : vector<32x1xf32> -> vector<32x1xf32>
    %65 = vector.broadcast %64 : vector<32x1xf32> to vector<32x32xf32>
    %66 = arith.mulf %61, %65 : vector<32x32xf32>
    %67 = arith.truncf %66 : vector<32x32xf32> to vector<32x32xbf16>
    %cst_25 = arith.constant dense<0.000000e+00> : vector<32x32xf32>
    %68 = tpu.matmul %67, %54, %cst_25 {dimension_numbers = #tpu.dot_dimension_numbers<[1], [0], [0], [1], [0, 0, 1, 1], [], []>} : vector<32x32xbf16>, vector<32x32xbf16>, vector<32x32xf32> -> vector<32x32xf32>
    %69 = vector.extract_strided_slice %34 {offsets = [0, 64], sizes = [32, 32], strides = [1, 1]} : vector<32x384xbf16> to vector<32x32xbf16>
    %70 = vector.extract_strided_slice %34 {offsets = [0, 192], sizes = [32, 32], strides = [1, 1]} : vector<32x384xbf16> to vector<32x32xbf16>
    %71 = vector.extract_strided_slice %34 {offsets = [0, 320], sizes = [32, 32], strides = [1, 1]} : vector<32x384xbf16> to vector<32x32xbf16>
    %cst_26 = arith.constant dense<0.000000e+00> : vector<32x32xf32>
    %72 = tpu.matmul %69, %70, %cst_26 {dimension_numbers = #tpu.dot_dimension_numbers<[1], [1], [0], [0], [0, 0, 1, 0], [], []>} : vector<32x32xbf16>, vector<32x32xbf16>, vector<32x32xf32> -> vector<32x32xf32>
    %73 = arith.addf %72, %0 : vector<32x32xf32>
    %cst_27 = arith.constant dense<0xFF800000> : vector<32xf32>
    %74 = vector.multi_reduction <maximumf>, %73, %cst_27 [1] : vector<32x32xf32> to vector<32xf32>
    %75 = vector.shape_cast %74 : vector<32xf32> to vector<32x1xf32>
    %76 = vector.broadcast %75 : vector<32x1xf32> to vector<32x32xf32>
    %77 = arith.subf %73, %76 : vector<32x32xf32>
    %78 = math.exp %77 : vector<32x32xf32>
    %cst_28 = arith.constant dense<0.000000e+00> : vector<32xf32>
    %79 = vector.multi_reduction <add>, %78, %cst_28 [1] : vector<32x32xf32> to vector<32xf32>
    %80 = vector.shape_cast %79 : vector<32xf32> to vector<32x1xf32>
    %81 = tpu.reciprocal %80 {approx = true} : vector<32x1xf32> -> vector<32x1xf32>
    %82 = vector.broadcast %81 : vector<32x1xf32> to vector<32x32xf32>
    %83 = arith.mulf %78, %82 : vector<32x32xf32>
    %84 = arith.truncf %83 : vector<32x32xf32> to vector<32x32xbf16>
    %cst_29 = arith.constant dense<0.000000e+00> : vector<32x32xf32>
    %85 = tpu.matmul %84, %71, %cst_29 {dimension_numbers = #tpu.dot_dimension_numbers<[1], [0], [0], [1], [0, 0, 1, 1], [], []>} : vector<32x32xbf16>, vector<32x32xbf16>, vector<32x32xf32> -> vector<32x32xf32>
    %86 = vector.extract_strided_slice %34 {offsets = [0, 96], sizes = [32, 32], strides = [1, 1]} : vector<32x384xbf16> to vector<32x32xbf16>
    %87 = vector.extract_strided_slice %34 {offsets = [0, 224], sizes = [32, 32], strides = [1, 1]} : vector<32x384xbf16> to vector<32x32xbf16>
    %88 = vector.extract_strided_slice %34 {offsets = [0, 352], sizes = [32, 32], strides = [1, 1]} : vector<32x384xbf16> to vector<32x32xbf16>
    %cst_30 = arith.constant dense<0.000000e+00> : vector<32x32xf32>
    %89 = tpu.matmul %86, %87, %cst_30 {dimension_numbers = #tpu.dot_dimension_numbers<[1], [1], [0], [0], [0, 0, 1, 0], [], []>} : vector<32x32xbf16>, vector<32x32xbf16>, vector<32x32xf32> -> vector<32x32xf32>
    %90 = arith.addf %89, %0 : vector<32x32xf32>
    %cst_31 = arith.constant dense<0xFF800000> : vector<32xf32>
    %91 = vector.multi_reduction <maximumf>, %90, %cst_31 [1] : vector<32x32xf32> to vector<32xf32>
    %92 = vector.shape_cast %91 : vector<32xf32> to vector<32x1xf32>
    %93 = vector.broadcast %92 : vector<32x1xf32> to vector<32x32xf32>
    %94 = arith.subf %90, %93 : vector<32x32xf32>
    %95 = math.exp %94 : vector<32x32xf32>
    %cst_32 = arith.constant dense<0.000000e+00> : vector<32xf32>
    %96 = vector.multi_reduction <add>, %95, %cst_32 [1] : vector<32x32xf32> to vector<32xf32>
    %97 = vector.shape_cast %96 : vector<32xf32> to vector<32x1xf32>
    %98 = tpu.reciprocal %97 {approx = true} : vector<32x1xf32> -> vector<32x1xf32>
    %99 = vector.broadcast %98 : vector<32x1xf32> to vector<32x32xf32>
    %100 = arith.mulf %95, %99 : vector<32x32xf32>
    %101 = arith.truncf %100 : vector<32x32xf32> to vector<32x32xbf16>
    %cst_33 = arith.constant dense<0.000000e+00> : vector<32x32xf32>
    %102 = tpu.matmul %101, %88, %cst_33 {dimension_numbers = #tpu.dot_dimension_numbers<[1], [0], [0], [1], [0, 0, 1, 1], [], []>} : vector<32x32xbf16>, vector<32x32xbf16>, vector<32x32xf32> -> vector<32x32xf32>
    %103 = tpu.concatenate %51, %68, %85, %102 in 1 : vector<32x32xf32>, vector<32x32xf32>, vector<32x32xf32>, vector<32x32xf32> -> vector<32x128xf32>
    %104 = arith.truncf %103 : vector<32x128xf32> to vector<32x128xbf16>
    %c0_34 = arith.constant 0 : index
    %c0_35 = arith.constant 0 : index
    %c0_36 = arith.constant 0 : index
    %105 = vector.load %arg6[%c0_34, %c0_35, %c0_36] : memref<2x128x128xbf16, #tpu.memory_space<vmem>>, vector<1x128x128xbf16>
    %106 = vector.shape_cast %105 : vector<1x128x128xbf16> to vector<128x128xbf16>
    %cst_37 = arith.constant dense<0.000000e+00> : vector<32x128xf32>
    %107 = tpu.matmul %104, %106, %cst_37 {dimension_numbers = #tpu.dot_dimension_numbers<[1], [0], [0], [1], [0, 0, 1, 1], [], []>} : vector<32x128xbf16>, vector<128x128xbf16>, vector<32x128xf32> -> vector<32x128xf32>
    %c0_38 = arith.constant 0 : index
    %c0_39 = arith.constant 0 : index
    %c0_40 = arith.constant 0 : index
    %108 = vector.load %arg7[%c0_38, %c0_39, %c0_40] : memref<2x1x128xf32, #tpu.memory_space<vmem>>, vector<1x1x128xf32>
    %109 = vector.shape_cast %108 : vector<1x1x128xf32> to vector<1x128xf32>
    %110 = vector.broadcast %109 : vector<1x128xf32> to vector<32x128xf32>
    %111 = arith.addf %107, %110 : vector<32x128xf32>
    %112 = arith.addf %25, %111 : vector<32x128xf32>
    %c0_41 = arith.constant 0 : index
    %c0_42 = arith.constant 0 : index
    %c0_43 = arith.constant 0 : index
    %113 = vector.load %arg8[%c0_41, %c0_42, %c0_43] : memref<2x1x128xf32, #tpu.memory_space<vmem>>, vector<1x1x128xf32>
    %114 = vector.shape_cast %113 : vector<1x1x128xf32> to vector<1x128xf32>
    %c0_44 = arith.constant 0 : index
    %c0_45 = arith.constant 0 : index
    %c0_46 = arith.constant 0 : index
    %115 = vector.load %arg9[%c0_44, %c0_45, %c0_46] : memref<2x1x128xf32, #tpu.memory_space<vmem>>, vector<1x1x128xf32>
    %116 = vector.shape_cast %115 : vector<1x1x128xf32> to vector<1x128xf32>
    %cst_47 = arith.constant dense<0.000000e+00> : vector<32xf32>
    %117 = vector.multi_reduction <add>, %112, %cst_47 [1] : vector<32x128xf32> to vector<32xf32>
    %118 = vector.shape_cast %117 : vector<32xf32> to vector<32x1xf32>
    %cst_48 = arith.constant 1.280000e+02 : f32
    %119 = vector.broadcast %cst_48 : f32 to vector<32x1xf32>
    %120 = arith.divf %118, %119 : vector<32x1xf32>
    %121 = vector.broadcast %120 : vector<32x1xf32> to vector<32x128xf32>
    %122 = arith.subf %112, %121 : vector<32x128xf32>
    %123 = arith.mulf %122, %122 : vector<32x128xf32>
    %cst_49 = arith.constant dense<0.000000e+00> : vector<32xf32>
    %124 = vector.multi_reduction <add>, %123, %cst_49 [1] : vector<32x128xf32> to vector<32xf32>
    %125 = vector.shape_cast %124 : vector<32xf32> to vector<32x1xf32>
    %cst_50 = arith.constant 1.280000e+02 : f32
    %126 = vector.broadcast %cst_50 : f32 to vector<32x1xf32>
    %127 = arith.divf %125, %126 : vector<32x1xf32>
    %128 = vector.broadcast %120 : vector<32x1xf32> to vector<32x128xf32>
    %129 = arith.subf %112, %128 : vector<32x128xf32>
    %cst_51 = arith.constant 9.99999996E-13 : f32
    %130 = vector.broadcast %cst_51 : f32 to vector<32x1xf32>
    %131 = arith.addf %127, %130 : vector<32x1xf32>
    %132 = math.rsqrt %131 : vector<32x1xf32>
    %133 = vector.broadcast %132 : vector<32x1xf32> to vector<32x128xf32>
    %134 = arith.mulf %129, %133 : vector<32x128xf32>
    %135 = vector.broadcast %114 : vector<1x128xf32> to vector<32x128xf32>
    %136 = arith.mulf %134, %135 : vector<32x128xf32>
    %137 = vector.broadcast %116 : vector<1x128xf32> to vector<32x128xf32>
    %138 = arith.addf %136, %137 : vector<32x128xf32>
    %139 = arith.truncf %138 : vector<32x128xf32> to vector<32x128xbf16>
    %c0_52 = arith.constant 0 : index
    %c0_53 = arith.constant 0 : index
    %c0_54 = arith.constant 0 : index
    %140 = vector.load %arg10[%c0_52, %c0_53, %c0_54] : memref<2x128x256xbf16, #tpu.memory_space<vmem>>, vector<1x128x256xbf16>
    %141 = vector.shape_cast %140 : vector<1x128x256xbf16> to vector<128x256xbf16>
    %cst_55 = arith.constant dense<0.000000e+00> : vector<32x256xf32>
    %142 = tpu.matmul %139, %141, %cst_55 {dimension_numbers = #tpu.dot_dimension_numbers<[1], [0], [0], [1], [0, 0, 1, 1], [], []>} : vector<32x128xbf16>, vector<128x256xbf16>, vector<32x256xf32> -> vector<32x256xf32>
    %c0_56 = arith.constant 0 : index
    %c0_57 = arith.constant 0 : index
    %c0_58 = arith.constant 0 : index
    %143 = vector.load %arg11[%c0_56, %c0_57, %c0_58] : memref<2x1x256xf32, #tpu.memory_space<vmem>>, vector<1x1x256xf32>
    %144 = vector.shape_cast %143 : vector<1x1x256xf32> to vector<1x256xf32>
    %145 = vector.broadcast %144 : vector<1x256xf32> to vector<32x256xf32>
    %146 = arith.addf %142, %145 : vector<32x256xf32>
    %cst_59 = arith.constant 5.000000e-01 : f32
    %147 = vector.broadcast %cst_59 : f32 to vector<32x256xf32>
    %148 = arith.mulf %147, %146 : vector<32x256xf32>
    %cst_60 = arith.constant 4.471500e-02 : f32
    %149 = vector.broadcast %cst_60 : f32 to vector<32x256xf32>
    %150 = arith.mulf %149, %146 : vector<32x256xf32>
    %151 = arith.mulf %150, %146 : vector<32x256xf32>
    %152 = arith.mulf %151, %146 : vector<32x256xf32>
    %153 = arith.addf %146, %152 : vector<32x256xf32>
    %cst_61 = arith.constant 0.797884583 : f32
    %154 = vector.broadcast %cst_61 : f32 to vector<32x256xf32>
    %155 = arith.mulf %154, %153 : vector<32x256xf32>
    %156 = math.tanh %155 : vector<32x256xf32>
    %cst_62 = arith.constant 1.000000e+00 : f32
    %157 = vector.broadcast %cst_62 : f32 to vector<32x256xf32>
    %158 = arith.addf %157, %156 : vector<32x256xf32>
    %159 = arith.mulf %148, %158 : vector<32x256xf32>
    %160 = arith.truncf %159 : vector<32x256xf32> to vector<32x256xbf16>
    %c0_63 = arith.constant 0 : index
    %c0_64 = arith.constant 0 : index
    %c0_65 = arith.constant 0 : index
    %161 = vector.load %arg12[%c0_63, %c0_64, %c0_65] : memref<2x256x128xbf16, #tpu.memory_space<vmem>>, vector<1x256x128xbf16>
    %162 = vector.shape_cast %161 : vector<1x256x128xbf16> to vector<256x128xbf16>
    %cst_66 = arith.constant dense<0.000000e+00> : vector<32x128xf32>
    %163 = tpu.matmul %160, %162, %cst_66 {dimension_numbers = #tpu.dot_dimension_numbers<[1], [0], [0], [1], [0, 0, 1, 1], [], []>} : vector<32x256xbf16>, vector<256x128xbf16>, vector<32x128xf32> -> vector<32x128xf32>
    %c0_67 = arith.constant 0 : index
    %c0_68 = arith.constant 0 : index
    %c0_69 = arith.constant 0 : index
    %164 = vector.load %arg13[%c0_67, %c0_68, %c0_69] : memref<2x1x128xf32, #tpu.memory_space<vmem>>, vector<1x1x128xf32>
    %165 = vector.shape_cast %164 : vector<1x1x128xf32> to vector<1x128xf32>
    %166 = vector.broadcast %165 : vector<1x128xf32> to vector<32x128xf32>
    %167 = arith.addf %163, %166 : vector<32x128xf32>
    %168 = arith.addf %138, %167 : vector<32x128xf32>
    %c0_70 = arith.constant 0 : index
    %c0_71 = arith.constant 0 : index
    %c0_72 = arith.constant 0 : index
    %169 = vector.load %arg14[%c0_70, %c0_71, %c0_72] : memref<2x1x128xf32, #tpu.memory_space<vmem>>, vector<1x1x128xf32>
    %170 = vector.shape_cast %169 : vector<1x1x128xf32> to vector<1x128xf32>
    %c0_73 = arith.constant 0 : index
    %c0_74 = arith.constant 0 : index
    %c0_75 = arith.constant 0 : index
    %171 = vector.load %arg15[%c0_73, %c0_74, %c0_75] : memref<2x1x128xf32, #tpu.memory_space<vmem>>, vector<1x1x128xf32>
    %172 = vector.shape_cast %171 : vector<1x1x128xf32> to vector<1x128xf32>
    %cst_76 = arith.constant dense<0.000000e+00> : vector<32xf32>
    %173 = vector.multi_reduction <add>, %168, %cst_76 [1] : vector<32x128xf32> to vector<32xf32>
    %174 = vector.shape_cast %173 : vector<32xf32> to vector<32x1xf32>
    %cst_77 = arith.constant 1.280000e+02 : f32
    %175 = vector.broadcast %cst_77 : f32 to vector<32x1xf32>
    %176 = arith.divf %174, %175 : vector<32x1xf32>
    %177 = vector.broadcast %176 : vector<32x1xf32> to vector<32x128xf32>
    %178 = arith.subf %168, %177 : vector<32x128xf32>
    %179 = arith.mulf %178, %178 : vector<32x128xf32>
    %cst_78 = arith.constant dense<0.000000e+00> : vector<32xf32>
    %180 = vector.multi_reduction <add>, %179, %cst_78 [1] : vector<32x128xf32> to vector<32xf32>
    %181 = vector.shape_cast %180 : vector<32xf32> to vector<32x1xf32>
    %cst_79 = arith.constant 1.280000e+02 : f32
    %182 = vector.broadcast %cst_79 : f32 to vector<32x1xf32>
    %183 = arith.divf %181, %182 : vector<32x1xf32>
    %184 = vector.broadcast %176 : vector<32x1xf32> to vector<32x128xf32>
    %185 = arith.subf %168, %184 : vector<32x128xf32>
    %cst_80 = arith.constant 9.99999996E-13 : f32
    %186 = vector.broadcast %cst_80 : f32 to vector<32x1xf32>
    %187 = arith.addf %183, %186 : vector<32x1xf32>
    %188 = math.rsqrt %187 : vector<32x1xf32>
    %189 = vector.broadcast %188 : vector<32x1xf32> to vector<32x128xf32>
    %190 = arith.mulf %185, %189 : vector<32x128xf32>
    %191 = vector.broadcast %170 : vector<1x128xf32> to vector<32x128xf32>
    %192 = arith.mulf %190, %191 : vector<32x128xf32>
    %193 = vector.broadcast %172 : vector<1x128xf32> to vector<32x128xf32>
    %194 = arith.addf %192, %193 : vector<32x128xf32>
    %195 = arith.truncf %194 : vector<32x128xf32> to vector<32x128xbf16>
    %c1 = arith.constant 1 : index
    %c0_81 = arith.constant 0 : index
    %c0_82 = arith.constant 0 : index
    %196 = vector.load %arg4[%c1, %c0_81, %c0_82] : memref<2x128x384xbf16, #tpu.memory_space<vmem>>, vector<1x128x384xbf16>
    %197 = vector.shape_cast %196 : vector<1x128x384xbf16> to vector<128x384xbf16>
    %cst_83 = arith.constant dense<0.000000e+00> : vector<32x384xf32>
    %198 = tpu.matmul %195, %197, %cst_83 {dimension_numbers = #tpu.dot_dimension_numbers<[1], [0], [0], [1], [0, 0, 1, 1], [], []>} : vector<32x128xbf16>, vector<128x384xbf16>, vector<32x384xf32> -> vector<32x384xf32>
    %c1_84 = arith.constant 1 : index
    %c0_85 = arith.constant 0 : index
    %c0_86 = arith.constant 0 : index
    %199 = vector.load %arg5[%c1_84, %c0_85, %c0_86] : memref<2x1x384xf32, #tpu.memory_space<vmem>>, vector<1x1x384xf32>
    %200 = vector.shape_cast %199 : vector<1x1x384xf32> to vector<1x384xf32>
    %201 = vector.broadcast %200 : vector<1x384xf32> to vector<32x384xf32>
    %202 = arith.addf %198, %201 : vector<32x384xf32>
    %203 = arith.truncf %202 : vector<32x384xf32> to vector<32x384xbf16>
    %204 = vector.extract_strided_slice %203 {offsets = [0, 0], sizes = [32, 32], strides = [1, 1]} : vector<32x384xbf16> to vector<32x32xbf16>
    %205 = vector.extract_strided_slice %203 {offsets = [0, 128], sizes = [32, 32], strides = [1, 1]} : vector<32x384xbf16> to vector<32x32xbf16>
    %206 = vector.extract_strided_slice %203 {offsets = [0, 256], sizes = [32, 32], strides = [1, 1]} : vector<32x384xbf16> to vector<32x32xbf16>
    %cst_87 = arith.constant dense<0.000000e+00> : vector<32x32xf32>
    %207 = tpu.matmul %204, %205, %cst_87 {dimension_numbers = #tpu.dot_dimension_numbers<[1], [1], [0], [0], [0, 0, 1, 0], [], []>} : vector<32x32xbf16>, vector<32x32xbf16>, vector<32x32xf32> -> vector<32x32xf32>
    %208 = arith.addf %207, %0 : vector<32x32xf32>
    %cst_88 = arith.constant dense<0xFF800000> : vector<32xf32>
    %209 = vector.multi_reduction <maximumf>, %208, %cst_88 [1] : vector<32x32xf32> to vector<32xf32>
    %210 = vector.shape_cast %209 : vector<32xf32> to vector<32x1xf32>
    %211 = vector.broadcast %210 : vector<32x1xf32> to vector<32x32xf32>
    %212 = arith.subf %208, %211 : vector<32x32xf32>
    %213 = math.exp %212 : vector<32x32xf32>
    %cst_89 = arith.constant dense<0.000000e+00> : vector<32xf32>
    %214 = vector.multi_reduction <add>, %213, %cst_89 [1] : vector<32x32xf32> to vector<32xf32>
    %215 = vector.shape_cast %214 : vector<32xf32> to vector<32x1xf32>
    %216 = tpu.reciprocal %215 {approx = true} : vector<32x1xf32> -> vector<32x1xf32>
    %217 = vector.broadcast %216 : vector<32x1xf32> to vector<32x32xf32>
    %218 = arith.mulf %213, %217 : vector<32x32xf32>
    %219 = arith.truncf %218 : vector<32x32xf32> to vector<32x32xbf16>
    %cst_90 = arith.constant dense<0.000000e+00> : vector<32x32xf32>
    %220 = tpu.matmul %219, %206, %cst_90 {dimension_numbers = #tpu.dot_dimension_numbers<[1], [0], [0], [1], [0, 0, 1, 1], [], []>} : vector<32x32xbf16>, vector<32x32xbf16>, vector<32x32xf32> -> vector<32x32xf32>
    %221 = vector.extract_strided_slice %203 {offsets = [0, 32], sizes = [32, 32], strides = [1, 1]} : vector<32x384xbf16> to vector<32x32xbf16>
    %222 = vector.extract_strided_slice %203 {offsets = [0, 160], sizes = [32, 32], strides = [1, 1]} : vector<32x384xbf16> to vector<32x32xbf16>
    %223 = vector.extract_strided_slice %203 {offsets = [0, 288], sizes = [32, 32], strides = [1, 1]} : vector<32x384xbf16> to vector<32x32xbf16>
    %cst_91 = arith.constant dense<0.000000e+00> : vector<32x32xf32>
    %224 = tpu.matmul %221, %222, %cst_91 {dimension_numbers = #tpu.dot_dimension_numbers<[1], [1], [0], [0], [0, 0, 1, 0], [], []>} : vector<32x32xbf16>, vector<32x32xbf16>, vector<32x32xf32> -> vector<32x32xf32>
    %225 = arith.addf %224, %0 : vector<32x32xf32>
    %cst_92 = arith.constant dense<0xFF800000> : vector<32xf32>
    %226 = vector.multi_reduction <maximumf>, %225, %cst_92 [1] : vector<32x32xf32> to vector<32xf32>
    %227 = vector.shape_cast %226 : vector<32xf32> to vector<32x1xf32>
    %228 = vector.broadcast %227 : vector<32x1xf32> to vector<32x32xf32>
    %229 = arith.subf %225, %228 : vector<32x32xf32>
    %230 = math.exp %229 : vector<32x32xf32>
    %cst_93 = arith.constant dense<0.000000e+00> : vector<32xf32>
    %231 = vector.multi_reduction <add>, %230, %cst_93 [1] : vector<32x32xf32> to vector<32xf32>
    %232 = vector.shape_cast %231 : vector<32xf32> to vector<32x1xf32>
    %233 = tpu.reciprocal %232 {approx = true} : vector<32x1xf32> -> vector<32x1xf32>
    %234 = vector.broadcast %233 : vector<32x1xf32> to vector<32x32xf32>
    %235 = arith.mulf %230, %234 : vector<32x32xf32>
    %236 = arith.truncf %235 : vector<32x32xf32> to vector<32x32xbf16>
    %cst_94 = arith.constant dense<0.000000e+00> : vector<32x32xf32>
    %237 = tpu.matmul %236, %223, %cst_94 {dimension_numbers = #tpu.dot_dimension_numbers<[1], [0], [0], [1], [0, 0, 1, 1], [], []>} : vector<32x32xbf16>, vector<32x32xbf16>, vector<32x32xf32> -> vector<32x32xf32>
    %238 = vector.extract_strided_slice %203 {offsets = [0, 64], sizes = [32, 32], strides = [1, 1]} : vector<32x384xbf16> to vector<32x32xbf16>
    %239 = vector.extract_strided_slice %203 {offsets = [0, 192], sizes = [32, 32], strides = [1, 1]} : vector<32x384xbf16> to vector<32x32xbf16>
    %240 = vector.extract_strided_slice %203 {offsets = [0, 320], sizes = [32, 32], strides = [1, 1]} : vector<32x384xbf16> to vector<32x32xbf16>
    %cst_95 = arith.constant dense<0.000000e+00> : vector<32x32xf32>
    %241 = tpu.matmul %238, %239, %cst_95 {dimension_numbers = #tpu.dot_dimension_numbers<[1], [1], [0], [0], [0, 0, 1, 0], [], []>} : vector<32x32xbf16>, vector<32x32xbf16>, vector<32x32xf32> -> vector<32x32xf32>
    %242 = arith.addf %241, %0 : vector<32x32xf32>
    %cst_96 = arith.constant dense<0xFF800000> : vector<32xf32>
    %243 = vector.multi_reduction <maximumf>, %242, %cst_96 [1] : vector<32x32xf32> to vector<32xf32>
    %244 = vector.shape_cast %243 : vector<32xf32> to vector<32x1xf32>
    %245 = vector.broadcast %244 : vector<32x1xf32> to vector<32x32xf32>
    %246 = arith.subf %242, %245 : vector<32x32xf32>
    %247 = math.exp %246 : vector<32x32xf32>
    %cst_97 = arith.constant dense<0.000000e+00> : vector<32xf32>
    %248 = vector.multi_reduction <add>, %247, %cst_97 [1] : vector<32x32xf32> to vector<32xf32>
    %249 = vector.shape_cast %248 : vector<32xf32> to vector<32x1xf32>
    %250 = tpu.reciprocal %249 {approx = true} : vector<32x1xf32> -> vector<32x1xf32>
    %251 = vector.broadcast %250 : vector<32x1xf32> to vector<32x32xf32>
    %252 = arith.mulf %247, %251 : vector<32x32xf32>
    %253 = arith.truncf %252 : vector<32x32xf32> to vector<32x32xbf16>
    %cst_98 = arith.constant dense<0.000000e+00> : vector<32x32xf32>
    %254 = tpu.matmul %253, %240, %cst_98 {dimension_numbers = #tpu.dot_dimension_numbers<[1], [0], [0], [1], [0, 0, 1, 1], [], []>} : vector<32x32xbf16>, vector<32x32xbf16>, vector<32x32xf32> -> vector<32x32xf32>
    %255 = vector.extract_strided_slice %203 {offsets = [0, 96], sizes = [32, 32], strides = [1, 1]} : vector<32x384xbf16> to vector<32x32xbf16>
    %256 = vector.extract_strided_slice %203 {offsets = [0, 224], sizes = [32, 32], strides = [1, 1]} : vector<32x384xbf16> to vector<32x32xbf16>
    %257 = vector.extract_strided_slice %203 {offsets = [0, 352], sizes = [32, 32], strides = [1, 1]} : vector<32x384xbf16> to vector<32x32xbf16>
    %cst_99 = arith.constant dense<0.000000e+00> : vector<32x32xf32>
    %258 = tpu.matmul %255, %256, %cst_99 {dimension_numbers = #tpu.dot_dimension_numbers<[1], [1], [0], [0], [0, 0, 1, 0], [], []>} : vector<32x32xbf16>, vector<32x32xbf16>, vector<32x32xf32> -> vector<32x32xf32>
    %259 = arith.addf %258, %0 : vector<32x32xf32>
    %cst_100 = arith.constant dense<0xFF800000> : vector<32xf32>
    %260 = vector.multi_reduction <maximumf>, %259, %cst_100 [1] : vector<32x32xf32> to vector<32xf32>
    %261 = vector.shape_cast %260 : vector<32xf32> to vector<32x1xf32>
    %262 = vector.broadcast %261 : vector<32x1xf32> to vector<32x32xf32>
    %263 = arith.subf %259, %262 : vector<32x32xf32>
    %264 = math.exp %263 : vector<32x32xf32>
    %cst_101 = arith.constant dense<0.000000e+00> : vector<32xf32>
    %265 = vector.multi_reduction <add>, %264, %cst_101 [1] : vector<32x32xf32> to vector<32xf32>
    %266 = vector.shape_cast %265 : vector<32xf32> to vector<32x1xf32>
    %267 = tpu.reciprocal %266 {approx = true} : vector<32x1xf32> -> vector<32x1xf32>
    %268 = vector.broadcast %267 : vector<32x1xf32> to vector<32x32xf32>
    %269 = arith.mulf %264, %268 : vector<32x32xf32>
    %270 = arith.truncf %269 : vector<32x32xf32> to vector<32x32xbf16>
    %cst_102 = arith.constant dense<0.000000e+00> : vector<32x32xf32>
    %271 = tpu.matmul %270, %257, %cst_102 {dimension_numbers = #tpu.dot_dimension_numbers<[1], [0], [0], [1], [0, 0, 1, 1], [], []>} : vector<32x32xbf16>, vector<32x32xbf16>, vector<32x32xf32> -> vector<32x32xf32>
    %272 = tpu.concatenate %220, %237, %254, %271 in 1 : vector<32x32xf32>, vector<32x32xf32>, vector<32x32xf32>, vector<32x32xf32> -> vector<32x128xf32>
    %273 = arith.truncf %272 : vector<32x128xf32> to vector<32x128xbf16>
    %c1_103 = arith.constant 1 : index
    %c0_104 = arith.constant 0 : index
    %c0_105 = arith.constant 0 : index
    %274 = vector.load %arg6[%c1_103, %c0_104, %c0_105] : memref<2x128x128xbf16, #tpu.memory_space<vmem>>, vector<1x128x128xbf16>
    %275 = vector.shape_cast %274 : vector<1x128x128xbf16> to vector<128x128xbf16>
    %cst_106 = arith.constant dense<0.000000e+00> : vector<32x128xf32>
    %276 = tpu.matmul %273, %275, %cst_106 {dimension_numbers = #tpu.dot_dimension_numbers<[1], [0], [0], [1], [0, 0, 1, 1], [], []>} : vector<32x128xbf16>, vector<128x128xbf16>, vector<32x128xf32> -> vector<32x128xf32>
    %c1_107 = arith.constant 1 : index
    %c0_108 = arith.constant 0 : index
    %c0_109 = arith.constant 0 : index
    %277 = vector.load %arg7[%c1_107, %c0_108, %c0_109] : memref<2x1x128xf32, #tpu.memory_space<vmem>>, vector<1x1x128xf32>
    %278 = vector.shape_cast %277 : vector<1x1x128xf32> to vector<1x128xf32>
    %279 = vector.broadcast %278 : vector<1x128xf32> to vector<32x128xf32>
    %280 = arith.addf %276, %279 : vector<32x128xf32>
    %281 = arith.addf %194, %280 : vector<32x128xf32>
    %c1_110 = arith.constant 1 : index
    %c0_111 = arith.constant 0 : index
    %c0_112 = arith.constant 0 : index
    %282 = vector.load %arg8[%c1_110, %c0_111, %c0_112] : memref<2x1x128xf32, #tpu.memory_space<vmem>>, vector<1x1x128xf32>
    %283 = vector.shape_cast %282 : vector<1x1x128xf32> to vector<1x128xf32>
    %c1_113 = arith.constant 1 : index
    %c0_114 = arith.constant 0 : index
    %c0_115 = arith.constant 0 : index
    %284 = vector.load %arg9[%c1_113, %c0_114, %c0_115] : memref<2x1x128xf32, #tpu.memory_space<vmem>>, vector<1x1x128xf32>
    %285 = vector.shape_cast %284 : vector<1x1x128xf32> to vector<1x128xf32>
    %cst_116 = arith.constant dense<0.000000e+00> : vector<32xf32>
    %286 = vector.multi_reduction <add>, %281, %cst_116 [1] : vector<32x128xf32> to vector<32xf32>
    %287 = vector.shape_cast %286 : vector<32xf32> to vector<32x1xf32>
    %cst_117 = arith.constant 1.280000e+02 : f32
    %288 = vector.broadcast %cst_117 : f32 to vector<32x1xf32>
    %289 = arith.divf %287, %288 : vector<32x1xf32>
    %290 = vector.broadcast %289 : vector<32x1xf32> to vector<32x128xf32>
    %291 = arith.subf %281, %290 : vector<32x128xf32>
    %292 = arith.mulf %291, %291 : vector<32x128xf32>
    %cst_118 = arith.constant dense<0.000000e+00> : vector<32xf32>
    %293 = vector.multi_reduction <add>, %292, %cst_118 [1] : vector<32x128xf32> to vector<32xf32>
    %294 = vector.shape_cast %293 : vector<32xf32> to vector<32x1xf32>
    %cst_119 = arith.constant 1.280000e+02 : f32
    %295 = vector.broadcast %cst_119 : f32 to vector<32x1xf32>
    %296 = arith.divf %294, %295 : vector<32x1xf32>
    %297 = vector.broadcast %289 : vector<32x1xf32> to vector<32x128xf32>
    %298 = arith.subf %281, %297 : vector<32x128xf32>
    %cst_120 = arith.constant 9.99999996E-13 : f32
    %299 = vector.broadcast %cst_120 : f32 to vector<32x1xf32>
    %300 = arith.addf %296, %299 : vector<32x1xf32>
    %301 = math.rsqrt %300 : vector<32x1xf32>
    %302 = vector.broadcast %301 : vector<32x1xf32> to vector<32x128xf32>
    %303 = arith.mulf %298, %302 : vector<32x128xf32>
    %304 = vector.broadcast %283 : vector<1x128xf32> to vector<32x128xf32>
    %305 = arith.mulf %303, %304 : vector<32x128xf32>
    %306 = vector.broadcast %285 : vector<1x128xf32> to vector<32x128xf32>
    %307 = arith.addf %305, %306 : vector<32x128xf32>
    %308 = arith.truncf %307 : vector<32x128xf32> to vector<32x128xbf16>
    %c1_121 = arith.constant 1 : index
    %c0_122 = arith.constant 0 : index
    %c0_123 = arith.constant 0 : index
    %309 = vector.load %arg10[%c1_121, %c0_122, %c0_123] : memref<2x128x256xbf16, #tpu.memory_space<vmem>>, vector<1x128x256xbf16>
    %310 = vector.shape_cast %309 : vector<1x128x256xbf16> to vector<128x256xbf16>
    %cst_124 = arith.constant dense<0.000000e+00> : vector<32x256xf32>
    %311 = tpu.matmul %308, %310, %cst_124 {dimension_numbers = #tpu.dot_dimension_numbers<[1], [0], [0], [1], [0, 0, 1, 1], [], []>} : vector<32x128xbf16>, vector<128x256xbf16>, vector<32x256xf32> -> vector<32x256xf32>
    %c1_125 = arith.constant 1 : index
    %c0_126 = arith.constant 0 : index
    %c0_127 = arith.constant 0 : index
    %312 = vector.load %arg11[%c1_125, %c0_126, %c0_127] : memref<2x1x256xf32, #tpu.memory_space<vmem>>, vector<1x1x256xf32>
    %313 = vector.shape_cast %312 : vector<1x1x256xf32> to vector<1x256xf32>
    %314 = vector.broadcast %313 : vector<1x256xf32> to vector<32x256xf32>
    %315 = arith.addf %311, %314 : vector<32x256xf32>
    %cst_128 = arith.constant 5.000000e-01 : f32
    %316 = vector.broadcast %cst_128 : f32 to vector<32x256xf32>
    %317 = arith.mulf %316, %315 : vector<32x256xf32>
    %cst_129 = arith.constant 4.471500e-02 : f32
    %318 = vector.broadcast %cst_129 : f32 to vector<32x256xf32>
    %319 = arith.mulf %318, %315 : vector<32x256xf32>
    %320 = arith.mulf %319, %315 : vector<32x256xf32>
    %321 = arith.mulf %320, %315 : vector<32x256xf32>
    %322 = arith.addf %315, %321 : vector<32x256xf32>
    %cst_130 = arith.constant 0.797884583 : f32
    %323 = vector.broadcast %cst_130 : f32 to vector<32x256xf32>
    %324 = arith.mulf %323, %322 : vector<32x256xf32>
    %325 = math.tanh %324 : vector<32x256xf32>
    %cst_131 = arith.constant 1.000000e+00 : f32
    %326 = vector.broadcast %cst_131 : f32 to vector<32x256xf32>
    %327 = arith.addf %326, %325 : vector<32x256xf32>
    %328 = arith.mulf %317, %327 : vector<32x256xf32>
    %329 = arith.truncf %328 : vector<32x256xf32> to vector<32x256xbf16>
    %c1_132 = arith.constant 1 : index
    %c0_133 = arith.constant 0 : index
    %c0_134 = arith.constant 0 : index
    %330 = vector.load %arg12[%c1_132, %c0_133, %c0_134] : memref<2x256x128xbf16, #tpu.memory_space<vmem>>, vector<1x256x128xbf16>
    %331 = vector.shape_cast %330 : vector<1x256x128xbf16> to vector<256x128xbf16>
    %cst_135 = arith.constant dense<0.000000e+00> : vector<32x128xf32>
    %332 = tpu.matmul %329, %331, %cst_135 {dimension_numbers = #tpu.dot_dimension_numbers<[1], [0], [0], [1], [0, 0, 1, 1], [], []>} : vector<32x256xbf16>, vector<256x128xbf16>, vector<32x128xf32> -> vector<32x128xf32>
    %c1_136 = arith.constant 1 : index
    %c0_137 = arith.constant 0 : index
    %c0_138 = arith.constant 0 : index
    %333 = vector.load %arg13[%c1_136, %c0_137, %c0_138] : memref<2x1x128xf32, #tpu.memory_space<vmem>>, vector<1x1x128xf32>
    %334 = vector.shape_cast %333 : vector<1x1x128xf32> to vector<1x128xf32>
    %335 = vector.broadcast %334 : vector<1x128xf32> to vector<32x128xf32>
    %336 = arith.addf %332, %335 : vector<32x128xf32>
    %337 = arith.addf %307, %336 : vector<32x128xf32>
    %c1_139 = arith.constant 1 : index
    %c0_140 = arith.constant 0 : index
    %c0_141 = arith.constant 0 : index
    %338 = vector.load %arg14[%c1_139, %c0_140, %c0_141] : memref<2x1x128xf32, #tpu.memory_space<vmem>>, vector<1x1x128xf32>
    %339 = vector.shape_cast %338 : vector<1x1x128xf32> to vector<1x128xf32>
    %c1_142 = arith.constant 1 : index
    %c0_143 = arith.constant 0 : index
    %c0_144 = arith.constant 0 : index
    %340 = vector.load %arg15[%c1_142, %c0_143, %c0_144] : memref<2x1x128xf32, #tpu.memory_space<vmem>>, vector<1x1x128xf32>
    %341 = vector.shape_cast %340 : vector<1x1x128xf32> to vector<1x128xf32>
    %cst_145 = arith.constant dense<0.000000e+00> : vector<32xf32>
    %342 = vector.multi_reduction <add>, %337, %cst_145 [1] : vector<32x128xf32> to vector<32xf32>
    %343 = vector.shape_cast %342 : vector<32xf32> to vector<32x1xf32>
    %cst_146 = arith.constant 1.280000e+02 : f32
    %344 = vector.broadcast %cst_146 : f32 to vector<32x1xf32>
    %345 = arith.divf %343, %344 : vector<32x1xf32>
    %346 = vector.broadcast %345 : vector<32x1xf32> to vector<32x128xf32>
    %347 = arith.subf %337, %346 : vector<32x128xf32>
    %348 = arith.mulf %347, %347 : vector<32x128xf32>
    %cst_147 = arith.constant dense<0.000000e+00> : vector<32xf32>
    %349 = vector.multi_reduction <add>, %348, %cst_147 [1] : vector<32x128xf32> to vector<32xf32>
    %350 = vector.shape_cast %349 : vector<32xf32> to vector<32x1xf32>
    %cst_148 = arith.constant 1.280000e+02 : f32
    %351 = vector.broadcast %cst_148 : f32 to vector<32x1xf32>
    %352 = arith.divf %350, %351 : vector<32x1xf32>
    %353 = vector.broadcast %345 : vector<32x1xf32> to vector<32x128xf32>
    %354 = arith.subf %337, %353 : vector<32x128xf32>
    %cst_149 = arith.constant 9.99999996E-13 : f32
    %355 = vector.broadcast %cst_149 : f32 to vector<32x1xf32>
    %356 = arith.addf %352, %355 : vector<32x1xf32>
    %357 = math.rsqrt %356 : vector<32x1xf32>
    %358 = vector.broadcast %357 : vector<32x1xf32> to vector<32x128xf32>
    %359 = arith.mulf %354, %358 : vector<32x128xf32>
    %360 = vector.broadcast %339 : vector<1x128xf32> to vector<32x128xf32>
    %361 = arith.mulf %359, %360 : vector<32x128xf32>
    %362 = vector.broadcast %341 : vector<1x128xf32> to vector<32x128xf32>
    %363 = arith.addf %361, %362 : vector<32x128xf32>
    %364 = arith.truncf %363 : vector<32x128xf32> to vector<32x128xbf16>
    %c0_150 = arith.constant 0 : index
    %c0_151 = arith.constant 0 : index
    %365 = vector.load %arg16[%c0_150, %c0_151] : memref<128x128xbf16, #tpu.memory_space<vmem>>, vector<128x128xbf16>
    %cst_152 = arith.constant dense<0.000000e+00> : vector<32x128xf32>
    %366 = tpu.matmul %364, %365, %cst_152 {dimension_numbers = #tpu.dot_dimension_numbers<[1], [0], [0], [1], [0, 0, 1, 1], [], []>} : vector<32x128xbf16>, vector<128x128xbf16>, vector<32x128xf32> -> vector<32x128xf32>
    %c0_153 = arith.constant 0 : index
    %c0_154 = arith.constant 0 : index
    %367 = vector.load %arg17[%c0_153, %c0_154] : memref<1x128xf32, #tpu.memory_space<vmem>>, vector<1x128xf32>
    %368 = vector.broadcast %367 : vector<1x128xf32> to vector<32x128xf32>
    %369 = arith.addf %366, %368 : vector<32x128xf32>
    %370 = math.tanh %369 : vector<32x128xf32>
    %371 = arith.truncf %370 : vector<32x128xf32> to vector<32x128xbf16>
    %c0_155 = arith.constant 0 : index
    %c0_156 = arith.constant 0 : index
    %372 = vector.load %arg18[%c0_155, %c0_156] : memref<128x128xbf16, #tpu.memory_space<vmem>>, vector<128x128xbf16>
    %cst_157 = arith.constant dense<0.000000e+00> : vector<32x128xf32>
    %373 = tpu.matmul %371, %372, %cst_157 {dimension_numbers = #tpu.dot_dimension_numbers<[1], [0], [0], [1], [0, 0, 1, 1], [], []>} : vector<32x128xbf16>, vector<128x128xbf16>, vector<32x128xf32> -> vector<32x128xf32>
    %c0_158 = arith.constant 0 : index
    %c0_159 = arith.constant 0 : index
    %374 = vector.load %arg19[%c0_158, %c0_159] : memref<1x128xf32, #tpu.memory_space<vmem>>, vector<1x128xf32>
    %375 = vector.broadcast %374 : vector<1x128xf32> to vector<32x128xf32>
    %376 = arith.addf %373, %375 : vector<32x128xf32>
    %c0_160 = arith.constant 0 : index
    %c0_161 = arith.constant 0 : index
    %377 = vector.load %arg20[%c0_160, %c0_161] : memref<32x128xf32, #tpu.memory_space<vmem>>, vector<32x128xf32>
    tpu.vector_store %arg20[%c0_160, %c0_161], %376 {strides = array<i32>} : memref<32x128xf32, #tpu.memory_space<vmem>>, vector<32x128xf32>,
    return
  }
}

</mosaic_0001>

<llo_original>
// kernel: bert_class_forward.1
$region0: #{bert_class_forward.1}
  #allocation0 [shape = 'u32[]', space=smem, size = 0x4, offset = 0x4, fixed_abs, tag = 'smem constant byte address 0x4 - core index']
  #allocation1 [shape = 'u32[144,128]{1,0:T(1,128)}', space=vmem, size = 0x12000, scoped, tag = 'internal scratch']
  %s0 = inlined_call_operand.vmem [shape: f32[32,128], index: 0, kind: input, shape index: {}]
  %s1 = inlined_call_operand.vmem [shape: f32[32,32], index: 1, kind: input, shape index: {}]
  %s2 = inlined_call_operand.vmem [shape: f32[1,128], index: 2, kind: input, shape index: {}]
  %s3 = inlined_call_operand.vmem [shape: f32[1,128], index: 3, kind: input, shape index: {}]
  %s4 = inlined_call_operand.vmem [shape: bf16[2,128,384], index: 4, kind: input, shape index: {}]
  %s5 = inlined_call_operand.hbm [shape: f32[2,1,384], index: 5, kind: input, shape index: {}]
  %s6 = inlined_call_operand.hbm [shape: bf16[2,128,128], index: 6, kind: input, shape index: {}]
  %s7 = inlined_call_operand.hbm [shape: f32[2,1,128], index: 7, kind: input, shape index: {}]
  %s8 = inlined_call_operand.hbm [shape: f32[2,1,128], index: 8, kind: input, shape index: {}]
  %s9 = inlined_call_operand.hbm [shape: f32[2,1,128], index: 9, kind: input, shape index: {}]
  %s10 = inlined_call_operand.vmem [shape: bf16[2,128,256], index: 10, kind: input, shape index: {}]
  %s11 = inlined_call_operand.vmem [shape: f32[2,1,256], index: 11, kind: input, shape index: {}]
  %s12 = inlined_call_operand.hbm [shape: bf16[2,256,128], index: 12, kind: input, shape index: {}]
  %s13 = inlined_call_operand.vmem [shape: f32[2,1,128], index: 13, kind: input, shape index: {}]
  %s14 = inlined_call_operand.hbm [shape: f32[2,1,128], index: 14, kind: input, shape index: {}]
  %s15 = inlined_call_operand.hbm [shape: f32[2,1,128], index: 15, kind: input, shape index: {}]
  %s16 = inlined_call_operand.vmem [shape: bf16[128,128], index: 16, kind: input, shape index: {}]
  %s17 = inlined_call_operand.hbm [shape: f32[1,128], index: 17, kind: input, shape index: {}]
  %s18 = inlined_call_operand.vmem [shape: bf16[128,128], index: 18, kind: input, shape index: {}]
  %s19 = inlined_call_operand.hbm [shape: f32[1,128], index: 19, kind: input, shape index: {}]
  %s20 = inlined_call_operand.vmem [shape: f32[32,128], index: 20, kind: output, shape index: {}]
  %s21 = sld [smem:[#allocation0]]
  $region130: #{bert_class_forward.1} parent=0
    _
  %s23 = ssub.s32 1, %s21
  %s24 = scalar_select 0, %s23, %s21
  $region1: #{bert_class_forward.1} parent=0
    #allocation2 [shape = 'u8[3072]{0}', space=vmem, size = 0xc00, scoped, tag = 'input window, operand 5, single buffered']
    #allocation3 [shape = 's32[1]{0}', space=sflag, size = 0x4, scoped, tag = 'scoped memory for bert_class_forward.1']
    #allocation4 [shape = 'u8[65536]{0}', space=vmem, size = 0x10000, scoped, tag = 'input window, operand 6, single buffered']
    #allocation5 [shape = 's32[1]{0}', space=sflag, size = 0x4, scoped, tag = 'scoped memory for bert_class_forward.1']
    #allocation6 [shape = 'u8[1024]{0}', space=vmem, size = 0x400, scoped, tag = 'input window, operand 7, single buffered']
    #allocation7 [shape = 'u8[1024]{0}', space=vmem, size = 0x400, scoped, tag = 'input window, operand 8, single buffered']
    #allocation8 [shape = 's32[1]{0}', space=sflag, size = 0x4, scoped, tag = 'scoped memory for bert_class_forward.1']
    #allocation9 [shape = 'u8[1024]{0}', space=vmem, size = 0x400, scoped, tag = 'input window, operand 9, single buffered']
    #allocation10 [shape = 'u8[131072]{0}', space=vmem, size = 0x20000, scoped, tag = 'input window, operand 12, single buffered']
    #allocation11 [shape = 's32[1]{0}', space=sflag, size = 0x4, scoped, tag = 'scoped memory for bert_class_forward.1']
    #allocation12 [shape = 'u8[1024]{0}', space=vmem, size = 0x400, scoped, tag = 'input window, operand 14, single buffered']
    #allocation13 [shape = 'u8[1024]{0}', space=vmem, size = 0x400, scoped, tag = 'input window, operand 15, single buffered']
    #allocation14 [shape = 's32[1]{0}', space=sflag, size = 0x4, scoped, tag = 'scoped memory for bert_class_forward.1']
    #allocation15 [shape = 'u8[512]{0}', space=vmem, size = 0x400, scoped, tag = 'input window, operand 17, single buffered']
    #allocation16 [shape = 'u8[512]{0}', space=vmem, size = 0x400, scoped, tag = 'input window, operand 19, single buffered']
    #allocation17 [shape = 's32[1]{0}', space=sflag, size = 0x4, scoped, tag = 'scoped memory for bert_class_forward.1']
    %25 = vsyncpa [#allocation3], 0
    %26 = vsyncpa [#allocation5], 0
    %27 = vsyncpa [#allocation8], 0
    %28 = vsyncpa [#allocation11], 0
    %29 = vsyncpa [#allocation14], 0
    %30 = vsyncpa [#allocation17], 0
    // Predicated region
    $region2: #{bert_class_forward.1} parent=1 // pred_check
      _
    $region3: #{bert_class_forward.1} parent=1 // pred_check_branch
      %32 = sbr.rel (0) target = $region5
    $region4: #{bert_class_forward.1} parent=1 // pred_region
      _
    $region5: #{bert_class_forward.1} parent=1 // pred_fallthru
      _
    // Predicated region
    $region6: #{bert_class_forward.1} parent=1 // pred_check
      _
    $region7: #{bert_class_forward.1} parent=1 // pred_check_branch
      %34 = sbr.rel (0) target = $region9
    $region8: #{bert_class_forward.1} parent=1 // pred_region
      _
    $region9: #{bert_class_forward.1} parent=1 // pred_fallthru
      _
    // Predicated region
    $region10: #{bert_class_forward.1} parent=1 // pred_check
      _
    $region11: #{bert_class_forward.1} parent=1 // pred_check_branch
      %36 = sbr.rel (0) target = $region13
    $region12: #{bert_class_forward.1} parent=1 // pred_region
      _
    $region13: #{bert_class_forward.1} parent=1 // pred_fallthru
      _
    // Predicated region
    $region14: #{bert_class_forward.1} parent=1 // pred_check
      _
    $region15: #{bert_class_forward.1} parent=1 // pred_check_branch
      %38 = sbr.rel (0) target = $region17
    $region16: #{bert_class_forward.1} parent=1 // pred_region
      _
    $region17: #{bert_class_forward.1} parent=1 // pred_fallthru
      _
    // Predicated region
    $region18: #{bert_class_forward.1} parent=1 // pred_check
      _
    $region19: #{bert_class_forward.1} parent=1 // pred_check_branch
      %40 = sbr.rel (0) target = $region21
    $region20: #{bert_class_forward.1} parent=1 // pred_region
      _
    $region21: #{bert_class_forward.1} parent=1 // pred_fallthru
      _
    // Predicated region
    $region22: #{bert_class_forward.1} parent=1 // pred_check
      _
    $region23: #{bert_class_forward.1} parent=1 // pred_check_branch
      %42 = sbr.rel (0) target = $region25
    $region24: #{bert_class_forward.1} parent=1 // pred_region
      %s44 = ssub.s32 96, 96
      %45 = vsyncadd [#allocation3], %s44
      %s46 = sshll.u32 [#allocation2], 4
      %s47 = int_to_ptr.vmem [resolvable:$true] %s46
      %52 = dma.hbm_to_vmem [thread:$0]  %s5, 96, %s47, [#allocation3], 48, 48, 3
    $region25: #{bert_class_forward.1} parent=1 // pred_fallthru
      _
    // Predicated region
    $region26: #{bert_class_forward.1} parent=1 // pred_check
      _
    $region27: #{bert_class_forward.1} parent=1 // pred_check_branch
      %54 = sbr.rel (0) target = $region29
    $region28: #{bert_class_forward.1} parent=1 // pred_region
      %s56 = ssub.s32 2048, 2048
      %57 = vsyncadd [#allocation5], %s56
      %s58 = sshll.u32 [#allocation4], 4
      %s59 = int_to_ptr.vmem [resolvable:$true] %s58
      %64 = dma.hbm_to_vmem [thread:$0]  %s6, 2048, %s59, [#allocation5], 64, 64, 4
    $region29: #{bert_class_forward.1} parent=1 // pred_fallthru
      _
    // Predicated region
    $region30: #{bert_class_forward.1} parent=1 // pred_check
      _
    $region31: #{bert_class_forward.1} parent=1 // pred_check_branch
      %66 = sbr.rel (0) target = $region33
    $region32: #{bert_class_forward.1} parent=1 // pred_region
      %s68 = ssub.s32 32, 32
      %69 = vsyncadd [#allocation5], %s68
      %s70 = sshll.u32 [#allocation6], 4
      %s71 = int_to_ptr.vmem [resolvable:$true] %s70
      %76 = dma.hbm_to_vmem [thread:$0]  %s7, 32, %s71, [#allocation5], 16, 16, 1
    $region33: #{bert_class_forward.1} parent=1 // pred_fallthru
      _
    // Predicated region
    $region34: #{bert_class_forward.1} parent=1 // pred_check
      _
    $region35: #{bert_class_forward.1} parent=1 // pred_check_branch
      %78 = sbr.rel (0) target = $region37
    $region36: #{bert_class_forward.1} parent=1 // pred_region
      %s80 = ssub.s32 32, 32
      %81 = vsyncadd [#allocation8], %s80
      %s82 = sshll.u32 [#allocation7], 4
      %s83 = int_to_ptr.vmem [resolvable:$true] %s82
      %88 = dma.hbm_to_vmem [thread:$0]  %s8, 32, %s83, [#allocation8], 16, 16, 1
    $region37: #{bert_class_forward.1} parent=1 // pred_fallthru
      _
    // Predicated region
    $region38: #{bert_class_forward.1} parent=1 // pred_check
      _
    $region39: #{bert_class_forward.1} parent=1 // pred_check_branch
      %90 = sbr.rel (0) target = $region41
    $region40: #{bert_class_forward.1} parent=1 // pred_region
      %s92 = ssub.s32 32, 32
      %93 = vsyncadd [#allocation8], %s92
      %s94 = sshll.u32 [#allocation9], 4
      %s95 = int_to_ptr.vmem [resolvable:$true] %s94
      %100 = dma.hbm_to_vmem [thread:$0]  %s9, 32, %s95, [#allocation8], 16, 16, 1
    $region41: #{bert_class_forward.1} parent=1 // pred_fallthru
      _
    // Predicated region
    $region42: #{bert_class_forward.1} parent=1 // pred_check
      _
    $region43: #{bert_class_forward.1} parent=1 // pred_check_branch
      %102 = sbr.rel (0) target = $region45
    $region44: #{bert_class_forward.1} parent=1 // pred_region
      _
    $region45: #{bert_class_forward.1} parent=1 // pred_fallthru
      _
    // Predicated region
    $region46: #{bert_class_forward.1} parent=1 // pred_check
      _
    $region47: #{bert_class_forward.1} parent=1 // pred_check_branch
      %104 = sbr.rel (0) target = $region49
    $region48: #{bert_class_forward.1} parent=1 // pred_region
      _
    $region49: #{bert_class_forward.1} parent=1 // pred_fallthru
      _
    // Predicated region
    $region50: #{bert_class_forward.1} parent=1 // pred_check
      _
    $region51: #{bert_class_forward.1} parent=1 // pred_check_branch
      %106 = sbr.rel (0) target = $region53
    $region52: #{bert_class_forward.1} parent=1 // pred_region
      %s108 = ssub.s32 4096, 4096
      %109 = vsyncadd [#allocation11], %s108
      %s110 = sshll.u32 [#allocation10], 4
      %s111 = int_to_ptr.vmem [resolvable:$true] %s110
      %116 = dma.hbm_to_vmem [thread:$0]  %s12, 4096, %s111, [#allocation11], 64, 64, 4
    $region53: #{bert_class_forward.1} parent=1 // pred_fallthru
      _
    // Predicated region
    $region54: #{bert_class_forward.1} parent=1 // pred_check
      _
    $region55: #{bert_class_forward.1} parent=1 // pred_check_branch
      %118 = sbr.rel (0) target = $region57
    $region56: #{bert_class_forward.1} parent=1 // pred_region
      _
    $region57: #{bert_class_forward.1} parent=1 // pred_fallthru
      _
    // Predicated region
    $region58: #{bert_class_forward.1} parent=1 // pred_check
      _
    $region59: #{bert_class_forward.1} parent=1 // pred_check_branch
      %120 = sbr.rel (0) target = $region61
    $region60: #{bert_class_forward.1} parent=1 // pred_region
      %s122 = ssub.s32 32, 32
      %123 = vsyncadd [#allocation11], %s122
      %s124 = sshll.u32 [#allocation12], 4
      %s125 = int_to_ptr.vmem [resolvable:$true] %s124
      %130 = dma.hbm_to_vmem [thread:$0]  %s14, 32, %s125, [#allocation11], 16, 16, 1
    $region61: #{bert_class_forward.1} parent=1 // pred_fallthru
      _
    // Predicated region
    $region62: #{bert_class_forward.1} parent=1 // pred_check
      _
    $region63: #{bert_class_forward.1} parent=1 // pred_check_branch
      %132 = sbr.rel (0) target = $region65
    $region64: #{bert_class_forward.1} parent=1 // pred_region
      %s134 = ssub.s32 32, 32
      %135 = vsyncadd [#allocation14], %s134
      %s136 = sshll.u32 [#allocation13], 4
      %s137 = int_to_ptr.vmem [resolvable:$true] %s136
      %142 = dma.hbm_to_vmem [thread:$0]  %s15, 32, %s137, [#allocation14], 16, 16, 1
    $region65: #{bert_class_forward.1} parent=1 // pred_fallthru
      _
    // Predicated region
    $region66: #{bert_class_forward.1} parent=1 // pred_check
      _
    $region67: #{bert_class_forward.1} parent=1 // pred_check_branch
      %144 = sbr.rel (0) target = $region69
    $region68: #{bert_class_forward.1} parent=1 // pred_region
      _
    $region69: #{bert_class_forward.1} parent=1 // pred_fallthru
      _
    // Predicated region
    $region70: #{bert_class_forward.1} parent=1 // pred_check
      _
    $region71: #{bert_class_forward.1} parent=1 // pred_check_branch
      %146 = sbr.rel (0) target = $region73
    $region72: #{bert_class_forward.1} parent=1 // pred_region
      %s148 = ssub.s32 16, 16
      %149 = vsyncadd [#allocation14], %s148
      %s151 = sshll.u32 [#allocation15], 4
      %s152 = int_to_ptr.vmem [resolvable:$true] %s151
      %154 = dma.hbm_to_vmem [thread:$0]  %s17, 16, %s152, [#allocation14]
    $region73: #{bert_class_forward.1} parent=1 // pred_fallthru
      _
    // Predicated region
    $region74: #{bert_class_forward.1} parent=1 // pred_check
      _
    $region75: #{bert_class_forward.1} parent=1 // pred_check_branch
      %156 = sbr.rel (0) target = $region77
    $region76: #{bert_class_forward.1} parent=1 // pred_region
      _
    $region77: #{bert_class_forward.1} parent=1 // pred_fallthru
      _
    // Predicated region
    $region78: #{bert_class_forward.1} parent=1 // pred_check
      _
    $region79: #{bert_class_forward.1} parent=1 // pred_check_branch
      %158 = sbr.rel (0) target = $region81
    $region80: #{bert_class_forward.1} parent=1 // pred_region
      %s160 = ssub.s32 16, 16
      %161 = vsyncadd [#allocation17], %s160
      %s163 = sshll.u32 [#allocation16], 4
      %s164 = int_to_ptr.vmem [resolvable:$true] %s163
      %166 = dma.hbm_to_vmem [thread:$0]  %s19, 16, %s164, [#allocation17]
    $region81: #{bert_class_forward.1} parent=1 // pred_fallthru
      _
    // Predicated region
    $region82: #{bert_class_forward.1} parent=1 // pred_check
      _
    $region83: #{bert_class_forward.1} parent=1 // pred_check_branch
      %168 = sbr.rel (0) target = $region85
    $region84: #{bert_class_forward.1} parent=1 // pred_region
      %169 = dma.done [#allocation3], 96
    $region85: #{bert_class_forward.1} parent=1 // pred_fallthru
      _
    // Predicated region
    $region86: #{bert_class_forward.1} parent=1 // pred_check
      _
    $region87: #{bert_class_forward.1} parent=1 // pred_check_branch
      %171 = sbr.rel (0) target = $region89
    $region88: #{bert_class_forward.1} parent=1 // pred_region
      %172 = dma.done [#allocation5], 2048
    $region89: #{bert_class_forward.1} parent=1 // pred_fallthru
      _
    // Predicated region
    $region90: #{bert_class_forward.1} parent=1 // pred_check
      _
    $region91: #{bert_class_forward.1} parent=1 // pred_check_branch
      %174 = sbr.rel (0) target = $region93
    $region92: #{bert_class_forward.1} parent=1 // pred_region
      %175 = dma.done [#allocation5], 32
    $region93: #{bert_class_forward.1} parent=1 // pred_fallthru
      _
    // Predicated region
    $region94: #{bert_class_forward.1} parent=1 // pred_check
      _
    $region95: #{bert_class_forward.1} parent=1 // pred_check_branch
      %177 = sbr.rel (0) target = $region97
    $region96: #{bert_class_forward.1} parent=1 // pred_region
      %178 = dma.done [#allocation8], 32
    $region97: #{bert_class_forward.1} parent=1 // pred_fallthru
      _
    // Predicated region
    $region98: #{bert_class_forward.1} parent=1 // pred_check
      _
    $region99: #{bert_class_forward.1} parent=1 // pred_check_branch
      %180 = sbr.rel (0) target = $region101
    $region100: #{bert_class_forward.1} parent=1 // pred_region
      %181 = dma.done [#allocation8], 32
    $region101: #{bert_class_forward.1} parent=1 // pred_fallthru
      _
    // Predicated region
    $region102: #{bert_class_forward.1} parent=1 // pred_check
      _
    $region103: #{bert_class_forward.1} parent=1 // pred_check_branch
      %183 = sbr.rel (0) target = $region105
    $region104: #{bert_class_forward.1} parent=1 // pred_region
      %184 = dma.done [#allocation11], 4096
    $region105: #{bert_class_forward.1} parent=1 // pred_fallthru
      _
    // Predicated region
    $region106: #{bert_class_forward.1} parent=1 // pred_check
      _
    $region107: #{bert_class_forward.1} parent=1 // pred_check_branch
      %186 = sbr.rel (0) target = $region109
    $region108: #{bert_class_forward.1} parent=1 // pred_region
      %187 = dma.done [#allocation11], 32
    $region109: #{bert_class_forward.1} parent=1 // pred_fallthru
      _
    // Predicated region
    $region110: #{bert_class_forward.1} parent=1 // pred_check
      _
    $region111: #{bert_class_forward.1} parent=1 // pred_check_branch
      %189 = sbr.rel (0) target = $region113
    $region112: #{bert_class_forward.1} parent=1 // pred_region
      %190 = dma.done [#allocation14], 32
    $region113: #{bert_class_forward.1} parent=1 // pred_fallthru
      _
    // Predicated region
    $region114: #{bert_class_forward.1} parent=1 // pred_check
      _
    $region115: #{bert_class_forward.1} parent=1 // pred_check_branch
      %192 = sbr.rel (0) target = $region117
    $region116: #{bert_class_forward.1} parent=1 // pred_region
      %193 = dma.done [#allocation14], 16
    $region117: #{bert_class_forward.1} parent=1 // pred_fallthru
      _
    // Predicated region
    $region118: #{bert_class_forward.1} parent=1 // pred_check
      _
    $region119: #{bert_class_forward.1} parent=1 // pred_check_branch
      %195 = sbr.rel (0) target = $region121
    $region120: #{bert_class_forward.1} parent=1 // pred_region
      %196 = dma.done [#allocation17], 16
    $region121: #{bert_class_forward.1} parent=1 // pred_fallthru
      _
    %v198 = vld [vmem:[%s1] sm:$0xff]
    %v199 = vld [vmem:[%s1 + $0x8] sm:$0xff]
    %v200 = vld [vmem:[%s1 + $0x10] sm:$0xff]
    %v201 = vld [vmem:[%s1 + $0x18] sm:$0xff]
    %v202 = vld [vmem:[%s0] sm:$0xff]
    %v203 = vld [vmem:[%s0 + $0x8] sm:$0xff]
    %v204 = vld [vmem:[%s0 + $0x10] sm:$0xff]
    %v205 = vld [vmem:[%s0 + $0x18] sm:$0xff]
    %v206 = vld [vmem:[%s2] sm:$0x1]
    %v207 = vld [vmem:[%s3] sm:$0x1]
    %208 = vadd.xlane.f32.xlu0 %v202
    %v209 = vpop.xlane.xlu0 %208
    %210 = vadd.xlane.f32.xlu0 %v203
    %v211 = vpop.xlane.xlu0 %210
    %212 = vadd.xlane.f32.xlu0 %v204
    %v213 = vpop.xlane.xlu0 %212
    %214 = vadd.xlane.f32.xlu0 %v205
    %v215 = vpop.xlane.xlu0 %214
    %v216 = vrcp.pop 128.0
    %v217 = vmul.f32 %v209, %v216
    %v218 = vmul.f32 %v211, %v216
    %v219 = vmul.f32 %v213, %v216
    %v220 = vmul.f32 %v215, %v216
    %v221 = vsub.f32 %v202, %v217
    %v222 = vsub.f32 %v203, %v218
    %v223 = vsub.f32 %v204, %v219
    %v224 = vsub.f32 %v205, %v220
    %v225 = vmul.f32 %v221, %v221
    %v226 = vmul.f32 %v222, %v222
    %v227 = vmul.f32 %v223, %v223
    %v228 = vmul.f32 %v224, %v224
    %229 = vadd.xlane.f32.xlu0 %v225
    %v230 = vpop.xlane.xlu0 %229
    %231 = vadd.xlane.f32.xlu0 %v226
    %v232 = vpop.xlane.xlu0 %231
    %233 = vadd.xlane.f32.xlu0 %v227
    %v234 = vpop.xlane.xlu0 %233
    %235 = vadd.xlane.f32.xlu0 %v228
    %v236 = vpop.xlane.xlu0 %235
    %v237 = vmul.f32 %v230, %v216
    %v238 = vmul.f32 %v232, %v216
    %v239 = vmul.f32 %v234, %v216
    %v240 = vmul.f32 %v236, %v216
    %v241 = vadd.f32 %v237, 1e-12
    %v242 = vadd.f32 %v238, 1e-12
    %v243 = vadd.f32 %v239, 1e-12
    %v244 = vadd.f32 %v240, 1e-12
    %v245 = vrsqrt.pop %v241
    %v246 = vrsqrt.pop %v242
    %v247 = vrsqrt.pop %v243
    %v248 = vrsqrt.pop %v244
    %v249 = vmul.f32 %v221, %v245
    %v250 = vmul.f32 %v222, %v246
    %v251 = vmul.f32 %v223, %v247
    %v252 = vmul.f32 %v224, %v248
    %v254 = vlaneseq
    %v255 = vshrl.u32 %v254, 7
    %v256 = vsub.s32 0, %v255
    %v257 = vrot.slane %v206, %v256
    %v259 = vmul.f32 %v249, %v257
    %v260 = vmul.f32 %v250, %v257
    %v261 = vmul.f32 %v251, %v257
    %v262 = vmul.f32 %v252, %v257
    %v264 = vlaneseq
    %v265 = vshrl.u32 %v264, 7
    %v266 = vsub.s32 0, %v265
    %v267 = vrot.slane %v207, %v266
    %v269 = vadd.f32 %v259, %v267
    %v270 = vadd.f32 %v260, %v267
    %v271 = vadd.f32 %v261, %v267
    %v272 = vadd.f32 %v262, %v267
    %v273 = vpack.c.bf16 %v270, %v269
    %v274 = vpack.c.bf16 %v272, %v271
    %v275 = vld [vmem:[%s4] sm:$0xff]
    %v276 = vld [vmem:[%s4 + $0x8] sm:$0xf]
    %v277 = vld [vmem:[%s4 + $0xc] sm:$0xff]
    %v278 = vld [vmem:[%s4 + $0x14] sm:$0xf]
    %v279 = vld [vmem:[%s4 + $0x18] sm:$0xff]
    %v280 = vld [vmem:[%s4 + $0x20] sm:$0xf]
    %v281 = vld [vmem:[%s4 + $0x24] sm:$0xff]
    %v282 = vld [vmem:[%s4 + $0x2c] sm:$0xf]
    %v283 = vld [vmem:[%s4 + $0x30] sm:$0xff]
    %v284 = vld [vmem:[%s4 + $0x38] sm:$0xf]
    %v285 = vld [vmem:[%s4 + $0x3c] sm:$0xff]
    %v286 = vld [vmem:[%s4 + $0x44] sm:$0xf]
    %v287 = vld [vmem:[%s4 + $0x48] sm:$0xff]
    %v288 = vld [vmem:[%s4 + $0x50] sm:$0xf]
    %v289 = vld [vmem:[%s4 + $0x54] sm:$0xff]
    %v290 = vld [vmem:[%s4 + $0x5c] sm:$0xf]
    %v291 = vld [vmem:[%s4 + $0x60] sm:$0xff]
    %v292 = vld [vmem:[%s4 + $0x68] sm:$0xf]
    %v293 = vld [vmem:[%s4 + $0x6c] sm:$0xff]
    %v294 = vld [vmem:[%s4 + $0x74] sm:$0xf]
    %v295 = vld [vmem:[%s4 + $0x78] sm:$0xff]
    %v296 = vld [vmem:[%s4 + $0x80] sm:$0xf]
    %v297 = vld [vmem:[%s4 + $0x84] sm:$0xff]
    %v298 = vld [vmem:[%s4 + $0x8c] sm:$0xf]
    %v299 = vld [vmem:[%s4 + $0x90] sm:$0xff]
    %v300 = vld [vmem:[%s4 + $0x98] sm:$0xf]
    %v301 = vld [vmem:[%s4 + $0x9c] sm:$0xff]
    %v302 = vld [vmem:[%s4 + $0xa4] sm:$0xf]
    %v303 = vld [vmem:[%s4 + $0xa8] sm:$0xff]
    %v304 = vld [vmem:[%s4 + $0xb0] sm:$0xf]
    %v305 = vld [vmem:[%s4 + $0xb4] sm:$0xff]
    %v306 = vld [vmem:[%s4 + $0xbc] sm:$0xf]
    %v307 = vld [vmem:[#allocation2] sm:$0x7]
    %v309 = vlaneseq
    %v310 = vshrl.u32 %v309, 7
    %v311 = vsub.s32 0, %v310
    %v312 = vrot.slane %v307, %v311
    %v313 = vlaneseq
    %v314 = vshrl.u32 %v313, 7
    %v315 = vsub.s32 1, %v314
    %v316 = vrot.slane %v307, %v315
    %v317 = vlaneseq
    %v318 = vshrl.u32 %v317, 7
    %v319 = vsub.s32 2, %v318
    %v320 = vrot.slane %v307, %v319
    %v356 = vunpack.c.l.b16 %v275
    %v357 = vunpack.c.h.b16 %v275
    %v358 = vunpack.c.l.b16 %v276
    %v359 = vunpack.c.l.b16 %v277
    %v360 = vunpack.c.h.b16 %v277
    %v361 = vunpack.c.l.b16 %v278
    %v362 = vunpack.c.l.b16 %v279
    %v363 = vunpack.c.h.b16 %v279
    %v364 = vunpack.c.l.b16 %v280
    %v365 = vunpack.c.l.b16 %v281
    %v366 = vunpack.c.h.b16 %v281
    %v367 = vunpack.c.l.b16 %v282
    %v368 = vunpack.c.l.b16 %v283
    %v369 = vunpack.c.h.b16 %v283
    %v370 = vunpack.c.l.b16 %v284
    %v371 = vunpack.c.l.b16 %v285
    %v372 = vunpack.c.h.b16 %v285
    %v373 = vunpack.c.l.b16 %v286
    %v374 = vunpack.c.l.b16 %v287
    %v375 = vunpack.c.h.b16 %v287
    %v376 = vunpack.c.l.b16 %v288
    %v377 = vunpack.c.l.b16 %v289
    %v378 = vunpack.c.h.b16 %v289
    %v379 = vunpack.c.l.b16 %v290
    %v380 = vunpack.c.l.b16 %v291
    %v381 = vunpack.c.h.b16 %v291
    %v382 = vunpack.c.l.b16 %v292
    %v383 = vunpack.c.l.b16 %v293
    %v384 = vunpack.c.h.b16 %v293
    %v385 = vunpack.c.l.b16 %v294
    %v386 = vunpack.c.l.b16 %v295
    %v387 = vunpack.c.h.b16 %v295
    %v388 = vunpack.c.l.b16 %v296
    %v389 = vunpack.c.l.b16 %v297
    %v390 = vunpack.c.h.b16 %v297
    %v391 = vunpack.c.l.b16 %v298
    %v392 = vunpack.c.l.b16 %v299
    %v393 = vunpack.c.h.b16 %v299
    %v394 = vunpack.c.l.b16 %v300
    %v395 = vunpack.c.l.b16 %v301
    %v396 = vunpack.c.h.b16 %v301
    %v397 = vunpack.c.l.b16 %v302
    %v398 = vunpack.c.l.b16 %v303
    %v399 = vunpack.c.h.b16 %v303
    %v400 = vunpack.c.l.b16 %v304
    %v401 = vunpack.c.l.b16 %v305
    %v402 = vunpack.c.h.b16 %v305
    %v403 = vunpack.c.l.b16 %v306
    %v404 = vpack.c.b16 %v359, %v356
    %v405 = vpack.c.b16 %v360, %v357
    %v406 = vpack.c.b16 %v361, %v358
    %v407 = vpack.c.b16 %v365, %v362
    %v408 = vpack.c.b16 %v366, %v363
    %v409 = vpack.c.b16 %v367, %v364
    %v410 = vpack.c.b16 %v371, %v368
    %v411 = vpack.c.b16 %v372, %v369
    %v412 = vpack.c.b16 %v373, %v370
    %v413 = vpack.c.b16 %v377, %v374
    %v414 = vpack.c.b16 %v378, %v375
    %v415 = vpack.c.b16 %v379, %v376
    %v416 = vpack.c.b16 %v383, %v380
    %v417 = vpack.c.b16 %v384, %v381
    %v418 = vpack.c.b16 %v385, %v382
    %v419 = vpack.c.b16 %v389, %v386
    %v420 = vpack.c.b16 %v390, %v387
    %v421 = vpack.c.b16 %v391, %v388
    %v422 = vpack.c.b16 %v395, %v392
    %v423 = vpack.c.b16 %v396, %v393
    %v424 = vpack.c.b16 %v397, %v394
    %v425 = vpack.c.b16 %v401, %v398
    %v426 = vpack.c.b16 %v402, %v399
    %v427 = vpack.c.b16 %v403, %v400
    %452 = vmatprep.subr.bf16.mxu0 %v426
    %453 = vmatpush1.bf16.msra.mxu0 %v425
    %454 = vmatprep.subr.bf16.mxu0 %v423
    %455 = vmatpush1.bf16.msra.mxu0 %v422
    %456 = vmatprep.subr.bf16.mxu0 %v420
    %457 = vmatpush1.bf16.msra.mxu0 %v419
    %458 = vmatprep.subr.bf16.mxu0 %v417
    %459 = vmatpush1.bf16.msra.mxu0 %v416
    %460 = vmatprep.subr.bf16.mxu0 %v414
    %461 = vmatpush1.bf16.msra.mxu0 %v413
    %462 = vmatprep.subr.bf16.mxu0 %v411
    %463 = vmatpush1.bf16.msra.mxu0 %v410
    %464 = vmatprep.subr.bf16.mxu0 %v408
    %465 = vmatpush1.bf16.msra.mxu0 %v407
    %466 = vmatprep.subr.bf16.mxu0 %v405
    %467 = vmatpush1.bf16.msra.mxu0 %v404
    %468 = vmatprep.subr.bf16.mxu0 0
    %469 = vmatpush2.bf16.msra.mxu0 0
    %470 = vmatprep.subr.bf16.mxu0 0
    %471 = vmatpush2.bf16.msra.mxu0 0
    %472 = vmatprep.subr.bf16.mxu0 0
    %473 = vmatpush2.bf16.msra.mxu0 0
    %474 = vmatprep.subr.bf16.mxu0 0
    %475 = vmatpush2.bf16.msra.mxu0 0
    %476 = vmatprep.subr.bf16.mxu0 0
    %477 = vmatpush2.bf16.msra.mxu0 0
    %478 = vmatprep.subr.bf16.mxu0 0
    %479 = vmatpush2.bf16.msra.mxu0 0
    %480 = vmatprep.subr.bf16.mxu0 0
    %481 = vmatpush2.bf16.msra.mxu0 0
    %482 = vmatprep.subr.bf16.mxu0 0
    %483 = vmatpush2.bf16.msra.mxu0 0
    %484 = vmatprep.mubr.bf16.mxu0 0
    %485 = vmatmul.mubr.bf16.gmra.mxu0 %v273
    %v486 = vpop.f32.mrf.mxu0
    %v487 = vadd.f32 %v312, %v486
    %v488 = vpop.f32.mrf.mxu0
    %v489 = vadd.f32 %v316, %v488
    %v490 = vpop.f32.mrf.mxu0
    %v491 = vadd.f32 %v312, %v490
    %v492 = vpop.f32.mrf.mxu0
    %v493 = vadd.f32 %v316, %v492
    %494 = vmatprep.mubr.bf16.mxu0 0
    %495 = vmatmul.mubr.bf16.gmra.mxu0 %v274
    %v496 = vpop.f32.mrf.mxu0
    %v497 = vadd.f32 %v312, %v496
    %v498 = vpop.f32.mrf.mxu0
    %v499 = vadd.f32 %v316, %v498
    %v500 = vpop.f32.mrf.mxu0
    %v501 = vadd.f32 %v312, %v500
    %v502 = vpop.f32.mrf.mxu0
    %v503 = vadd.f32 %v316, %v502
    %504 = vdwg.mxu0
    %505 = vmatprep.subr.bf16.mxu0 0
    %506 = vmatpush1.bf16.msra.mxu0 %v427
    %507 = vmatprep.subr.bf16.mxu0 0
    %508 = vmatpush1.bf16.msra.mxu0 %v424
    %509 = vmatprep.subr.bf16.mxu0 0
    %510 = vmatpush1.bf16.msra.mxu0 %v421
    %511 = vmatprep.subr.bf16.mxu0 0
    %512 = vmatpush1.bf16.msra.mxu0 %v418
    %513 = vmatprep.subr.bf16.mxu0 0
    %514 = vmatpush1.bf16.msra.mxu0 %v415
    %515 = vmatprep.subr.bf16.mxu0 0
    %516 = vmatpush1.bf16.msra.mxu0 %v412
    %517 = vmatprep.subr.bf16.mxu0 0
    %518 = vmatpush1.bf16.msra.mxu0 %v409
    %519 = vmatprep.subr.bf16.mxu0 0
    %520 = vmatpush1.bf16.msra.mxu0 %v406
    %521 = vmatprep.subr.bf16.mxu0 0
    %522 = vmatpush2.bf16.msra.mxu0 0
    %523 = vmatprep.subr.bf16.mxu0 0
    %524 = vmatpush2.bf16.msra.mxu0 0
    %525 = vmatprep.subr.bf16.mxu0 0
    %526 = vmatpush2.bf16.msra.mxu0 0
    %527 = vmatprep.subr.bf16.mxu0 0
    %528 = vmatpush2.bf16.msra.mxu0 0
    %529 = vmatprep.subr.bf16.mxu0 0
    %530 = vmatpush2.bf16.msra.mxu0 0
    %531 = vmatprep.subr.bf16.mxu0 0
    %532 = vmatpush2.bf16.msra.mxu0 0
    %533 = vmatprep.subr.bf16.mxu0 0
    %534 = vmatpush2.bf16.msra.mxu0 0
    %535 = vmatprep.subr.bf16.mxu0 0
    %536 = vmatpush2.bf16.msra.mxu0 0
    %537 = vmatprep.mubr.bf16.mxu0 0
    %538 = vmatmul.mubr.bf16.gmra.mxu0 %v273
    %v539 = vpop.f32.mrf.mxu0
    %v540 = vadd.f32 %v320, %v539
    %v541 = vpop.f32.mrf.mxu0
    %v542 = vpop.f32.mrf.mxu0
    %v543 = vadd.f32 %v320, %v542
    %v544 = vpop.f32.mrf.mxu0
    %545 = vmatprep.mubr.bf16.mxu0 0
    %546 = vmatmul.mubr.bf16.gmra.mxu0 %v274
    %v547 = vpop.f32.mrf.mxu0
    %v548 = vadd.f32 %v320, %v547
    %v549 = vpop.f32.mrf.mxu0
    %v550 = vpop.f32.mrf.mxu0
    %v551 = vadd.f32 %v320, %v550
    %v552 = vpop.f32.mrf.mxu0
    %553 = vdwg.mxu0
    %v554 = vpack.c.bf16 %v491, %v487
    %v555 = vpack.c.bf16 %v493, %v489
    %v556 = vpack.c.bf16 %v543, %v540
    %v557 = vpack.c.bf16 %v501, %v497
    %v558 = vpack.c.bf16 %v503, %v499
    %v559 = vpack.c.bf16 %v551, %v548
    %vm560 = vcmask 261120
    %v562 = vsel %vm560, %v554, 0
    %v565 = vsel %vm560, %v557, 0
    %v568 = vsel %vm560, %v555, 0
    %v571 = vsel %vm560, %v558, 0
    %573 = vmatprep.subr.bf16.mxu0 0
    %574 = vmatpush1.bf16.xpose.msra.mxu0 0
    %575 = vmatprep.subr.bf16.mxu0 0
    %576 = vmatpush1.bf16.xpose.msra.mxu0 0
    %577 = vmatprep.subr.bf16.mxu0 0
    %578 = vmatpush1.bf16.xpose.msra.mxu0 0
    %579 = vmatprep.subr.bf16.mxu0 0
    %580 = vmatpush1.bf16.xpose.msra.mxu0 0
    %581 = vmatprep.subr.bf16.mxu0 0
    %582 = vmatpush1.bf16.xpose.msra.mxu0 0
    %583 = vmatprep.subr.bf16.mxu0 0
    %584 = vmatpush1.bf16.xpose.msra.mxu0 0
    %585 = vmatprep.subr.bf16.mxu0 0
    %586 = vmatpush1.bf16.xpose.msra.mxu0 %v571
    %587 = vmatprep.subr.bf16.mxu0 0
    %588 = vmatpush1.bf16.xpose.msra.mxu0 %v568
    %589 = vmatprep.subr.bf16.mxu0 0
    %590 = vmatpush2.bf16.xpose.msra.mxu0 0
    %591 = vmatprep.subr.bf16.mxu0 0
    %592 = vmatpush2.bf16.xpose.msra.mxu0 0
    %593 = vmatprep.subr.bf16.mxu0 0
    %594 = vmatpush2.bf16.xpose.msra.mxu0 0
    %595 = vmatprep.subr.bf16.mxu0 0
    %596 = vmatpush2.bf16.xpose.msra.mxu0 0
    %597 = vmatprep.subr.bf16.mxu0 0
    %598 = vmatpush2.bf16.xpose.msra.mxu0 0
    %599 = vmatprep.subr.bf16.mxu0 0
    %600 = vmatpush2.bf16.xpose.msra.mxu0 0
    %601 = vmatprep.subr.bf16.mxu0 0
    %602 = vmatpush2.bf16.xpose.msra.mxu0 0
    %603 = vmatprep.subr.bf16.mxu0 0
    %604 = vmatpush2.bf16.xpose.msra.mxu0 0
    %605 = vmatprep.mubr.bf16.mxu0 0
    %606 = vmatmul.mubr.bf16.gmra.mxu0 %v562
    %v607 = vpop.f32.mrf.mxu0
    %v608 = vadd.f32 %v198, %v607
    %v609 = vpop.f32.mrf.mxu0
    %v610 = vpop.f32.mrf.mxu0
    %v611 = vadd.f32 %v199, %v610
    %v612 = vpop.f32.mrf.mxu0
    %613 = vmatprep.mubr.bf16.mxu0 0
    %614 = vmatmul.mubr.bf16.gmra.mxu0 %v565
    %v615 = vpop.f32.mrf.mxu0
    %v616 = vadd.f32 %v200, %v615
    %v617 = vpop.f32.mrf.mxu0
    %v618 = vpop.f32.mrf.mxu0
    %v619 = vadd.f32 %v201, %v618
    %v620 = vpop.f32.mrf.mxu0
    %621 = vdwg.mxu0
    %v622 = vsel %vm560, %v608, -inf
    %623 = vmax.xlane.f32.xlu0 %v622
    %v624 = vpop.xlane.xlu0 %623
    %v625 = vsel %vm560, %v611, -inf
    %626 = vmax.xlane.f32.xlu0 %v625
    %v627 = vpop.xlane.xlu0 %626
    %v628 = vsel %vm560, %v616, -inf
    %629 = vmax.xlane.f32.xlu0 %v628
    %v630 = vpop.xlane.xlu0 %629
    %v631 = vsel %vm560, %v619, -inf
    %632 = vmax.xlane.f32.xlu0 %v631
    %v633 = vpop.xlane.xlu0 %632
    %v634 = vsub.f32 %v608, %v624
    %v635 = vsub.f32 %v611, %v627
    %v636 = vsub.f32 %v616, %v630
    %v637 = vsub.f32 %v619, %v633
    %v638 = vmul.f32 %v634, 1.442695
    %v639 = vpow.pop %v638
    %v640 = vmul.f32 %v635, 1.442695
    %v641 = vpow.pop %v640
    %v642 = vmul.f32 %v636, 1.442695
    %v643 = vpow.pop %v642
    %v644 = vmul.f32 %v637, 1.442695
    %v645 = vpow.pop %v644
    %v646 = vsel %vm560, %v639, 0.0
    %647 = vadd.xlane.f32.xlu0 %v646
    %v648 = vpop.xlane.xlu0 %647
    %v649 = vsel %vm560, %v641, 0.0
    %650 = vadd.xlane.f32.xlu0 %v649
    %v651 = vpop.xlane.xlu0 %650
    %v652 = vsel %vm560, %v643, 0.0
    %653 = vadd.xlane.f32.xlu0 %v652
    %v654 = vpop.xlane.xlu0 %653
    %v655 = vsel %vm560, %v645, 0.0
    %656 = vadd.xlane.f32.xlu0 %v655
    %v657 = vpop.xlane.xlu0 %656
    %v658 = vrcp.pop %v648
    %v659 = vrcp.pop %v651
    %v660 = vrcp.pop %v654
    %v661 = vrcp.pop %v657
    %v662 = vmul.f32 %v639, %v658
    %v663 = vmul.f32 %v641, %v659
    %v664 = vmul.f32 %v643, %v660
    %v665 = vmul.f32 %v645, %v661
    %v666 = vpack.c.bf16 %v663, %v662
    %v667 = vpack.c.bf16 %v665, %v664
    %v669 = vsel %vm560, %v666, 0
    %v672 = vsel %vm560, %v667, 0
    %674 = vmatprep.subr.bf16.mxu0 0
    %675 = vmatpush1.bf16.msra.mxu0 0
    %676 = vmatprep.subr.bf16.mxu0 0
    %677 = vmatpush1.bf16.msra.mxu0 0
    %678 = vmatprep.subr.bf16.mxu0 0
    %679 = vmatpush1.bf16.msra.mxu0 0
    %680 = vmatprep.subr.bf16.mxu0 0
    %681 = vmatpush1.bf16.msra.mxu0 0
    %682 = vmatprep.subr.bf16.mxu0 0
    %683 = vmatpush1.bf16.msra.mxu0 0
    %684 = vmatprep.subr.bf16.mxu0 0
    %685 = vmatpush1.bf16.msra.mxu0 0
    %686 = vmatprep.subr.bf16.mxu0 0
    %687 = vmatpush1.bf16.msra.mxu0 %v559
    %688 = vmatprep.subr.bf16.mxu0 0
    %689 = vmatpush1.bf16.msra.mxu0 %v556
    %690 = vmatprep.subr.bf16.mxu0 0
    %691 = vmatpush2.bf16.msra.mxu0 0
    %692 = vmatprep.subr.bf16.mxu0 0
    %693 = vmatpush2.bf16.msra.mxu0 0
    %694 = vmatprep.subr.bf16.mxu0 0
    %695 = vmatpush2.bf16.msra.mxu0 0
    %696 = vmatprep.subr.bf16.mxu0 0
    %697 = vmatpush2.bf16.msra.mxu0 0
    %698 = vmatprep.subr.bf16.mxu0 0
    %699 = vmatpush2.bf16.msra.mxu0 0
    %700 = vmatprep.subr.bf16.mxu0 0
    %701 = vmatpush2.bf16.msra.mxu0 0
    %702 = vmatprep.subr.bf16.mxu0 0
    %703 = vmatpush2.bf16.msra.mxu0 0
    %704 = vmatprep.subr.bf16.mxu0 0
    %705 = vmatpush2.bf16.msra.mxu0 0
    %706 = vmatprep.mubr.bf16.mxu0 0
    %707 = vmatmul.mubr.bf16.gmra.mxu0 %v669
    %v708 = vpop.f32.mrf.mxu0
    %v709 = vadd.f32 0.0, %v708
    %v710 = vpop.f32.mrf.mxu0
    %v711 = vpop.f32.mrf.mxu0
    %v712 = vadd.f32 0.0, %v711
    %v713 = vpop.f32.mrf.mxu0
    %714 = vmatprep.mubr.bf16.mxu0 0
    %715 = vmatmul.mubr.bf16.gmra.mxu0 %v672
    %v716 = vpop.f32.mrf.mxu0
    %v717 = vadd.f32 0.0, %v716
    %v718 = vpop.f32.mrf.mxu0
    %v719 = vpop.f32.mrf.mxu0
    %v720 = vadd.f32 0.0, %v719
    %v721 = vpop.f32.mrf.mxu0
    %722 = vdwg.mxu0
    %725 = vrot.lane.b32.xlu0 %v554, 96
    %v726 = vpop.permute.xlu0 %725
    %727 = vrot.lane.b32.xlu0 %v557, 96
    %v728 = vpop.permute.xlu0 %727
    %731 = vrot.lane.b32.xlu0 %v555, 96
    %v732 = vpop.permute.xlu0 %731
    %733 = vrot.lane.b32.xlu0 %v558, 96
    %v734 = vpop.permute.xlu0 %733
    %v736 = vsel %vm560, %v726, 0
    %v739 = vsel %vm560, %v728, 0
    %v742 = vsel %vm560, %v732, 0
    %v745 = vsel %vm560, %v734, 0
    %747 = vmatprep.subr.bf16.mxu0 0
    %748 = vmatpush1.bf16.xpose.msra.mxu0 0
    %749 = vmatprep.subr.bf16.mxu0 0
    %750 = vmatpush1.bf16.xpose.msra.mxu0 0
    %751 = vmatprep.subr.bf16.mxu0 0
    %752 = vmatpush1.bf16.xpose.msra.mxu0 0
    %753 = vmatprep.subr.bf16.mxu0 0
    %754 = vmatpush1.bf16.xpose.msra.mxu0 0
    %755 = vmatprep.subr.bf16.mxu0 0
    %756 = vmatpush1.bf16.xpose.msra.mxu0 0
    %757 = vmatprep.subr.bf16.mxu0 0
    %758 = vmatpush1.bf16.xpose.msra.mxu0 0
    %759 = vmatprep.subr.bf16.mxu0 0
    %760 = vmatpush1.bf16.xpose.msra.mxu0 %v745
    %761 = vmatprep.subr.bf16.mxu0 0
    %762 = vmatpush1.bf16.xpose.msra.mxu0 %v742
    %763 = vmatprep.subr.bf16.mxu0 0
    %764 = vmatpush2.bf16.xpose.msra.mxu0 0
    %765 = vmatprep.subr.bf16.mxu0 0
    %766 = vmatpush2.bf16.xpose.msra.mxu0 0
    %767 = vmatprep.subr.bf16.mxu0 0
    %768 = vmatpush2.bf16.xpose.msra.mxu0 0
    %769 = vmatprep.subr.bf16.mxu0 0
    %770 = vmatpush2.bf16.xpose.msra.mxu0 0
    %771 = vmatprep.subr.bf16.mxu0 0
    %772 = vmatpush2.bf16.xpose.msra.mxu0 0
    %773 = vmatprep.subr.bf16.mxu0 0
    %774 = vmatpush2.bf16.xpose.msra.mxu0 0
    %775 = vmatprep.subr.bf16.mxu0 0
    %776 = vmatpush2.bf16.xpose.msra.mxu0 0
    %777 = vmatprep.subr.bf16.mxu0 0
    %778 = vmatpush2.bf16.xpose.msra.mxu0 0
    %779 = vmatprep.mubr.bf16.mxu0 0
    %780 = vmatmul.mubr.bf16.gmra.mxu0 %v736
    %v781 = vpop.f32.mrf.mxu0
    %v782 = vadd.f32 %v198, %v781
    %v783 = vpop.f32.mrf.mxu0
    %v784 = vpop.f32.mrf.mxu0
    %v785 = vadd.f32 %v199, %v784
    %v786 = vpop.f32.mrf.mxu0
    %787 = vmatprep.mubr.bf16.mxu0 0
    %788 = vmatmul.mubr.bf16.gmra.mxu0 %v739
    %v789 = vpop.f32.mrf.mxu0
    %v790 = vadd.f32 %v200, %v789
    %v791 = vpop.f32.mrf.mxu0
    %v792 = vpop.f32.mrf.mxu0
    %v793 = vadd.f32 %v201, %v792
    %v794 = vpop.f32.mrf.mxu0
    %795 = vdwg.mxu0
    %v796 = vsel %vm560, %v782, -inf
    %797 = vmax.xlane.f32.xlu0 %v796
    %v798 = vpop.xlane.xlu0 %797
    %v799 = vsel %vm560, %v785, -inf
    %800 = vmax.xlane.f32.xlu0 %v799
    %v801 = vpop.xlane.xlu0 %800
    %v802 = vsel %vm560, %v790, -inf
    %803 = vmax.xlane.f32.xlu0 %v802
    %v804 = vpop.xlane.xlu0 %803
    %v805 = vsel %vm560, %v793, -inf
    %806 = vmax.xlane.f32.xlu0 %v805
    %v807 = vpop.xlane.xlu0 %806
    %v808 = vsub.f32 %v782, %v798
    %v809 = vsub.f32 %v785, %v801
    %v810 = vsub.f32 %v790, %v804
    %v811 = vsub.f32 %v793, %v807
    %v812 = vmul.f32 %v808, 1.442695
    %v813 = vpow.pop %v812
    %v814 = vmul.f32 %v809, 1.442695
    %v815 = vpow.pop %v814
    %v816 = vmul.f32 %v810, 1.442695
    %v817 = vpow.pop %v816
    %v818 = vmul.f32 %v811, 1.442695
    %v819 = vpow.pop %v818
    %v820 = vsel %vm560, %v813, 0.0
    %821 = vadd.xlane.f32.xlu0 %v820
    %v822 = vpop.xlane.xlu0 %821
    %v823 = vsel %vm560, %v815, 0.0
    %824 = vadd.xlane.f32.xlu0 %v823
    %v825 = vpop.xlane.xlu0 %824
    %v826 = vsel %vm560, %v817, 0.0
    %827 = vadd.xlane.f32.xlu0 %v826
    %v828 = vpop.xlane.xlu0 %827
    %v829 = vsel %vm560, %v819, 0.0
    %830 = vadd.xlane.f32.xlu0 %v829
    %v831 = vpop.xlane.xlu0 %830
    %v832 = vrcp.pop %v822
    %v833 = vrcp.pop %v825
    %v834 = vrcp.pop %v828
    %v835 = vrcp.pop %v831
    %v836 = vmul.f32 %v813, %v832
    %v837 = vmul.f32 %v815, %v833
    %v838 = vmul.f32 %v817, %v834
    %v839 = vmul.f32 %v819, %v835
    %v840 = vpack.c.bf16 %v837, %v836
    %v841 = vpack.c.bf16 %v839, %v838
    %844 = vrot.lane.b32.xlu0 %v556, 96
    %v845 = vpop.permute.xlu0 %844
    %846 = vrot.lane.b32.xlu0 %v559, 96
    %v847 = vpop.permute.xlu0 %846
    %v851 = vsel %vm560, %v840, 0
    %v854 = vsel %vm560, %v841, 0
    %856 = vmatprep.subr.bf16.mxu0 0
    %857 = vmatpush1.bf16.msra.mxu0 0
    %858 = vmatprep.subr.bf16.mxu0 0
    %859 = vmatpush1.bf16.msra.mxu0 0
    %860 = vmatprep.subr.bf16.mxu0 0
    %861 = vmatpush1.bf16.msra.mxu0 0
    %862 = vmatprep.subr.bf16.mxu0 0
    %863 = vmatpush1.bf16.msra.mxu0 0
    %864 = vmatprep.subr.bf16.mxu0 0
    %865 = vmatpush1.bf16.msra.mxu0 0
    %866 = vmatprep.subr.bf16.mxu0 0
    %867 = vmatpush1.bf16.msra.mxu0 0
    %868 = vmatprep.subr.bf16.mxu0 0
    %869 = vmatpush1.bf16.msra.mxu0 %v847
    %870 = vmatprep.subr.bf16.mxu0 0
    %871 = vmatpush1.bf16.msra.mxu0 %v845
    %872 = vmatprep.subr.bf16.mxu0 0
    %873 = vmatpush2.bf16.msra.mxu0 0
    %874 = vmatprep.subr.bf16.mxu0 0
    %875 = vmatpush2.bf16.msra.mxu0 0
    %876 = vmatprep.subr.bf16.mxu0 0
    %877 = vmatpush2.bf16.msra.mxu0 0
    %878 = vmatprep.subr.bf16.mxu0 0
    %879 = vmatpush2.bf16.msra.mxu0 0
    %880 = vmatprep.subr.bf16.mxu0 0
    %881 = vmatpush2.bf16.msra.mxu0 0
    %882 = vmatprep.subr.bf16.mxu0 0
    %883 = vmatpush2.bf16.msra.mxu0 0
    %884 = vmatprep.subr.bf16.mxu0 0
    %885 = vmatpush2.bf16.msra.mxu0 0
    %886 = vmatprep.subr.bf16.mxu0 0
    %887 = vmatpush2.bf16.msra.mxu0 0
    %888 = vmatprep.mubr.bf16.mxu0 0
    %889 = vmatmul.mubr.bf16.gmra.mxu0 %v851
    %v890 = vpop.f32.mrf.mxu0
    %v891 = vadd.f32 0.0, %v890
    %v892 = vpop.f32.mrf.mxu0
    %v893 = vpop.f32.mrf.mxu0
    %v894 = vadd.f32 0.0, %v893
    %v895 = vpop.f32.mrf.mxu0
    %896 = vmatprep.mubr.bf16.mxu0 0
    %897 = vmatmul.mubr.bf16.gmra.mxu0 %v854
    %v898 = vpop.f32.mrf.mxu0
    %v899 = vadd.f32 0.0, %v898
    %v900 = vpop.f32.mrf.mxu0
    %v901 = vpop.f32.mrf.mxu0
    %v902 = vadd.f32 0.0, %v901
    %v903 = vpop.f32.mrf.mxu0
    %904 = vdwg.mxu0
    %905 = vrot.lane.b32.xlu0 %v554, 64
    %v906 = vpop.permute.xlu0 %905
    %907 = vrot.lane.b32.xlu0 %v557, 64
    %v908 = vpop.permute.xlu0 %907
    %909 = vrot.lane.b32.xlu0 %v555, 64
    %v910 = vpop.permute.xlu0 %909
    %911 = vrot.lane.b32.xlu0 %v558, 64
    %v912 = vpop.permute.xlu0 %911
    %v914 = vsel %vm560, %v906, 0
    %v917 = vsel %vm560, %v908, 0
    %v920 = vsel %vm560, %v910, 0
    %v923 = vsel %vm560, %v912, 0
    %925 = vmatprep.subr.bf16.mxu0 0
    %926 = vmatpush1.bf16.xpose.msra.mxu0 0
    %927 = vmatprep.subr.bf16.mxu0 0
    %928 = vmatpush1.bf16.xpose.msra.mxu0 0
    %929 = vmatprep.subr.bf16.mxu0 0
    %930 = vmatpush1.bf16.xpose.msra.mxu0 0
    %931 = vmatprep.subr.bf16.mxu0 0
    %932 = vmatpush1.bf16.xpose.msra.mxu0 0
    %933 = vmatprep.subr.bf16.mxu0 0
    %934 = vmatpush1.bf16.xpose.msra.mxu0 0
    %935 = vmatprep.subr.bf16.mxu0 0
    %936 = vmatpush1.bf16.xpose.msra.mxu0 0
    %937 = vmatprep.subr.bf16.mxu0 0
    %938 = vmatpush1.bf16.xpose.msra.mxu0 %v923
    %939 = vmatprep.subr.bf16.mxu0 0
    %940 = vmatpush1.bf16.xpose.msra.mxu0 %v920
    %941 = vmatprep.subr.bf16.mxu0 0
    %942 = vmatpush2.bf16.xpose.msra.mxu0 0
    %943 = vmatprep.subr.bf16.mxu0 0
    %944 = vmatpush2.bf16.xpose.msra.mxu0 0
    %945 = vmatprep.subr.bf16.mxu0 0
    %946 = vmatpush2.bf16.xpose.msra.mxu0 0
    %947 = vmatprep.subr.bf16.mxu0 0
    %948 = vmatpush2.bf16.xpose.msra.mxu0 0
    %949 = vmatprep.subr.bf16.mxu0 0
    %950 = vmatpush2.bf16.xpose.msra.mxu0 0
    %951 = vmatprep.subr.bf16.mxu0 0
    %952 = vmatpush2.bf16.xpose.msra.mxu0 0
    %953 = vmatprep.subr.bf16.mxu0 0
    %954 = vmatpush2.bf16.xpose.msra.mxu0 0
    %955 = vmatprep.subr.bf16.mxu0 0
    %956 = vmatpush2.bf16.xpose.msra.mxu0 0
    %957 = vmatprep.mubr.bf16.mxu0 0
    %958 = vmatmul.mubr.bf16.gmra.mxu0 %v914
    %v959 = vpop.f32.mrf.mxu0
    %v960 = vadd.f32 %v198, %v959
    %v961 = vpop.f32.mrf.mxu0
    %v962 = vpop.f32.mrf.mxu0
    %v963 = vadd.f32 %v199, %v962
    %v964 = vpop.f32.mrf.mxu0
    %965 = vmatprep.mubr.bf16.mxu0 0
    %966 = vmatmul.mubr.bf16.gmra.mxu0 %v917
    %v967 = vpop.f32.mrf.mxu0
    %v968 = vadd.f32 %v200, %v967
    %v969 = vpop.f32.mrf.mxu0
    %v970 = vpop.f32.mrf.mxu0
    %v971 = vadd.f32 %v201, %v970
    %v972 = vpop.f32.mrf.mxu0
    %973 = vdwg.mxu0
    %v974 = vsel %vm560, %v960, -inf
    %975 = vmax.xlane.f32.xlu0 %v974
    %v976 = vpop.xlane.xlu0 %975
    %v977 = vsel %vm560, %v963, -inf
    %978 = vmax.xlane.f32.xlu0 %v977
    %v979 = vpop.xlane.xlu0 %978
    %v980 = vsel %vm560, %v968, -inf
    %981 = vmax.xlane.f32.xlu0 %v980
    %v982 = vpop.xlane.xlu0 %981
    %v983 = vsel %vm560, %v971, -inf
    %984 = vmax.xlane.f32.xlu0 %v983
    %v985 = vpop.xlane.xlu0 %984
    %v986 = vsub.f32 %v960, %v976
    %v987 = vsub.f32 %v963, %v979
    %v988 = vsub.f32 %v968, %v982
    %v989 = vsub.f32 %v971, %v985
    %v990 = vmul.f32 %v986, 1.442695
    %v991 = vpow.pop %v990
    %v992 = vmul.f32 %v987, 1.442695
    %v993 = vpow.pop %v992
    %v994 = vmul.f32 %v988, 1.442695
    %v995 = vpow.pop %v994
    %v996 = vmul.f32 %v989, 1.442695
    %v997 = vpow.pop %v996
    %v998 = vsel %vm560, %v991, 0.0
    %999 = vadd.xlane.f32.xlu0 %v998
    %v1000 = vpop.xlane.xlu0 %999
    %v1001 = vsel %vm560, %v993, 0.0
    %1002 = vadd.xlane.f32.xlu0 %v1001
    %v1003 = vpop.xlane.xlu0 %1002
    %v1004 = vsel %vm560, %v995, 0.0
    %1005 = vadd.xlane.f32.xlu0 %v1004
    %v1006 = vpop.xlane.xlu0 %1005
    %v1007 = vsel %vm560, %v997, 0.0
    %1008 = vadd.xlane.f32.xlu0 %v1007
    %v1009 = vpop.xlane.xlu0 %1008
    %v1010 = vrcp.pop %v1000
    %v1011 = vrcp.pop %v1003
    %v1012 = vrcp.pop %v1006
    %v1013 = vrcp.pop %v1009
    %v1014 = vmul.f32 %v991, %v1010
    %v1015 = vmul.f32 %v993, %v1011
    %v1016 = vmul.f32 %v995, %v1012
    %v1017 = vmul.f32 %v997, %v1013
    %v1018 = vpack.c.bf16 %v1015, %v1014
    %v1019 = vpack.c.bf16 %v1017, %v1016
    %1020 = vrot.lane.b32.xlu0 %v556, 64
    %v1021 = vpop.permute.xlu0 %1020
    %1022 = vrot.lane.b32.xlu0 %v559, 64
    %v1023 = vpop.permute.xlu0 %1022
    %v1027 = vsel %vm560, %v1018, 0
    %v1030 = vsel %vm560, %v1019, 0
    %1032 = vmatprep.subr.bf16.mxu0 0
    %1033 = vmatpush1.bf16.msra.mxu0 0
    %1034 = vmatprep.subr.bf16.mxu0 0
    %1035 = vmatpush1.bf16.msra.mxu0 0
    %1036 = vmatprep.subr.bf16.mxu0 0
    %1037 = vmatpush1.bf16.msra.mxu0 0
    %1038 = vmatprep.subr.bf16.mxu0 0
    %1039 = vmatpush1.bf16.msra.mxu0 0
    %1040 = vmatprep.subr.bf16.mxu0 0
    %1041 = vmatpush1.bf16.msra.mxu0 0
    %1042 = vmatprep.subr.bf16.mxu0 0
    %1043 = vmatpush1.bf16.msra.mxu0 0
    %1044 = vmatprep.subr.bf16.mxu0 0
    %1045 = vmatpush1.bf16.msra.mxu0 %v1023
    %1046 = vmatprep.subr.bf16.mxu0 0
    %1047 = vmatpush1.bf16.msra.mxu0 %v1021
    %1048 = vmatprep.subr.bf16.mxu0 0
    %1049 = vmatpush2.bf16.msra.mxu0 0
    %1050 = vmatprep.subr.bf16.mxu0 0
    %1051 = vmatpush2.bf16.msra.mxu0 0
    %1052 = vmatprep.subr.bf16.mxu0 0
    %1053 = vmatpush2.bf16.msra.mxu0 0
    %1054 = vmatprep.subr.bf16.mxu0 0
    %1055 = vmatpush2.bf16.msra.mxu0 0
    %1056 = vmatprep.subr.bf16.mxu0 0
    %1057 = vmatpush2.bf16.msra.mxu0 0
    %1058 = vmatprep.subr.bf16.mxu0 0
    %1059 = vmatpush2.bf16.msra.mxu0 0
    %1060 = vmatprep.subr.bf16.mxu0 0
    %1061 = vmatpush2.bf16.msra.mxu0 0
    %1062 = vmatprep.subr.bf16.mxu0 0
    %1063 = vmatpush2.bf16.msra.mxu0 0
    %1064 = vmatprep.mubr.bf16.mxu0 0
    %1065 = vmatmul.mubr.bf16.gmra.mxu0 %v1027
    %v1066 = vpop.f32.mrf.mxu0
    %v1067 = vadd.f32 0.0, %v1066
    %v1068 = vpop.f32.mrf.mxu0
    %v1069 = vpop.f32.mrf.mxu0
    %v1070 = vadd.f32 0.0, %v1069
    %v1071 = vpop.f32.mrf.mxu0
    %1072 = vmatprep.mubr.bf16.mxu0 0
    %1073 = vmatmul.mubr.bf16.gmra.mxu0 %v1030
    %v1074 = vpop.f32.mrf.mxu0
    %v1075 = vadd.f32 0.0, %v1074
    %v1076 = vpop.f32.mrf.mxu0
    %v1077 = vpop.f32.mrf.mxu0
    %v1078 = vadd.f32 0.0, %v1077
    %v1079 = vpop.f32.mrf.mxu0
    %1080 = vdwg.mxu0
    %1081 = vrot.lane.b32.xlu0 %v554, 32
    %v1082 = vpop.permute.xlu0 %1081
    %1083 = vrot.lane.b32.xlu0 %v557, 32
    %v1084 = vpop.permute.xlu0 %1083
    %1085 = vrot.lane.b32.xlu0 %v555, 32
    %v1086 = vpop.permute.xlu0 %1085
    %1087 = vrot.lane.b32.xlu0 %v558, 32
    %v1088 = vpop.permute.xlu0 %1087
    %v1090 = vsel %vm560, %v1082, 0
    %v1093 = vsel %vm560, %v1084, 0
    %v1096 = vsel %vm560, %v1086, 0
    %v1099 = vsel %vm560, %v1088, 0
    %1101 = vmatprep.subr.bf16.mxu0 0
    %1102 = vmatpush1.bf16.xpose.msra.mxu0 0
    %1103 = vmatprep.subr.bf16.mxu0 0
    %1104 = vmatpush1.bf16.xpose.msra.mxu0 0
    %1105 = vmatprep.subr.bf16.mxu0 0
    %1106 = vmatpush1.bf16.xpose.msra.mxu0 0
    %1107 = vmatprep.subr.bf16.mxu0 0
    %1108 = vmatpush1.bf16.xpose.msra.mxu0 0
    %1109 = vmatprep.subr.bf16.mxu0 0
    %1110 = vmatpush1.bf16.xpose.msra.mxu0 0
    %1111 = vmatprep.subr.bf16.mxu0 0
    %1112 = vmatpush1.bf16.xpose.msra.mxu0 0
    %1113 = vmatprep.subr.bf16.mxu0 0
    %1114 = vmatpush1.bf16.xpose.msra.mxu0 %v1099
    %1115 = vmatprep.subr.bf16.mxu0 0
    %1116 = vmatpush1.bf16.xpose.msra.mxu0 %v1096
    %1117 = vmatprep.subr.bf16.mxu0 0
    %1118 = vmatpush2.bf16.xpose.msra.mxu0 0
    %1119 = vmatprep.subr.bf16.mxu0 0
    %1120 = vmatpush2.bf16.xpose.msra.mxu0 0
    %1121 = vmatprep.subr.bf16.mxu0 0
    %1122 = vmatpush2.bf16.xpose.msra.mxu0 0
    %1123 = vmatprep.subr.bf16.mxu0 0
    %1124 = vmatpush2.bf16.xpose.msra.mxu0 0
    %1125 = vmatprep.subr.bf16.mxu0 0
    %1126 = vmatpush2.bf16.xpose.msra.mxu0 0
    %1127 = vmatprep.subr.bf16.mxu0 0
    %1128 = vmatpush2.bf16.xpose.msra.mxu0 0
    %1129 = vmatprep.subr.bf16.mxu0 0
    %1130 = vmatpush2.bf16.xpose.msra.mxu0 0
    %1131 = vmatprep.subr.bf16.mxu0 0
    %1132 = vmatpush2.bf16.xpose.msra.mxu0 0
    %1133 = vmatprep.mubr.bf16.mxu0 0
    %1134 = vmatmul.mubr.bf16.gmra.mxu0 %v1090
    %v1135 = vpop.f32.mrf.mxu0
    %v1136 = vadd.f32 %v198, %v1135
    %v1137 = vpop.f32.mrf.mxu0
    %v1138 = vpop.f32.mrf.mxu0
    %v1139 = vadd.f32 %v199, %v1138
    %v1140 = vpop.f32.mrf.mxu0
    %1141 = vmatprep.mubr.bf16.mxu0 0
    %1142 = vmatmul.mubr.bf16.gmra.mxu0 %v1093
    %v1143 = vpop.f32.mrf.mxu0
    %v1144 = vadd.f32 %v200, %v1143
    %v1145 = vpop.f32.mrf.mxu0
    %v1146 = vpop.f32.mrf.mxu0
    %v1147 = vadd.f32 %v201, %v1146
    %v1148 = vpop.f32.mrf.mxu0
    %1149 = vdwg.mxu0
    %v1150 = vsel %vm560, %v1136, -inf
    %1151 = vmax.xlane.f32.xlu0 %v1150
    %v1152 = vpop.xlane.xlu0 %1151
    %v1153 = vsel %vm560, %v1139, -inf
    %1154 = vmax.xlane.f32.xlu0 %v1153
    %v1155 = vpop.xlane.xlu0 %1154
    %v1156 = vsel %vm560, %v1144, -inf
    %1157 = vmax.xlane.f32.xlu0 %v1156
    %v1158 = vpop.xlane.xlu0 %1157
    %v1159 = vsel %vm560, %v1147, -inf
    %1160 = vmax.xlane.f32.xlu0 %v1159
    %v1161 = vpop.xlane.xlu0 %1160
    %v1162 = vsub.f32 %v1136, %v1152
    %v1163 = vsub.f32 %v1139, %v1155
    %v1164 = vsub.f32 %v1144, %v1158
    %v1165 = vsub.f32 %v1147, %v1161
    %v1166 = vmul.f32 %v1162, 1.442695
    %v1167 = vpow.pop %v1166
    %v1168 = vmul.f32 %v1163, 1.442695
    %v1169 = vpow.pop %v1168
    %v1170 = vmul.f32 %v1164, 1.442695
    %v1171 = vpow.pop %v1170
    %v1172 = vmul.f32 %v1165, 1.442695
    %v1173 = vpow.pop %v1172
    %v1174 = vsel %vm560, %v1167, 0.0
    %1175 = vadd.xlane.f32.xlu0 %v1174
    %v1176 = vpop.xlane.xlu0 %1175
    %v1177 = vsel %vm560, %v1169, 0.0
    %1178 = vadd.xlane.f32.xlu0 %v1177
    %v1179 = vpop.xlane.xlu0 %1178
    %v1180 = vsel %vm560, %v1171, 0.0
    %1181 = vadd.xlane.f32.xlu0 %v1180
    %v1182 = vpop.xlane.xlu0 %1181
    %v1183 = vsel %vm560, %v1173, 0.0
    %1184 = vadd.xlane.f32.xlu0 %v1183
    %v1185 = vpop.xlane.xlu0 %1184
    %v1186 = vrcp.pop %v1176
    %v1187 = vrcp.pop %v1179
    %v1188 = vrcp.pop %v1182
    %v1189 = vrcp.pop %v1185
    %v1190 = vmul.f32 %v1167, %v1186
    %v1191 = vmul.f32 %v1169, %v1187
    %v1192 = vmul.f32 %v1171, %v1188
    %v1193 = vmul.f32 %v1173, %v1189
    %v1194 = vpack.c.bf16 %v1191, %v1190
    %v1195 = vpack.c.bf16 %v1193, %v1192
    %1196 = vrot.lane.b32.xlu0 %v556, 32
    %v1197 = vpop.permute.xlu0 %1196
    %1198 = vrot.lane.b32.xlu0 %v559, 32
    %v1199 = vpop.permute.xlu0 %1198
    %v1203 = vsel %vm560, %v1194, 0
    %v1206 = vsel %vm560, %v1195, 0
    %1208 = vmatprep.subr.bf16.mxu0 0
    %1209 = vmatpush1.bf16.msra.mxu0 0
    %1210 = vmatprep.subr.bf16.mxu0 0
    %1211 = vmatpush1.bf16.msra.mxu0 0
    %1212 = vmatprep.subr.bf16.mxu0 0
    %1213 = vmatpush1.bf16.msra.mxu0 0
    %1214 = vmatprep.subr.bf16.mxu0 0
    %1215 = vmatpush1.bf16.msra.mxu0 0
    %1216 = vmatprep.subr.bf16.mxu0 0
    %1217 = vmatpush1.bf16.msra.mxu0 0
    %1218 = vmatprep.subr.bf16.mxu0 0
    %1219 = vmatpush1.bf16.msra.mxu0 0
    %1220 = vmatprep.subr.bf16.mxu0 0
    %1221 = vmatpush1.bf16.msra.mxu0 %v1199
    %1222 = vmatprep.subr.bf16.mxu0 0
    %1223 = vmatpush1.bf16.msra.mxu0 %v1197
    %1224 = vmatprep.subr.bf16.mxu0 0
    %1225 = vmatpush2.bf16.msra.mxu0 0
    %1226 = vmatprep.subr.bf16.mxu0 0
    %1227 = vmatpush2.bf16.msra.mxu0 0
    %1228 = vmatprep.subr.bf16.mxu0 0
    %1229 = vmatpush2.bf16.msra.mxu0 0
    %1230 = vmatprep.subr.bf16.mxu0 0
    %1231 = vmatpush2.bf16.msra.mxu0 0
    %1232 = vmatprep.subr.bf16.mxu0 0
    %1233 = vmatpush2.bf16.msra.mxu0 0
    %1234 = vmatprep.subr.bf16.mxu0 0
    %1235 = vmatpush2.bf16.msra.mxu0 0
    %1236 = vmatprep.subr.bf16.mxu0 0
    %1237 = vmatpush2.bf16.msra.mxu0 0
    %1238 = vmatprep.subr.bf16.mxu0 0
    %1239 = vmatpush2.bf16.msra.mxu0 0
    %1240 = vmatprep.mubr.bf16.mxu0 0
    %1241 = vmatmul.mubr.bf16.gmra.mxu0 %v1203
    %v1242 = vpop.f32.mrf.mxu0
    %v1243 = vadd.f32 0.0, %v1242
    %v1244 = vpop.f32.mrf.mxu0
    %v1245 = vpop.f32.mrf.mxu0
    %v1246 = vadd.f32 0.0, %v1245
    %v1247 = vpop.f32.mrf.mxu0
    %1248 = vmatprep.mubr.bf16.mxu0 0
    %1249 = vmatmul.mubr.bf16.gmra.mxu0 %v1206
    %v1250 = vpop.f32.mrf.mxu0
    %v1251 = vadd.f32 0.0, %v1250
    %v1252 = vpop.f32.mrf.mxu0
    %v1253 = vpop.f32.mrf.mxu0
    %v1254 = vadd.f32 0.0, %v1253
    %v1255 = vpop.f32.mrf.mxu0
    %1256 = vdwg.mxu0
    %1261 = vrot.lane.b32.xlu0 %v891, 32
    %v1262 = vpop.permute.xlu0 %1261
    %1263 = vrot.lane.b32.xlu0 %v894, 32
    %v1264 = vpop.permute.xlu0 %1263
    %1265 = vrot.lane.b32.xlu0 %v899, 32
    %v1266 = vpop.permute.xlu0 %1265
    %1267 = vrot.lane.b32.xlu0 %v902, 32
    %v1268 = vpop.permute.xlu0 %1267
    %1277 = vrot.lane.b32.xlu0 %v1067, 64
    %v1278 = vpop.permute.xlu0 %1277
    %1279 = vrot.lane.b32.xlu0 %v1070, 64
    %v1280 = vpop.permute.xlu0 %1279
    %1281 = vrot.lane.b32.xlu0 %v1075, 64
    %v1282 = vpop.permute.xlu0 %1281
    %1283 = vrot.lane.b32.xlu0 %v1078, 64
    %v1284 = vpop.permute.xlu0 %1283
    %1293 = vrot.lane.b32.xlu0 %v1243, 96
    %v1294 = vpop.permute.xlu0 %1293
    %1295 = vrot.lane.b32.xlu0 %v1246, 96
    %v1296 = vpop.permute.xlu0 %1295
    %1297 = vrot.lane.b32.xlu0 %v1251, 96
    %v1298 = vpop.permute.xlu0 %1297
    %1299 = vrot.lane.b32.xlu0 %v1254, 96
    %v1300 = vpop.permute.xlu0 %1299
    %v1305 = vsel %vm560, %v709, %v1262
    %v1306 = vsel %vm560, %v712, %v1264
    %v1307 = vsel %vm560, %v717, %v1266
    %v1308 = vsel %vm560, %v720, %v1268
    %vm1309 = vcmask 523264
    %v1310 = vsel %vm1309, %v1305, %v1278
    %v1311 = vsel %vm1309, %v1306, %v1280
    %v1312 = vsel %vm1309, %v1307, %v1282
    %v1313 = vsel %vm1309, %v1308, %v1284
    %vm1314 = vcmask 785408
    %v1315 = vsel %vm1314, %v1310, %v1294
    %v1316 = vsel %vm1314, %v1311, %v1296
    %v1317 = vsel %vm1314, %v1312, %v1298
    %v1318 = vsel %vm1314, %v1313, %v1300
    %v1319 = vpack.c.bf16 %v1316, %v1315
    %v1320 = vpack.c.bf16 %v1318, %v1317
    %v1321 = vld [vmem:[#allocation4] sm:$0xf]
    %v1322 = vld [vmem:[#allocation4 + $0x4] sm:$0xf]
    %v1323 = vld [vmem:[#allocation4 + $0x8] sm:$0xf]
    %v1324 = vld [vmem:[#allocation4 + $0xc] sm:$0xf]
    %v1325 = vld [vmem:[#allocation4 + $0x10] sm:$0xf]
    %v1326 = vld [vmem:[#allocation4 + $0x14] sm:$0xf]
    %v1327 = vld [vmem:[#allocation4 + $0x18] sm:$0xf]
    %v1328 = vld [vmem:[#allocation4 + $0x1c] sm:$0xf]
    %v1329 = vld [vmem:[#allocation4 + $0x20] sm:$0xf]
    %v1330 = vld [vmem:[#allocation4 + $0x24] sm:$0xf]
    %v1331 = vld [vmem:[#allocation4 + $0x28] sm:$0xf]
    %v1332 = vld [vmem:[#allocation4 + $0x2c] sm:$0xf]
    %v1333 = vld [vmem:[#allocation4 + $0x30] sm:$0xf]
    %v1334 = vld [vmem:[#allocation4 + $0x34] sm:$0xf]
    %v1335 = vld [vmem:[#allocation4 + $0x38] sm:$0xf]
    %v1336 = vld [vmem:[#allocation4 + $0x3c] sm:$0xf]
    %v1337 = vld [vmem:[#allocation6] sm:$0x1]
    %v1339 = vlaneseq
    %v1340 = vshrl.u32 %v1339, 7
    %v1341 = vsub.s32 0, %v1340
    %v1342 = vrot.slane %v1337, %v1341
    %v1360 = vunpack.c.l.b16 %v1321
    %v1361 = vunpack.c.l.b16 %v1322
    %v1362 = vunpack.c.l.b16 %v1323
    %v1363 = vunpack.c.l.b16 %v1324
    %v1364 = vunpack.c.l.b16 %v1325
    %v1365 = vunpack.c.l.b16 %v1326
    %v1366 = vunpack.c.l.b16 %v1327
    %v1367 = vunpack.c.l.b16 %v1328
    %v1368 = vunpack.c.l.b16 %v1329
    %v1369 = vunpack.c.l.b16 %v1330
    %v1370 = vunpack.c.l.b16 %v1331
    %v1371 = vunpack.c.l.b16 %v1332
    %v1372 = vunpack.c.l.b16 %v1333
    %v1373 = vunpack.c.l.b16 %v1334
    %v1374 = vunpack.c.l.b16 %v1335
    %v1375 = vunpack.c.l.b16 %v1336
    %v1376 = vpack.c.b16 %v1361, %v1360
    %v1377 = vpack.c.b16 %v1363, %v1362
    %v1378 = vpack.c.b16 %v1365, %v1364
    %v1379 = vpack.c.b16 %v1367, %v1366
    %v1380 = vpack.c.b16 %v1369, %v1368
    %v1381 = vpack.c.b16 %v1371, %v1370
    %v1382 = vpack.c.b16 %v1373, %v1372
    %v1383 = vpack.c.b16 %v1375, %v1374
    %1392 = vmatprep.subr.bf16.mxu0 0
    %1393 = vmatpush1.bf16.msra.mxu0 %v1383
    %1394 = vmatprep.subr.bf16.mxu0 0
    %1395 = vmatpush1.bf16.msra.mxu0 %v1382
    %1396 = vmatprep.subr.bf16.mxu0 0
    %1397 = vmatpush1.bf16.msra.mxu0 %v1381
    %1398 = vmatprep.subr.bf16.mxu0 0
    %1399 = vmatpush1.bf16.msra.mxu0 %v1380
    %1400 = vmatprep.subr.bf16.mxu0 0
    %1401 = vmatpush1.bf16.msra.mxu0 %v1379
    %1402 = vmatprep.subr.bf16.mxu0 0
    %1403 = vmatpush1.bf16.msra.mxu0 %v1378
    %1404 = vmatprep.subr.bf16.mxu0 0
    %1405 = vmatpush1.bf16.msra.mxu0 %v1377
    %1406 = vmatprep.subr.bf16.mxu0 0
    %1407 = vmatpush1.bf16.msra.mxu0 %v1376
    %1408 = vmatprep.subr.bf16.mxu0 0
    %1409 = vmatpush2.bf16.msra.mxu0 0
    %1410 = vmatprep.subr.bf16.mxu0 0
    %1411 = vmatpush2.bf16.msra.mxu0 0
    %1412 = vmatprep.subr.bf16.mxu0 0
    %1413 = vmatpush2.bf16.msra.mxu0 0
    %1414 = vmatprep.subr.bf16.mxu0 0
    %1415 = vmatpush2.bf16.msra.mxu0 0
    %1416 = vmatprep.subr.bf16.mxu0 0
    %1417 = vmatpush2.bf16.msra.mxu0 0
    %1418 = vmatprep.subr.bf16.mxu0 0
    %1419 = vmatpush2.bf16.msra.mxu0 0
    %1420 = vmatprep.subr.bf16.mxu0 0
    %1421 = vmatpush2.bf16.msra.mxu0 0
    %1422 = vmatprep.subr.bf16.mxu0 0
    %1423 = vmatpush2.bf16.msra.mxu0 0
    %1424 = vmatprep.mubr.bf16.mxu0 0
    %1425 = vmatmul.mubr.bf16.gmra.mxu0 %v1319
    %v1426 = vpop.f32.mrf.mxu0
    %v1427 = vadd.f32 %v1342, %v1426
    %v1428 = vpop.f32.mrf.mxu0
    %v1429 = vpop.f32.mrf.mxu0
    %v1430 = vadd.f32 %v1342, %v1429
    %v1431 = vpop.f32.mrf.mxu0
    %1432 = vmatprep.mubr.bf16.mxu0 0
    %1433 = vmatmul.mubr.bf16.gmra.mxu0 %v1320
    %v1434 = vpop.f32.mrf.mxu0
    %v1435 = vadd.f32 %v1342, %v1434
    %v1436 = vpop.f32.mrf.mxu0
    %v1437 = vpop.f32.mrf.mxu0
    %v1438 = vadd.f32 %v1342, %v1437
    %v1439 = vpop.f32.mrf.mxu0
    %1440 = vdwg.mxu0
    %v1441 = vadd.f32 %v269, %v1427
    %v1442 = vadd.f32 %v270, %v1430
    %v1443 = vadd.f32 %v271, %v1435
    %v1444 = vadd.f32 %v272, %v1438
    %v1445 = vld [vmem:[#allocation7] sm:$0x1]
    %v1446 = vld [vmem:[#allocation9] sm:$0x1]
    %1447 = vadd.xlane.f32.xlu0 %v1441
    %v1448 = vpop.xlane.xlu0 %1447
    %1449 = vadd.xlane.f32.xlu0 %v1442
    %v1450 = vpop.xlane.xlu0 %1449
    %1451 = vadd.xlane.f32.xlu0 %v1443
    %v1452 = vpop.xlane.xlu0 %1451
    %1453 = vadd.xlane.f32.xlu0 %v1444
    %v1454 = vpop.xlane.xlu0 %1453
    %v1455 = vmul.f32 %v1448, %v216
    %v1456 = vmul.f32 %v1450, %v216
    %v1457 = vmul.f32 %v1452, %v216
    %v1458 = vmul.f32 %v1454, %v216
    %v1459 = vsub.f32 %v1441, %v1455
    %v1460 = vsub.f32 %v1442, %v1456
    %v1461 = vsub.f32 %v1443, %v1457
    %v1462 = vsub.f32 %v1444, %v1458
    %v1463 = vmul.f32 %v1459, %v1459
    %v1464 = vmul.f32 %v1460, %v1460
    %v1465 = vmul.f32 %v1461, %v1461
    %v1466 = vmul.f32 %v1462, %v1462
    %1467 = vadd.xlane.f32.xlu0 %v1463
    %v1468 = vpop.xlane.xlu0 %1467
    %1469 = vadd.xlane.f32.xlu0 %v1464
    %v1470 = vpop.xlane.xlu0 %1469
    %1471 = vadd.xlane.f32.xlu0 %v1465
    %v1472 = vpop.xlane.xlu0 %1471
    %1473 = vadd.xlane.f32.xlu0 %v1466
    %v1474 = vpop.xlane.xlu0 %1473
    %v1475 = vmul.f32 %v1468, %v216
    %v1476 = vmul.f32 %v1470, %v216
    %v1477 = vmul.f32 %v1472, %v216
    %v1478 = vmul.f32 %v1474, %v216
    %v1479 = vadd.f32 %v1475, 1e-12
    %v1480 = vadd.f32 %v1476, 1e-12
    %v1481 = vadd.f32 %v1477, 1e-12
    %v1482 = vadd.f32 %v1478, 1e-12
    %v1483 = vrsqrt.pop %v1479
    %v1484 = vrsqrt.pop %v1480
    %v1485 = vrsqrt.pop %v1481
    %v1486 = vrsqrt.pop %v1482
    %v1487 = vmul.f32 %v1459, %v1483
    %v1488 = vmul.f32 %v1460, %v1484
    %v1489 = vmul.f32 %v1461, %v1485
    %v1490 = vmul.f32 %v1462, %v1486
    %v1492 = vlaneseq
    %v1493 = vshrl.u32 %v1492, 7
    %v1494 = vsub.s32 0, %v1493
    %v1495 = vrot.slane %v1445, %v1494
    %v1497 = vmul.f32 %v1487, %v1495
    %v1498 = vmul.f32 %v1488, %v1495
    %v1499 = vmul.f32 %v1489, %v1495
    %v1500 = vmul.f32 %v1490, %v1495
    %v1502 = vlaneseq
    %v1503 = vshrl.u32 %v1502, 7
    %v1504 = vsub.s32 0, %v1503
    %v1505 = vrot.slane %v1446, %v1504
    %v1507 = vadd.f32 %v1497, %v1505
    %v1508 = vadd.f32 %v1498, %v1505
    %v1509 = vadd.f32 %v1499, %v1505
    %v1510 = vadd.f32 %v1500, %v1505
    %v1511 = vpack.c.bf16 %v1508, %v1507
    %v1512 = vpack.c.bf16 %v1510, %v1509
    %v1513 = vld [vmem:[%s10] sm:$0xff]
    %v1514 = vld [vmem:[%s10 + $0x8] sm:$0xff]
    %v1515 = vld [vmem:[%s10 + $0x10] sm:$0xff]
    %v1516 = vld [vmem:[%s10 + $0x18] sm:$0xff]
    %v1517 = vld [vmem:[%s10 + $0x20] sm:$0xff]
    %v1518 = vld [vmem:[%s10 + $0x28] sm:$0xff]
    %v1519 = vld [vmem:[%s10 + $0x30] sm:$0xff]
    %v1520 = vld [vmem:[%s10 + $0x38] sm:$0xff]
    %v1521 = vld [vmem:[%s10 + $0x40] sm:$0xff]
    %v1522 = vld [vmem:[%s10 + $0x48] sm:$0xff]
    %v1523 = vld [vmem:[%s10 + $0x50] sm:$0xff]
    %v1524 = vld [vmem:[%s10 + $0x58] sm:$0xff]
    %v1525 = vld [vmem:[%s10 + $0x60] sm:$0xff]
    %v1526 = vld [vmem:[%s10 + $0x68] sm:$0xff]
    %v1527 = vld [vmem:[%s10 + $0x70] sm:$0xff]
    %v1528 = vld [vmem:[%s10 + $0x78] sm:$0xff]
    %v1529 = vld [vmem:[%s11] sm:$0x3]
    %v1531 = vlaneseq
    %v1532 = vshrl.u32 %v1531, 7
    %v1533 = vsub.s32 0, %v1532
    %v1534 = vrot.slane %v1529, %v1533
    %v1535 = vlaneseq
    %v1536 = vshrl.u32 %v1535, 7
    %v1537 = vsub.s32 1, %v1536
    %v1538 = vrot.slane %v1529, %v1537
    %v1557 = vunpack.c.l.b16 %v1513
    %v1558 = vunpack.c.h.b16 %v1513
    %v1559 = vunpack.c.l.b16 %v1514
    %v1560 = vunpack.c.h.b16 %v1514
    %v1561 = vunpack.c.l.b16 %v1515
    %v1562 = vunpack.c.h.b16 %v1515
    %v1563 = vunpack.c.l.b16 %v1516
    %v1564 = vunpack.c.h.b16 %v1516
    %v1565 = vunpack.c.l.b16 %v1517
    %v1566 = vunpack.c.h.b16 %v1517
    %v1567 = vunpack.c.l.b16 %v1518
    %v1568 = vunpack.c.h.b16 %v1518
    %v1569 = vunpack.c.l.b16 %v1519
    %v1570 = vunpack.c.h.b16 %v1519
    %v1571 = vunpack.c.l.b16 %v1520
    %v1572 = vunpack.c.h.b16 %v1520
    %v1573 = vunpack.c.l.b16 %v1521
    %v1574 = vunpack.c.h.b16 %v1521
    %v1575 = vunpack.c.l.b16 %v1522
    %v1576 = vunpack.c.h.b16 %v1522
    %v1577 = vunpack.c.l.b16 %v1523
    %v1578 = vunpack.c.h.b16 %v1523
    %v1579 = vunpack.c.l.b16 %v1524
    %v1580 = vunpack.c.h.b16 %v1524
    %v1581 = vunpack.c.l.b16 %v1525
    %v1582 = vunpack.c.h.b16 %v1525
    %v1583 = vunpack.c.l.b16 %v1526
    %v1584 = vunpack.c.h.b16 %v1526
    %v1585 = vunpack.c.l.b16 %v1527
    %v1586 = vunpack.c.h.b16 %v1527
    %v1587 = vunpack.c.l.b16 %v1528
    %v1588 = vunpack.c.h.b16 %v1528
    %v1589 = vpack.c.b16 %v1559, %v1557
    %v1590 = vpack.c.b16 %v1560, %v1558
    %v1591 = vpack.c.b16 %v1563, %v1561
    %v1592 = vpack.c.b16 %v1564, %v1562
    %v1593 = vpack.c.b16 %v1567, %v1565
    %v1594 = vpack.c.b16 %v1568, %v1566
    %v1595 = vpack.c.b16 %v1571, %v1569
    %v1596 = vpack.c.b16 %v1572, %v1570
    %v1597 = vpack.c.b16 %v1575, %v1573
    %v1598 = vpack.c.b16 %v1576, %v1574
    %v1599 = vpack.c.b16 %v1579, %v1577
    %v1600 = vpack.c.b16 %v1580, %v1578
    %v1601 = vpack.c.b16 %v1583, %v1581
    %v1602 = vpack.c.b16 %v1584, %v1582
    %v1603 = vpack.c.b16 %v1587, %v1585
    %v1604 = vpack.c.b16 %v1588, %v1586
    %1621 = vmatprep.subr.bf16.mxu0 %v1604
    %1622 = vmatpush1.bf16.msra.mxu0 %v1603
    %1623 = vmatprep.subr.bf16.mxu0 %v1602
    %1624 = vmatpush1.bf16.msra.mxu0 %v1601
    %1625 = vmatprep.subr.bf16.mxu0 %v1600
    %1626 = vmatpush1.bf16.msra.mxu0 %v1599
    %1627 = vmatprep.subr.bf16.mxu0 %v1598
    %1628 = vmatpush1.bf16.msra.mxu0 %v1597
    %1629 = vmatprep.subr.bf16.mxu0 %v1596
    %1630 = vmatpush1.bf16.msra.mxu0 %v1595
    %1631 = vmatprep.subr.bf16.mxu0 %v1594
    %1632 = vmatpush1.bf16.msra.mxu0 %v1593
    %1633 = vmatprep.subr.bf16.mxu0 %v1592
    %1634 = vmatpush1.bf16.msra.mxu0 %v1591
    %1635 = vmatprep.subr.bf16.mxu0 %v1590
    %1636 = vmatpush1.bf16.msra.mxu0 %v1589
    %1637 = vmatprep.subr.bf16.mxu0 0
    %1638 = vmatpush2.bf16.msra.mxu0 0
    %1639 = vmatprep.subr.bf16.mxu0 0
    %1640 = vmatpush2.bf16.msra.mxu0 0
    %1641 = vmatprep.subr.bf16.mxu0 0
    %1642 = vmatpush2.bf16.msra.mxu0 0
    %1643 = vmatprep.subr.bf16.mxu0 0
    %1644 = vmatpush2.bf16.msra.mxu0 0
    %1645 = vmatprep.subr.bf16.mxu0 0
    %1646 = vmatpush2.bf16.msra.mxu0 0
    %1647 = vmatprep.subr.bf16.mxu0 0
    %1648 = vmatpush2.bf16.msra.mxu0 0
    %1649 = vmatprep.subr.bf16.mxu0 0
    %1650 = vmatpush2.bf16.msra.mxu0 0
    %1651 = vmatprep.subr.bf16.mxu0 0
    %1652 = vmatpush2.bf16.msra.mxu0 0
    %1653 = vmatprep.mubr.bf16.mxu0 0
    %1654 = vmatmul.mubr.bf16.gmra.mxu0 %v1511
    %v1655 = vpop.f32.mrf.mxu0
    %v1656 = vadd.f32 %v1534, %v1655
    %v1657 = vpop.f32.mrf.mxu0
    %v1658 = vadd.f32 %v1538, %v1657
    %v1659 = vpop.f32.mrf.mxu0
    %v1660 = vadd.f32 %v1534, %v1659
    %v1661 = vpop.f32.mrf.mxu0
    %v1662 = vadd.f32 %v1538, %v1661
    %1663 = vmatprep.mubr.bf16.mxu0 0
    %1664 = vmatmul.mubr.bf16.gmra.mxu0 %v1512
    %v1665 = vpop.f32.mrf.mxu0
    %v1666 = vadd.f32 %v1534, %v1665
    %v1667 = vpop.f32.mrf.mxu0
    %v1668 = vadd.f32 %v1538, %v1667
    %v1669 = vpop.f32.mrf.mxu0
    %v1670 = vadd.f32 %v1534, %v1669
    %v1671 = vpop.f32.mrf.mxu0
    %v1672 = vadd.f32 %v1538, %v1671
    %1673 = vdwg.mxu0
    %v1674 = vmul.f32 %v1656, 0.5
    %v1675 = vmul.f32 %v1658, 0.5
    %v1676 = vmul.f32 %v1660, 0.5
    %v1677 = vmul.f32 %v1662, 0.5
    %v1678 = vmul.f32 %v1666, 0.5
    %v1679 = vmul.f32 %v1668, 0.5
    %v1680 = vmul.f32 %v1670, 0.5
    %v1681 = vmul.f32 %v1672, 0.5
    %v1682 = vmul.f32 %v1656, 0.044715
    %v1683 = vmul.f32 %v1658, 0.044715
    %v1684 = vmul.f32 %v1660, 0.044715
    %v1685 = vmul.f32 %v1662, 0.044715
    %v1686 = vmul.f32 %v1666, 0.044715
    %v1687 = vmul.f32 %v1668, 0.044715
    %v1688 = vmul.f32 %v1670, 0.044715
    %v1689 = vmul.f32 %v1672, 0.044715
    %v1690 = vmul.f32 %v1682, %v1656
    %v1691 = vmul.f32 %v1683, %v1658
    %v1692 = vmul.f32 %v1684, %v1660
    %v1693 = vmul.f32 %v1685, %v1662
    %v1694 = vmul.f32 %v1686, %v1666
    %v1695 = vmul.f32 %v1687, %v1668
    %v1696 = vmul.f32 %v1688, %v1670
    %v1697 = vmul.f32 %v1689, %v1672
    %v1698 = vmul.f32 %v1690, %v1656
    %v1699 = vmul.f32 %v1691, %v1658
    %v1700 = vmul.f32 %v1692, %v1660
    %v1701 = vmul.f32 %v1693, %v1662
    %v1702 = vmul.f32 %v1694, %v1666
    %v1703 = vmul.f32 %v1695, %v1668
    %v1704 = vmul.f32 %v1696, %v1670
    %v1705 = vmul.f32 %v1697, %v1672
    %v1706 = vadd.f32 %v1656, %v1698
    %v1707 = vadd.f32 %v1658, %v1699
    %v1708 = vadd.f32 %v1660, %v1700
    %v1709 = vadd.f32 %v1662, %v1701
    %v1710 = vadd.f32 %v1666, %v1702
    %v1711 = vadd.f32 %v1668, %v1703
    %v1712 = vadd.f32 %v1670, %v1704
    %v1713 = vadd.f32 %v1672, %v1705
    %v1714 = vmul.f32 %v1706, 0.7978846
    %v1715 = vmul.f32 %v1707, 0.7978846
    %v1716 = vmul.f32 %v1708, 0.7978846
    %v1717 = vmul.f32 %v1709, 0.7978846
    %v1718 = vmul.f32 %v1710, 0.7978846
    %v1719 = vmul.f32 %v1711, 0.7978846
    %v1720 = vmul.f32 %v1712, 0.7978846
    %v1721 = vmul.f32 %v1713, 0.7978846
    %v1722 = vtanh.pop %v1714
    %v1723 = vtanh.pop %v1715
    %v1724 = vtanh.pop %v1716
    %v1725 = vtanh.pop %v1717
    %v1726 = vtanh.pop %v1718
    %v1727 = vtanh.pop %v1719
    %v1728 = vtanh.pop %v1720
    %v1729 = vtanh.pop %v1721
    %v1730 = vadd.f32 %v1722, 1.0
    %v1731 = vadd.f32 %v1723, 1.0
    %v1732 = vadd.f32 %v1724, 1.0
    %v1733 = vadd.f32 %v1725, 1.0
    %v1734 = vadd.f32 %v1726, 1.0
    %v1735 = vadd.f32 %v1727, 1.0
    %v1736 = vadd.f32 %v1728, 1.0
    %v1737 = vadd.f32 %v1729, 1.0
    %v1738 = vmul.f32 %v1674, %v1730
    %v1739 = vmul.f32 %v1675, %v1731
    %v1740 = vmul.f32 %v1676, %v1732
    %v1741 = vmul.f32 %v1677, %v1733
    %v1742 = vmul.f32 %v1678, %v1734
    %v1743 = vmul.f32 %v1679, %v1735
    %v1744 = vmul.f32 %v1680, %v1736
    %v1745 = vmul.f32 %v1681, %v1737
    %v1746 = vpack.c.bf16 %v1740, %v1738
    %v1747 = vpack.c.bf16 %v1741, %v1739
    %v1748 = vpack.c.bf16 %v1744, %v1742
    %v1749 = vpack.c.bf16 %v1745, %v1743
    %v1750 = vld [vmem:[#allocation10] sm:$0xf]
    %v1751 = vld [vmem:[#allocation10 + $0x4] sm:$0xf]
    %v1752 = vld [vmem:[#allocation10 + $0x8] sm:$0xf]
    %v1753 = vld [vmem:[#allocation10 + $0xc] sm:$0xf]
    %v1754 = vld [vmem:[#allocation10 + $0x10] sm:$0xf]
    %v1755 = vld [vmem:[#allocation10 + $0x14] sm:$0xf]
    %v1756 = vld [vmem:[#allocation10 + $0x18] sm:$0xf]
    %v1757 = vld [vmem:[#allocation10 + $0x1c] sm:$0xf]
    %v1758 = vld [vmem:[#allocation10 + $0x20] sm:$0xf]
    %v1759 = vld [vmem:[#allocation10 + $0x24] sm:$0xf]
    %v1760 = vld [vmem:[#allocation10 + $0x28] sm:$0xf]
    %v1761 = vld [vmem:[#allocation10 + $0x2c] sm:$0xf]
    %v1762 = vld [vmem:[#allocation10 + $0x30] sm:$0xf]
    %v1763 = vld [vmem:[#allocation10 + $0x34] sm:$0xf]
    %v1764 = vld [vmem:[#allocation10 + $0x38] sm:$0xf]
    %v1765 = vld [vmem:[#allocation10 + $0x3c] sm:$0xf]
    %v1766 = vld [vmem:[#allocation10 + $0x40] sm:$0xf]
    %v1767 = vld [vmem:[#allocation10 + $0x44] sm:$0xf]
    %v1768 = vld [vmem:[#allocation10 + $0x48] sm:$0xf]
    %v1769 = vld [vmem:[#allocation10 + $0x4c] sm:$0xf]
    %v1770 = vld [vmem:[#allocation10 + $0x50] sm:$0xf]
    %v1771 = vld [vmem:[#allocation10 + $0x54] sm:$0xf]
    %v1772 = vld [vmem:[#allocation10 + $0x58] sm:$0xf]
    %v1773 = vld [vmem:[#allocation10 + $0x5c] sm:$0xf]
    %v1774 = vld [vmem:[#allocation10 + $0x60] sm:$0xf]
    %v1775 = vld [vmem:[#allocation10 + $0x64] sm:$0xf]
    %v1776 = vld [vmem:[#allocation10 + $0x68] sm:$0xf]
    %v1777 = vld [vmem:[#allocation10 + $0x6c] sm:$0xf]
    %v1778 = vld [vmem:[#allocation10 + $0x70] sm:$0xf]
    %v1779 = vld [vmem:[#allocation10 + $0x74] sm:$0xf]
    %v1780 = vld [vmem:[#allocation10 + $0x78] sm:$0xf]
    %v1781 = vld [vmem:[#allocation10 + $0x7c] sm:$0xf]
    %v1782 = vld [vmem:[%s13] sm:$0x1]
    %v1784 = vlaneseq
    %v1785 = vshrl.u32 %v1784, 7
    %v1786 = vsub.s32 0, %v1785
    %v1787 = vrot.slane %v1782, %v1786
    %v1821 = vunpack.c.l.b16 %v1750
    %v1822 = vunpack.c.l.b16 %v1751
    %v1823 = vunpack.c.l.b16 %v1752
    %v1824 = vunpack.c.l.b16 %v1753
    %v1825 = vunpack.c.l.b16 %v1754
    %v1826 = vunpack.c.l.b16 %v1755
    %v1827 = vunpack.c.l.b16 %v1756
    %v1828 = vunpack.c.l.b16 %v1757
    %v1829 = vunpack.c.l.b16 %v1758
    %v1830 = vunpack.c.l.b16 %v1759
    %v1831 = vunpack.c.l.b16 %v1760
    %v1832 = vunpack.c.l.b16 %v1761
    %v1833 = vunpack.c.l.b16 %v1762
    %v1834 = vunpack.c.l.b16 %v1763
    %v1835 = vunpack.c.l.b16 %v1764
    %v1836 = vunpack.c.l.b16 %v1765
    %v1837 = vunpack.c.l.b16 %v1766
    %v1838 = vunpack.c.l.b16 %v1767
    %v1839 = vunpack.c.l.b16 %v1768
    %v1840 = vunpack.c.l.b16 %v1769
    %v1841 = vunpack.c.l.b16 %v1770
    %v1842 = vunpack.c.l.b16 %v1771
    %v1843 = vunpack.c.l.b16 %v1772
    %v1844 = vunpack.c.l.b16 %v1773
    %v1845 = vunpack.c.l.b16 %v1774
    %v1846 = vunpack.c.l.b16 %v1775
    %v1847 = vunpack.c.l.b16 %v1776
    %v1848 = vunpack.c.l.b16 %v1777
    %v1849 = vunpack.c.l.b16 %v1778
    %v1850 = vunpack.c.l.b16 %v1779
    %v1851 = vunpack.c.l.b16 %v1780
    %v1852 = vunpack.c.l.b16 %v1781
    %v1853 = vpack.c.b16 %v1822, %v1821
    %v1854 = vpack.c.b16 %v1824, %v1823
    %v1855 = vpack.c.b16 %v1826, %v1825
    %v1856 = vpack.c.b16 %v1828, %v1827
    %v1857 = vpack.c.b16 %v1830, %v1829
    %v1858 = vpack.c.b16 %v1832, %v1831
    %v1859 = vpack.c.b16 %v1834, %v1833
    %v1860 = vpack.c.b16 %v1836, %v1835
    %v1861 = vpack.c.b16 %v1838, %v1837
    %v1862 = vpack.c.b16 %v1840, %v1839
    %v1863 = vpack.c.b16 %v1842, %v1841
    %v1864 = vpack.c.b16 %v1844, %v1843
    %v1865 = vpack.c.b16 %v1846, %v1845
    %v1866 = vpack.c.b16 %v1848, %v1847
    %v1867 = vpack.c.b16 %v1850, %v1849
    %v1868 = vpack.c.b16 %v1852, %v1851
    %1885 = vmatprep.subr.bf16.mxu0 0
    %1886 = vmatpush1.bf16.msra.mxu0 %v1860
    %1887 = vmatprep.subr.bf16.mxu0 0
    %1888 = vmatpush1.bf16.msra.mxu0 %v1859
    %1889 = vmatprep.subr.bf16.mxu0 0
    %1890 = vmatpush1.bf16.msra.mxu0 %v1858
    %1891 = vmatprep.subr.bf16.mxu0 0
    %1892 = vmatpush1.bf16.msra.mxu0 %v1857
    %1893 = vmatprep.subr.bf16.mxu0 0
    %1894 = vmatpush1.bf16.msra.mxu0 %v1856
    %1895 = vmatprep.subr.bf16.mxu0 0
    %1896 = vmatpush1.bf16.msra.mxu0 %v1855
    %1897 = vmatprep.subr.bf16.mxu0 0
    %1898 = vmatpush1.bf16.msra.mxu0 %v1854
    %1899 = vmatprep.subr.bf16.mxu0 0
    %1900 = vmatpush1.bf16.msra.mxu0 %v1853
    %1901 = vmatprep.subr.bf16.mxu0 0
    %1902 = vmatpush2.bf16.msra.mxu0 %v1868
    %1903 = vmatprep.subr.bf16.mxu0 0
    %1904 = vmatpush2.bf16.msra.mxu0 %v1867
    %1905 = vmatprep.subr.bf16.mxu0 0
    %1906 = vmatpush2.bf16.msra.mxu0 %v1866
    %1907 = vmatprep.subr.bf16.mxu0 0
    %1908 = vmatpush2.bf16.msra.mxu0 %v1865
    %1909 = vmatprep.subr.bf16.mxu0 0
    %1910 = vmatpush2.bf16.msra.mxu0 %v1864
    %1911 = vmatprep.subr.bf16.mxu0 0
    %1912 = vmatpush2.bf16.msra.mxu0 %v1863
    %1913 = vmatprep.subr.bf16.mxu0 0
    %1914 = vmatpush2.bf16.msra.mxu0 %v1862
    %1915 = vmatprep.subr.bf16.mxu0 0
    %1916 = vmatpush2.bf16.msra.mxu0 %v1861
    %1917 = vmatprep.mubr.bf16.mxu0 %v1747
    %1918 = vmatmul.mubr.bf16.gmra.mxu0 %v1746
    %v1919 = vpop.f32.mrf.mxu0
    %v1920 = vadd.f32 %v1787, %v1919
    %v1921 = vpop.f32.mrf.mxu0
    %v1922 = vpop.f32.mrf.mxu0
    %v1923 = vadd.f32 %v1787, %v1922
    %v1924 = vpop.f32.mrf.mxu0
    %1925 = vmatprep.mubr.bf16.mxu0 %v1749
    %1926 = vmatmul.mubr.bf16.gmra.mxu0 %v1748
    %v1927 = vpop.f32.mrf.mxu0
    %v1928 = vadd.f32 %v1787, %v1927
    %v1929 = vpop.f32.mrf.mxu0
    %v1930 = vpop.f32.mrf.mxu0
    %v1931 = vadd.f32 %v1787, %v1930
    %v1932 = vpop.f32.mrf.mxu0
    %1933 = vdwg.mxu0
    %v1934 = vadd.f32 %v1507, %v1920
    %v1935 = vadd.f32 %v1508, %v1923
    %v1936 = vadd.f32 %v1509, %v1928
    %v1937 = vadd.f32 %v1510, %v1931
    %v1938 = vld [vmem:[#allocation12] sm:$0x1]
    %v1939 = vld [vmem:[#allocation13] sm:$0x1]
    %1940 = vadd.xlane.f32.xlu0 %v1934
    %v1941 = vpop.xlane.xlu0 %1940
    %1942 = vadd.xlane.f32.xlu0 %v1935
    %v1943 = vpop.xlane.xlu0 %1942
    %1944 = vadd.xlane.f32.xlu0 %v1936
    %v1945 = vpop.xlane.xlu0 %1944
    %1946 = vadd.xlane.f32.xlu0 %v1937
    %v1947 = vpop.xlane.xlu0 %1946
    %v1948 = vmul.f32 %v1941, %v216
    %v1949 = vmul.f32 %v1943, %v216
    %v1950 = vmul.f32 %v1945, %v216
    %v1951 = vmul.f32 %v1947, %v216
    %v1952 = vsub.f32 %v1934, %v1948
    %v1953 = vsub.f32 %v1935, %v1949
    %v1954 = vsub.f32 %v1936, %v1950
    %v1955 = vsub.f32 %v1937, %v1951
    %v1956 = vmul.f32 %v1952, %v1952
    %v1957 = vmul.f32 %v1953, %v1953
    %v1958 = vmul.f32 %v1954, %v1954
    %v1959 = vmul.f32 %v1955, %v1955
    %1960 = vadd.xlane.f32.xlu0 %v1956
    %v1961 = vpop.xlane.xlu0 %1960
    %1962 = vadd.xlane.f32.xlu0 %v1957
    %v1963 = vpop.xlane.xlu0 %1962
    %1964 = vadd.xlane.f32.xlu0 %v1958
    %v1965 = vpop.xlane.xlu0 %1964
    %1966 = vadd.xlane.f32.xlu0 %v1959
    %v1967 = vpop.xlane.xlu0 %1966
    %v1968 = vmul.f32 %v1961, %v216
    %v1969 = vmul.f32 %v1963, %v216
    %v1970 = vmul.f32 %v1965, %v216
    %v1971 = vmul.f32 %v1967, %v216
    %v1972 = vadd.f32 %v1968, 1e-12
    %v1973 = vadd.f32 %v1969, 1e-12
    %v1974 = vadd.f32 %v1970, 1e-12
    %v1975 = vadd.f32 %v1971, 1e-12
    %v1976 = vrsqrt.pop %v1972
    %v1977 = vrsqrt.pop %v1973
    %v1978 = vrsqrt.pop %v1974
    %v1979 = vrsqrt.pop %v1975
    %v1980 = vmul.f32 %v1952, %v1976
    %v1981 = vmul.f32 %v1953, %v1977
    %v1982 = vmul.f32 %v1954, %v1978
    %v1983 = vmul.f32 %v1955, %v1979
    %v1985 = vlaneseq
    %v1986 = vshrl.u32 %v1985, 7
    %v1987 = vsub.s32 0, %v1986
    %v1988 = vrot.slane %v1938, %v1987
    %v1990 = vmul.f32 %v1980, %v1988
    %v1991 = vmul.f32 %v1981, %v1988
    %v1992 = vmul.f32 %v1982, %v1988
    %v1993 = vmul.f32 %v1983, %v1988
    %v1995 = vlaneseq
    %v1996 = vshrl.u32 %v1995, 7
    %v1997 = vsub.s32 0, %v1996
    %v1998 = vrot.slane %v1939, %v1997
    %v2000 = vadd.f32 %v1990, %v1998
    %v2001 = vadd.f32 %v1991, %v1998
    %v2002 = vadd.f32 %v1992, %v1998
    %v2003 = vadd.f32 %v1993, %v1998
    %v2004 = vpack.c.bf16 %v2001, %v2000
    %v2005 = vpack.c.bf16 %v2003, %v2002
    %s2006 = scalar_lea.vmem %s4, 192
    %v2007 = vld [vmem:[%s2006] sm:$0xff]
    %v2008 = vld [vmem:[%s2006 + $0x8] sm:$0xf]
    %v2009 = vld [vmem:[%s2006 + $0xc] sm:$0xff]
    %v2010 = vld [vmem:[%s2006 + $0x14] sm:$0xf]
    %v2011 = vld [vmem:[%s2006 + $0x18] sm:$0xff]
    %v2012 = vld [vmem:[%s2006 + $0x20] sm:$0xf]
    %v2013 = vld [vmem:[%s2006 + $0x24] sm:$0xff]
    %v2014 = vld [vmem:[%s2006 + $0x2c] sm:$0xf]
    %v2015 = vld [vmem:[%s2006 + $0x30] sm:$0xff]
    %v2016 = vld [vmem:[%s2006 + $0x38] sm:$0xf]
    %v2017 = vld [vmem:[%s2006 + $0x3c] sm:$0xff]
    %v2018 = vld [vmem:[%s2006 + $0x44] sm:$0xf]
    %v2019 = vld [vmem:[%s2006 + $0x48] sm:$0xff]
    %v2020 = vld [vmem:[%s2006 + $0x50] sm:$0xf]
    %v2021 = vld [vmem:[%s2006 + $0x54] sm:$0xff]
    %v2022 = vld [vmem:[%s2006 + $0x5c] sm:$0xf]
    %v2023 = vld [vmem:[%s2006 + $0x60] sm:$0xff]
    %v2024 = vld [vmem:[%s2006 + $0x68] sm:$0xf]
    %v2025 = vld [vmem:[%s2006 + $0x6c] sm:$0xff]
    %v2026 = vld [vmem:[%s2006 + $0x74] sm:$0xf]
    %v2027 = vld [vmem:[%s2006 + $0x78] sm:$0xff]
    %v2028 = vld [vmem:[%s2006 + $0x80] sm:$0xf]
    %v2029 = vld [vmem:[%s2006 + $0x84] sm:$0xff]
    %v2030 = vld [vmem:[%s2006 + $0x8c] sm:$0xf]
    %v2031 = vld [vmem:[%s2006 + $0x90] sm:$0xff]
    %v2032 = vld [vmem:[%s2006 + $0x98] sm:$0xf]
    %v2033 = vld [vmem:[%s2006 + $0x9c] sm:$0xff]
    %v2034 = vld [vmem:[%s2006 + $0xa4] sm:$0xf]
    %v2035 = vld [vmem:[%s2006 + $0xa8] sm:$0xff]
    %v2036 = vld [vmem:[%s2006 + $0xb0] sm:$0xf]
    %v2037 = vld [vmem:[%s2006 + $0xb4] sm:$0xff]
    %v2038 = vld [vmem:[%s2006 + $0xbc] sm:$0xf]
    %s2039 = scalar_lea.vmem [#allocation2], 3
    %v2040 = vld [vmem:[%s2039] sm:$0x7]
    %v2042 = vlaneseq
    %v2043 = vshrl.u32 %v2042, 7
    %v2044 = vsub.s32 0, %v2043
    %v2045 = vrot.slane %v2040, %v2044
    %v2046 = vlaneseq
    %v2047 = vshrl.u32 %v2046, 7
    %v2048 = vsub.s32 1, %v2047
    %v2049 = vrot.slane %v2040, %v2048
    %v2050 = vlaneseq
    %v2051 = vshrl.u32 %v2050, 7
    %v2052 = vsub.s32 2, %v2051
    %v2053 = vrot.slane %v2040, %v2052
    %v2089 = vunpack.c.l.b16 %v2007
    %v2090 = vunpack.c.h.b16 %v2007
    %v2091 = vunpack.c.l.b16 %v2008
    %v2092 = vunpack.c.l.b16 %v2009
    %v2093 = vunpack.c.h.b16 %v2009
    %v2094 = vunpack.c.l.b16 %v2010
    %v2095 = vunpack.c.l.b16 %v2011
    %v2096 = vunpack.c.h.b16 %v2011
    %v2097 = vunpack.c.l.b16 %v2012
    %v2098 = vunpack.c.l.b16 %v2013
    %v2099 = vunpack.c.h.b16 %v2013
    %v2100 = vunpack.c.l.b16 %v2014
    %v2101 = vunpack.c.l.b16 %v2015
    %v2102 = vunpack.c.h.b16 %v2015
    %v2103 = vunpack.c.l.b16 %v2016
    %v2104 = vunpack.c.l.b16 %v2017
    %v2105 = vunpack.c.h.b16 %v2017
    %v2106 = vunpack.c.l.b16 %v2018
    %v2107 = vunpack.c.l.b16 %v2019
    %v2108 = vunpack.c.h.b16 %v2019
    %v2109 = vunpack.c.l.b16 %v2020
    %v2110 = vunpack.c.l.b16 %v2021
    %v2111 = vunpack.c.h.b16 %v2021
    %v2112 = vunpack.c.l.b16 %v2022
    %v2113 = vunpack.c.l.b16 %v2023
    %v2114 = vunpack.c.h.b16 %v2023
    %v2115 = vunpack.c.l.b16 %v2024
    %v2116 = vunpack.c.l.b16 %v2025
    %v2117 = vunpack.c.h.b16 %v2025
    %v2118 = vunpack.c.l.b16 %v2026
    %v2119 = vunpack.c.l.b16 %v2027
    %v2120 = vunpack.c.h.b16 %v2027
    %v2121 = vunpack.c.l.b16 %v2028
    %v2122 = vunpack.c.l.b16 %v2029
    %v2123 = vunpack.c.h.b16 %v2029
    %v2124 = vunpack.c.l.b16 %v2030
    %v2125 = vunpack.c.l.b16 %v2031
    %v2126 = vunpack.c.h.b16 %v2031
    %v2127 = vunpack.c.l.b16 %v2032
    %v2128 = vunpack.c.l.b16 %v2033
    %v2129 = vunpack.c.h.b16 %v2033
    %v2130 = vunpack.c.l.b16 %v2034
    %v2131 = vunpack.c.l.b16 %v2035
    %v2132 = vunpack.c.h.b16 %v2035
    %v2133 = vunpack.c.l.b16 %v2036
    %v2134 = vunpack.c.l.b16 %v2037
    %v2135 = vunpack.c.h.b16 %v2037
    %v2136 = vunpack.c.l.b16 %v2038
    %v2137 = vpack.c.b16 %v2092, %v2089
    %v2138 = vpack.c.b16 %v2093, %v2090
    %v2139 = vpack.c.b16 %v2094, %v2091
    %v2140 = vpack.c.b16 %v2098, %v2095
    %v2141 = vpack.c.b16 %v2099, %v2096
    %v2142 = vpack.c.b16 %v2100, %v2097
    %v2143 = vpack.c.b16 %v2104, %v2101
    %v2144 = vpack.c.b16 %v2105, %v2102
    %v2145 = vpack.c.b16 %v2106, %v2103
    %v2146 = vpack.c.b16 %v2110, %v2107
    %v2147 = vpack.c.b16 %v2111, %v2108
    %v2148 = vpack.c.b16 %v2112, %v2109
    %v2149 = vpack.c.b16 %v2116, %v2113
    %v2150 = vpack.c.b16 %v2117, %v2114
    %v2151 = vpack.c.b16 %v2118, %v2115
    %v2152 = vpack.c.b16 %v2122, %v2119
    %v2153 = vpack.c.b16 %v2123, %v2120
    %v2154 = vpack.c.b16 %v2124, %v2121
    %v2155 = vpack.c.b16 %v2128, %v2125
    %v2156 = vpack.c.b16 %v2129, %v2126
    %v2157 = vpack.c.b16 %v2130, %v2127
    %v2158 = vpack.c.b16 %v2134, %v2131
    %v2159 = vpack.c.b16 %v2135, %v2132
    %v2160 = vpack.c.b16 %v2136, %v2133
    %2185 = vmatprep.subr.bf16.mxu0 %v2159
    %2186 = vmatpush1.bf16.msra.mxu0 %v2158
    %2187 = vmatprep.subr.bf16.mxu0 %v2156
    %2188 = vmatpush1.bf16.msra.mxu0 %v2155
    %2189 = vmatprep.subr.bf16.mxu0 %v2153
    %2190 = vmatpush1.bf16.msra.mxu0 %v2152
    %2191 = vmatprep.subr.bf16.mxu0 %v2150
    %2192 = vmatpush1.bf16.msra.mxu0 %v2149
    %2193 = vmatprep.subr.bf16.mxu0 %v2147
    %2194 = vmatpush1.bf16.msra.mxu0 %v2146
    %2195 = vmatprep.subr.bf16.mxu0 %v2144
    %2196 = vmatpush1.bf16.msra.mxu0 %v2143
    %2197 = vmatprep.subr.bf16.mxu0 %v2141
    %2198 = vmatpush1.bf16.msra.mxu0 %v2140
    %2199 = vmatprep.subr.bf16.mxu0 %v2138
    %2200 = vmatpush1.bf16.msra.mxu0 %v2137
    %2201 = vmatprep.subr.bf16.mxu0 0
    %2202 = vmatpush2.bf16.msra.mxu0 0
    %2203 = vmatprep.subr.bf16.mxu0 0
    %2204 = vmatpush2.bf16.msra.mxu0 0
    %2205 = vmatprep.subr.bf16.mxu0 0
    %2206 = vmatpush2.bf16.msra.mxu0 0
    %2207 = vmatprep.subr.bf16.mxu0 0
    %2208 = vmatpush2.bf16.msra.mxu0 0
    %2209 = vmatprep.subr.bf16.mxu0 0
    %2210 = vmatpush2.bf16.msra.mxu0 0
    %2211 = vmatprep.subr.bf16.mxu0 0
    %2212 = vmatpush2.bf16.msra.mxu0 0
    %2213 = vmatprep.subr.bf16.mxu0 0
    %2214 = vmatpush2.bf16.msra.mxu0 0
    %2215 = vmatprep.subr.bf16.mxu0 0
    %2216 = vmatpush2.bf16.msra.mxu0 0
    %2217 = vmatprep.mubr.bf16.mxu0 0
    %2218 = vmatmul.mubr.bf16.gmra.mxu0 %v2004
    %v2219 = vpop.f32.mrf.mxu0
    %v2220 = vadd.f32 %v2045, %v2219
    %v2221 = vpop.f32.mrf.mxu0
    %v2222 = vadd.f32 %v2049, %v2221
    %v2223 = vpop.f32.mrf.mxu0
    %v2224 = vadd.f32 %v2045, %v2223
    %v2225 = vpop.f32.mrf.mxu0
    %v2226 = vadd.f32 %v2049, %v2225
    %2227 = vmatprep.mubr.bf16.mxu0 0
    %2228 = vmatmul.mubr.bf16.gmra.mxu0 %v2005
    %v2229 = vpop.f32.mrf.mxu0
    %v2230 = vadd.f32 %v2045, %v2229
    %v2231 = vpop.f32.mrf.mxu0
    %v2232 = vadd.f32 %v2049, %v2231
    %v2233 = vpop.f32.mrf.mxu0
    %v2234 = vadd.f32 %v2045, %v2233
    %v2235 = vpop.f32.mrf.mxu0
    %v2236 = vadd.f32 %v2049, %v2235
    %2237 = vdwg.mxu0
    %2238 = vmatprep.subr.bf16.mxu0 0
    %2239 = vmatpush1.bf16.msra.mxu0 %v2160
    %2240 = vmatprep.subr.bf16.mxu0 0
    %2241 = vmatpush1.bf16.msra.mxu0 %v2157
    %2242 = vmatprep.subr.bf16.mxu0 0
    %2243 = vmatpush1.bf16.msra.mxu0 %v2154
    %2244 = vmatprep.subr.bf16.mxu0 0
    %2245 = vmatpush1.bf16.msra.mxu0 %v2151
    %2246 = vmatprep.subr.bf16.mxu0 0
    %2247 = vmatpush1.bf16.msra.mxu0 %v2148
    %2248 = vmatprep.subr.bf16.mxu0 0
    %2249 = vmatpush1.bf16.msra.mxu0 %v2145
    %2250 = vmatprep.subr.bf16.mxu0 0
    %2251 = vmatpush1.bf16.msra.mxu0 %v2142
    %2252 = vmatprep.subr.bf16.mxu0 0
    %2253 = vmatpush1.bf16.msra.mxu0 %v2139
    %2254 = vmatprep.subr.bf16.mxu0 0
    %2255 = vmatpush2.bf16.msra.mxu0 0
    %2256 = vmatprep.subr.bf16.mxu0 0
    %2257 = vmatpush2.bf16.msra.mxu0 0
    %2258 = vmatprep.subr.bf16.mxu0 0
    %2259 = vmatpush2.bf16.msra.mxu0 0
    %2260 = vmatprep.subr.bf16.mxu0 0
    %2261 = vmatpush2.bf16.msra.mxu0 0
    %2262 = vmatprep.subr.bf16.mxu0 0
    %2263 = vmatpush2.bf16.msra.mxu0 0
    %2264 = vmatprep.subr.bf16.mxu0 0
    %2265 = vmatpush2.bf16.msra.mxu0 0
    %2266 = vmatprep.subr.bf16.mxu0 0
    %2267 = vmatpush2.bf16.msra.mxu0 0
    %2268 = vmatprep.subr.bf16.mxu0 0
    %2269 = vmatpush2.bf16.msra.mxu0 0
    %2270 = vmatprep.mubr.bf16.mxu0 0
    %2271 = vmatmul.mubr.bf16.gmra.mxu0 %v2004
    %v2272 = vpop.f32.mrf.mxu0
    %v2273 = vadd.f32 %v2053, %v2272
    %v2274 = vpop.f32.mrf.mxu0
    %v2275 = vpop.f32.mrf.mxu0
    %v2276 = vadd.f32 %v2053, %v2275
    %v2277 = vpop.f32.mrf.mxu0
    %2278 = vmatprep.mubr.bf16.mxu0 0
    %2279 = vmatmul.mubr.bf16.gmra.mxu0 %v2005
    %v2280 = vpop.f32.mrf.mxu0
    %v2281 = vadd.f32 %v2053, %v2280
    %v2282 = vpop.f32.mrf.mxu0
    %v2283 = vpop.f32.mrf.mxu0
    %v2284 = vadd.f32 %v2053, %v2283
    %v2285 = vpop.f32.mrf.mxu0
    %2286 = vdwg.mxu0
    %v2287 = vpack.c.bf16 %v2224, %v2220
    %v2288 = vpack.c.bf16 %v2226, %v2222
    %v2289 = vpack.c.bf16 %v2276, %v2273
    %v2290 = vpack.c.bf16 %v2234, %v2230
    %v2291 = vpack.c.bf16 %v2236, %v2232
    %v2292 = vpack.c.bf16 %v2284, %v2281
    %v2294 = vsel %vm560, %v2287, 0
    %v2297 = vsel %vm560, %v2290, 0
    %v2300 = vsel %vm560, %v2288, 0
    %v2303 = vsel %vm560, %v2291, 0
    %2305 = vmatprep.subr.bf16.mxu0 0
    %2306 = vmatpush1.bf16.xpose.msra.mxu0 0
    %2307 = vmatprep.subr.bf16.mxu0 0
    %2308 = vmatpush1.bf16.xpose.msra.mxu0 0
    %2309 = vmatprep.subr.bf16.mxu0 0
    %2310 = vmatpush1.bf16.xpose.msra.mxu0 0
    %2311 = vmatprep.subr.bf16.mxu0 0
    %2312 = vmatpush1.bf16.xpose.msra.mxu0 0
    %2313 = vmatprep.subr.bf16.mxu0 0
    %2314 = vmatpush1.bf16.xpose.msra.mxu0 0
    %2315 = vmatprep.subr.bf16.mxu0 0
    %2316 = vmatpush1.bf16.xpose.msra.mxu0 0
    %2317 = vmatprep.subr.bf16.mxu0 0
    %2318 = vmatpush1.bf16.xpose.msra.mxu0 %v2303
    %2319 = vmatprep.subr.bf16.mxu0 0
    %2320 = vmatpush1.bf16.xpose.msra.mxu0 %v2300
    %2321 = vmatprep.subr.bf16.mxu0 0
    %2322 = vmatpush2.bf16.xpose.msra.mxu0 0
    %2323 = vmatprep.subr.bf16.mxu0 0
    %2324 = vmatpush2.bf16.xpose.msra.mxu0 0
    %2325 = vmatprep.subr.bf16.mxu0 0
    %2326 = vmatpush2.bf16.xpose.msra.mxu0 0
    %2327 = vmatprep.subr.bf16.mxu0 0
    %2328 = vmatpush2.bf16.xpose.msra.mxu0 0
    %2329 = vmatprep.subr.bf16.mxu0 0
    %2330 = vmatpush2.bf16.xpose.msra.mxu0 0
    %2331 = vmatprep.subr.bf16.mxu0 0
    %2332 = vmatpush2.bf16.xpose.msra.mxu0 0
    %2333 = vmatprep.subr.bf16.mxu0 0
    %2334 = vmatpush2.bf16.xpose.msra.mxu0 0
    %2335 = vmatprep.subr.bf16.mxu0 0
    %2336 = vmatpush2.bf16.xpose.msra.mxu0 0
    %2337 = vmatprep.mubr.bf16.mxu0 0
    %2338 = vmatmul.mubr.bf16.gmra.mxu0 %v2294
    %v2339 = vpop.f32.mrf.mxu0
    %v2340 = vadd.f32 %v198, %v2339
    %v2341 = vpop.f32.mrf.mxu0
    %v2342 = vpop.f32.mrf.mxu0
    %v2343 = vadd.f32 %v199, %v2342
    %v2344 = vpop.f32.mrf.mxu0
    %2345 = vmatprep.mubr.bf16.mxu0 0
    %2346 = vmatmul.mubr.bf16.gmra.mxu0 %v2297
    %v2347 = vpop.f32.mrf.mxu0
    %v2348 = vadd.f32 %v200, %v2347
    %v2349 = vpop.f32.mrf.mxu0
    %v2350 = vpop.f32.mrf.mxu0
    %v2351 = vadd.f32 %v201, %v2350
    %v2352 = vpop.f32.mrf.mxu0
    %2353 = vdwg.mxu0
    %v2354 = vsel %vm560, %v2340, -inf
    %2355 = vmax.xlane.f32.xlu0 %v2354
    %v2356 = vpop.xlane.xlu0 %2355
    %v2357 = vsel %vm560, %v2343, -inf
    %2358 = vmax.xlane.f32.xlu0 %v2357
    %v2359 = vpop.xlane.xlu0 %2358
    %v2360 = vsel %vm560, %v2348, -inf
    %2361 = vmax.xlane.f32.xlu0 %v2360
    %v2362 = vpop.xlane.xlu0 %2361
    %v2363 = vsel %vm560, %v2351, -inf
    %2364 = vmax.xlane.f32.xlu0 %v2363
    %v2365 = vpop.xlane.xlu0 %2364
    %v2366 = vsub.f32 %v2340, %v2356
    %v2367 = vsub.f32 %v2343, %v2359
    %v2368 = vsub.f32 %v2348, %v2362
    %v2369 = vsub.f32 %v2351, %v2365
    %v2370 = vmul.f32 %v2366, 1.442695
    %v2371 = vpow.pop %v2370
    %v2372 = vmul.f32 %v2367, 1.442695
    %v2373 = vpow.pop %v2372
    %v2374 = vmul.f32 %v2368, 1.442695
    %v2375 = vpow.pop %v2374
    %v2376 = vmul.f32 %v2369, 1.442695
    %v2377 = vpow.pop %v2376
    %v2378 = vsel %vm560, %v2371, 0.0
    %2379 = vadd.xlane.f32.xlu0 %v2378
    %v2380 = vpop.xlane.xlu0 %2379
    %v2381 = vsel %vm560, %v2373, 0.0
    %2382 = vadd.xlane.f32.xlu0 %v2381
    %v2383 = vpop.xlane.xlu0 %2382
    %v2384 = vsel %vm560, %v2375, 0.0
    %2385 = vadd.xlane.f32.xlu0 %v2384
    %v2386 = vpop.xlane.xlu0 %2385
    %v2387 = vsel %vm560, %v2377, 0.0
    %2388 = vadd.xlane.f32.xlu0 %v2387
    %v2389 = vpop.xlane.xlu0 %2388
    %v2390 = vrcp.pop %v2380
    %v2391 = vrcp.pop %v2383
    %v2392 = vrcp.pop %v2386
    %v2393 = vrcp.pop %v2389
    %v2394 = vmul.f32 %v2371, %v2390
    %v2395 = vmul.f32 %v2373, %v2391
    %v2396 = vmul.f32 %v2375, %v2392
    %v2397 = vmul.f32 %v2377, %v2393
    %v2398 = vpack.c.bf16 %v2395, %v2394
    %v2399 = vpack.c.bf16 %v2397, %v2396
    %v2401 = vsel %vm560, %v2398, 0
    %v2404 = vsel %vm560, %v2399, 0
    %2406 = vmatprep.subr.bf16.mxu0 0
    %2407 = vmatpush1.bf16.msra.mxu0 0
    %2408 = vmatprep.subr.bf16.mxu0 0
    %2409 = vmatpush1.bf16.msra.mxu0 0
    %2410 = vmatprep.subr.bf16.mxu0 0
    %2411 = vmatpush1.bf16.msra.mxu0 0
    %2412 = vmatprep.subr.bf16.mxu0 0
    %2413 = vmatpush1.bf16.msra.mxu0 0
    %2414 = vmatprep.subr.bf16.mxu0 0
    %2415 = vmatpush1.bf16.msra.mxu0 0
    %2416 = vmatprep.subr.bf16.mxu0 0
    %2417 = vmatpush1.bf16.msra.mxu0 0
    %2418 = vmatprep.subr.bf16.mxu0 0
    %2419 = vmatpush1.bf16.msra.mxu0 %v2292
    %2420 = vmatprep.subr.bf16.mxu0 0
    %2421 = vmatpush1.bf16.msra.mxu0 %v2289
    %2422 = vmatprep.subr.bf16.mxu0 0
    %2423 = vmatpush2.bf16.msra.mxu0 0
    %2424 = vmatprep.subr.bf16.mxu0 0
    %2425 = vmatpush2.bf16.msra.mxu0 0
    %2426 = vmatprep.subr.bf16.mxu0 0
    %2427 = vmatpush2.bf16.msra.mxu0 0
    %2428 = vmatprep.subr.bf16.mxu0 0
    %2429 = vmatpush2.bf16.msra.mxu0 0
    %2430 = vmatprep.subr.bf16.mxu0 0
    %2431 = vmatpush2.bf16.msra.mxu0 0
    %2432 = vmatprep.subr.bf16.mxu0 0
    %2433 = vmatpush2.bf16.msra.mxu0 0
    %2434 = vmatprep.subr.bf16.mxu0 0
    %2435 = vmatpush2.bf16.msra.mxu0 0
    %2436 = vmatprep.subr.bf16.mxu0 0
    %2437 = vmatpush2.bf16.msra.mxu0 0
    %2438 = vmatprep.mubr.bf16.mxu0 0
    %2439 = vmatmul.mubr.bf16.gmra.mxu0 %v2401
    %v2440 = vpop.f32.mrf.mxu0
    %v2441 = vadd.f32 0.0, %v2440
    %v2442 = vpop.f32.mrf.mxu0
    %v2443 = vpop.f32.mrf.mxu0
    %v2444 = vadd.f32 0.0, %v2443
    %v2445 = vpop.f32.mrf.mxu0
    %2446 = vmatprep.mubr.bf16.mxu0 0
    %2447 = vmatmul.mubr.bf16.gmra.mxu0 %v2404
    %v2448 = vpop.f32.mrf.mxu0
    %v2449 = vadd.f32 0.0, %v2448
    %v2450 = vpop.f32.mrf.mxu0
    %v2451 = vpop.f32.mrf.mxu0
    %v2452 = vadd.f32 0.0, %v2451
    %v2453 = vpop.f32.mrf.mxu0
    %2454 = vdwg.mxu0
    %2457 = vrot.lane.b32.xlu0 %v2287, 96
    %v2458 = vpop.permute.xlu0 %2457
    %2459 = vrot.lane.b32.xlu0 %v2290, 96
    %v2460 = vpop.permute.xlu0 %2459
    %2463 = vrot.lane.b32.xlu0 %v2288, 96
    %v2464 = vpop.permute.xlu0 %2463
    %2465 = vrot.lane.b32.xlu0 %v2291, 96
    %v2466 = vpop.permute.xlu0 %2465
    %v2468 = vsel %vm560, %v2458, 0
    %v2471 = vsel %vm560, %v2460, 0
    %v2474 = vsel %vm560, %v2464, 0
    %v2477 = vsel %vm560, %v2466, 0
    %2479 = vmatprep.subr.bf16.mxu0 0
    %2480 = vmatpush1.bf16.xpose.msra.mxu0 0
    %2481 = vmatprep.subr.bf16.mxu0 0
    %2482 = vmatpush1.bf16.xpose.msra.mxu0 0
    %2483 = vmatprep.subr.bf16.mxu0 0
    %2484 = vmatpush1.bf16.xpose.msra.mxu0 0
    %2485 = vmatprep.subr.bf16.mxu0 0
    %2486 = vmatpush1.bf16.xpose.msra.mxu0 0
    %2487 = vmatprep.subr.bf16.mxu0 0
    %2488 = vmatpush1.bf16.xpose.msra.mxu0 0
    %2489 = vmatprep.subr.bf16.mxu0 0
    %2490 = vmatpush1.bf16.xpose.msra.mxu0 0
    %2491 = vmatprep.subr.bf16.mxu0 0
    %2492 = vmatpush1.bf16.xpose.msra.mxu0 %v2477
    %2493 = vmatprep.subr.bf16.mxu0 0
    %2494 = vmatpush1.bf16.xpose.msra.mxu0 %v2474
    %2495 = vmatprep.subr.bf16.mxu0 0
    %2496 = vmatpush2.bf16.xpose.msra.mxu0 0
    %2497 = vmatprep.subr.bf16.mxu0 0
    %2498 = vmatpush2.bf16.xpose.msra.mxu0 0
    %2499 = vmatprep.subr.bf16.mxu0 0
    %2500 = vmatpush2.bf16.xpose.msra.mxu0 0
    %2501 = vmatprep.subr.bf16.mxu0 0
    %2502 = vmatpush2.bf16.xpose.msra.mxu0 0
    %2503 = vmatprep.subr.bf16.mxu0 0
    %2504 = vmatpush2.bf16.xpose.msra.mxu0 0
    %2505 = vmatprep.subr.bf16.mxu0 0
    %2506 = vmatpush2.bf16.xpose.msra.mxu0 0
    %2507 = vmatprep.subr.bf16.mxu0 0
    %2508 = vmatpush2.bf16.xpose.msra.mxu0 0
    %2509 = vmatprep.subr.bf16.mxu0 0
    %2510 = vmatpush2.bf16.xpose.msra.mxu0 0
    %2511 = vmatprep.mubr.bf16.mxu0 0
    %2512 = vmatmul.mubr.bf16.gmra.mxu0 %v2468
    %v2513 = vpop.f32.mrf.mxu0
    %v2514 = vadd.f32 %v198, %v2513
    %v2515 = vpop.f32.mrf.mxu0
    %v2516 = vpop.f32.mrf.mxu0
    %v2517 = vadd.f32 %v199, %v2516
    %v2518 = vpop.f32.mrf.mxu0
    %2519 = vmatprep.mubr.bf16.mxu0 0
    %2520 = vmatmul.mubr.bf16.gmra.mxu0 %v2471
    %v2521 = vpop.f32.mrf.mxu0
    %v2522 = vadd.f32 %v200, %v2521
    %v2523 = vpop.f32.mrf.mxu0
    %v2524 = vpop.f32.mrf.mxu0
    %v2525 = vadd.f32 %v201, %v2524
    %v2526 = vpop.f32.mrf.mxu0
    %2527 = vdwg.mxu0
    %v2528 = vsel %vm560, %v2514, -inf
    %2529 = vmax.xlane.f32.xlu0 %v2528
    %v2530 = vpop.xlane.xlu0 %2529
    %v2531 = vsel %vm560, %v2517, -inf
    %2532 = vmax.xlane.f32.xlu0 %v2531
    %v2533 = vpop.xlane.xlu0 %2532
    %v2534 = vsel %vm560, %v2522, -inf
    %2535 = vmax.xlane.f32.xlu0 %v2534
    %v2536 = vpop.xlane.xlu0 %2535
    %v2537 = vsel %vm560, %v2525, -inf
    %2538 = vmax.xlane.f32.xlu0 %v2537
    %v2539 = vpop.xlane.xlu0 %2538
    %v2540 = vsub.f32 %v2514, %v2530
    %v2541 = vsub.f32 %v2517, %v2533
    %v2542 = vsub.f32 %v2522, %v2536
    %v2543 = vsub.f32 %v2525, %v2539
    %v2544 = vmul.f32 %v2540, 1.442695
    %v2545 = vpow.pop %v2544
    %v2546 = vmul.f32 %v2541, 1.442695
    %v2547 = vpow.pop %v2546
    %v2548 = vmul.f32 %v2542, 1.442695
    %v2549 = vpow.pop %v2548
    %v2550 = vmul.f32 %v2543, 1.442695
    %v2551 = vpow.pop %v2550
    %v2552 = vsel %vm560, %v2545, 0.0
    %2553 = vadd.xlane.f32.xlu0 %v2552
    %v2554 = vpop.xlane.xlu0 %2553
    %v2555 = vsel %vm560, %v2547, 0.0
    %2556 = vadd.xlane.f32.xlu0 %v2555
    %v2557 = vpop.xlane.xlu0 %2556
    %v2558 = vsel %vm560, %v2549, 0.0
    %2559 = vadd.xlane.f32.xlu0 %v2558
    %v2560 = vpop.xlane.xlu0 %2559
    %v2561 = vsel %vm560, %v2551, 0.0
    %2562 = vadd.xlane.f32.xlu0 %v2561
    %v2563 = vpop.xlane.xlu0 %2562
    %v2564 = vrcp.pop %v2554
    %v2565 = vrcp.pop %v2557
    %v2566 = vrcp.pop %v2560
    %v2567 = vrcp.pop %v2563
    %v2568 = vmul.f32 %v2545, %v2564
    %v2569 = vmul.f32 %v2547, %v2565
    %v2570 = vmul.f32 %v2549, %v2566
    %v2571 = vmul.f32 %v2551, %v2567
    %v2572 = vpack.c.bf16 %v2569, %v2568
    %v2573 = vpack.c.bf16 %v2571, %v2570
    %2576 = vrot.lane.b32.xlu0 %v2289, 96
    %v2577 = vpop.permute.xlu0 %2576
    %2578 = vrot.lane.b32.xlu0 %v2292, 96
    %v2579 = vpop.permute.xlu0 %2578
    %v2583 = vsel %vm560, %v2572, 0
    %v2586 = vsel %vm560, %v2573, 0
    %2588 = vmatprep.subr.bf16.mxu0 0
    %2589 = vmatpush1.bf16.msra.mxu0 0
    %2590 = vmatprep.subr.bf16.mxu0 0
    %2591 = vmatpush1.bf16.msra.mxu0 0
    %2592 = vmatprep.subr.bf16.mxu0 0
    %2593 = vmatpush1.bf16.msra.mxu0 0
    %2594 = vmatprep.subr.bf16.mxu0 0
    %2595 = vmatpush1.bf16.msra.mxu0 0
    %2596 = vmatprep.subr.bf16.mxu0 0
    %2597 = vmatpush1.bf16.msra.mxu0 0
    %2598 = vmatprep.subr.bf16.mxu0 0
    %2599 = vmatpush1.bf16.msra.mxu0 0
    %2600 = vmatprep.subr.bf16.mxu0 0
    %2601 = vmatpush1.bf16.msra.mxu0 %v2579
    %2602 = vmatprep.subr.bf16.mxu0 0
    %2603 = vmatpush1.bf16.msra.mxu0 %v2577
    %2604 = vmatprep.subr.bf16.mxu0 0
    %2605 = vmatpush2.bf16.msra.mxu0 0
    %2606 = vmatprep.subr.bf16.mxu0 0
    %2607 = vmatpush2.bf16.msra.mxu0 0
    %2608 = vmatprep.subr.bf16.mxu0 0
    %2609 = vmatpush2.bf16.msra.mxu0 0
    %2610 = vmatprep.subr.bf16.mxu0 0
    %2611 = vmatpush2.bf16.msra.mxu0 0
    %2612 = vmatprep.subr.bf16.mxu0 0
    %2613 = vmatpush2.bf16.msra.mxu0 0
    %2614 = vmatprep.subr.bf16.mxu0 0
    %2615 = vmatpush2.bf16.msra.mxu0 0
    %2616 = vmatprep.subr.bf16.mxu0 0
    %2617 = vmatpush2.bf16.msra.mxu0 0
    %2618 = vmatprep.subr.bf16.mxu0 0
    %2619 = vmatpush2.bf16.msra.mxu0 0
    %2620 = vmatprep.mubr.bf16.mxu0 0
    %2621 = vmatmul.mubr.bf16.gmra.mxu0 %v2583
    %v2622 = vpop.f32.mrf.mxu0
    %v2623 = vadd.f32 0.0, %v2622
    %v2624 = vpop.f32.mrf.mxu0
    %v2625 = vpop.f32.mrf.mxu0
    %v2626 = vadd.f32 0.0, %v2625
    %v2627 = vpop.f32.mrf.mxu0
    %2628 = vmatprep.mubr.bf16.mxu0 0
    %2629 = vmatmul.mubr.bf16.gmra.mxu0 %v2586
    %v2630 = vpop.f32.mrf.mxu0
    %v2631 = vadd.f32 0.0, %v2630
    %v2632 = vpop.f32.mrf.mxu0
    %v2633 = vpop.f32.mrf.mxu0
    %v2634 = vadd.f32 0.0, %v2633
    %v2635 = vpop.f32.mrf.mxu0
    %2636 = vdwg.mxu0
    %2637 = vrot.lane.b32.xlu0 %v2287, 64
    %v2638 = vpop.permute.xlu0 %2637
    %2639 = vrot.lane.b32.xlu0 %v2290, 64
    %v2640 = vpop.permute.xlu0 %2639
    %2641 = vrot.lane.b32.xlu0 %v2288, 64
    %v2642 = vpop.permute.xlu0 %2641
    %2643 = vrot.lane.b32.xlu0 %v2291, 64
    %v2644 = vpop.permute.xlu0 %2643
    %v2646 = vsel %vm560, %v2638, 0
    %v2649 = vsel %vm560, %v2640, 0
    %v2652 = vsel %vm560, %v2642, 0
    %v2655 = vsel %vm560, %v2644, 0
    %2657 = vmatprep.subr.bf16.mxu0 0
    %2658 = vmatpush1.bf16.xpose.msra.mxu0 0
    %2659 = vmatprep.subr.bf16.mxu0 0
    %2660 = vmatpush1.bf16.xpose.msra.mxu0 0
    %2661 = vmatprep.subr.bf16.mxu0 0
    %2662 = vmatpush1.bf16.xpose.msra.mxu0 0
    %2663 = vmatprep.subr.bf16.mxu0 0
    %2664 = vmatpush1.bf16.xpose.msra.mxu0 0
    %2665 = vmatprep.subr.bf16.mxu0 0
    %2666 = vmatpush1.bf16.xpose.msra.mxu0 0
    %2667 = vmatprep.subr.bf16.mxu0 0
    %2668 = vmatpush1.bf16.xpose.msra.mxu0 0
    %2669 = vmatprep.subr.bf16.mxu0 0
    %2670 = vmatpush1.bf16.xpose.msra.mxu0 %v2655
    %2671 = vmatprep.subr.bf16.mxu0 0
    %2672 = vmatpush1.bf16.xpose.msra.mxu0 %v2652
    %2673 = vmatprep.subr.bf16.mxu0 0
    %2674 = vmatpush2.bf16.xpose.msra.mxu0 0
    %2675 = vmatprep.subr.bf16.mxu0 0
    %2676 = vmatpush2.bf16.xpose.msra.mxu0 0
    %2677 = vmatprep.subr.bf16.mxu0 0
    %2678 = vmatpush2.bf16.xpose.msra.mxu0 0
    %2679 = vmatprep.subr.bf16.mxu0 0
    %2680 = vmatpush2.bf16.xpose.msra.mxu0 0
    %2681 = vmatprep.subr.bf16.mxu0 0
    %2682 = vmatpush2.bf16.xpose.msra.mxu0 0
    %2683 = vmatprep.subr.bf16.mxu0 0
    %2684 = vmatpush2.bf16.xpose.msra.mxu0 0
    %2685 = vmatprep.subr.bf16.mxu0 0
    %2686 = vmatpush2.bf16.xpose.msra.mxu0 0
    %2687 = vmatprep.subr.bf16.mxu0 0
    %2688 = vmatpush2.bf16.xpose.msra.mxu0 0
    %2689 = vmatprep.mubr.bf16.mxu0 0
    %2690 = vmatmul.mubr.bf16.gmra.mxu0 %v2646
    %v2691 = vpop.f32.mrf.mxu0
    %v2692 = vadd.f32 %v198, %v2691
    %v2693 = vpop.f32.mrf.mxu0
    %v2694 = vpop.f32.mrf.mxu0
    %v2695 = vadd.f32 %v199, %v2694
    %v2696 = vpop.f32.mrf.mxu0
    %2697 = vmatprep.mubr.bf16.mxu0 0
    %2698 = vmatmul.mubr.bf16.gmra.mxu0 %v2649
    %v2699 = vpop.f32.mrf.mxu0
    %v2700 = vadd.f32 %v200, %v2699
    %v2701 = vpop.f32.mrf.mxu0
    %v2702 = vpop.f32.mrf.mxu0
    %v2703 = vadd.f32 %v201, %v2702
    %v2704 = vpop.f32.mrf.mxu0
    %2705 = vdwg.mxu0
    %v2706 = vsel %vm560, %v2692, -inf
    %2707 = vmax.xlane.f32.xlu0 %v2706
    %v2708 = vpop.xlane.xlu0 %2707
    %v2709 = vsel %vm560, %v2695, -inf
    %2710 = vmax.xlane.f32.xlu0 %v2709
    %v2711 = vpop.xlane.xlu0 %2710
    %v2712 = vsel %vm560, %v2700, -inf
    %2713 = vmax.xlane.f32.xlu0 %v2712
    %v2714 = vpop.xlane.xlu0 %2713
    %v2715 = vsel %vm560, %v2703, -inf
    %2716 = vmax.xlane.f32.xlu0 %v2715
    %v2717 = vpop.xlane.xlu0 %2716
    %v2718 = vsub.f32 %v2692, %v2708
    %v2719 = vsub.f32 %v2695, %v2711
    %v2720 = vsub.f32 %v2700, %v2714
    %v2721 = vsub.f32 %v2703, %v2717
    %v2722 = vmul.f32 %v2718, 1.442695
    %v2723 = vpow.pop %v2722
    %v2724 = vmul.f32 %v2719, 1.442695
    %v2725 = vpow.pop %v2724
    %v2726 = vmul.f32 %v2720, 1.442695
    %v2727 = vpow.pop %v2726
    %v2728 = vmul.f32 %v2721, 1.442695
    %v2729 = vpow.pop %v2728
    %v2730 = vsel %vm560, %v2723, 0.0
    %2731 = vadd.xlane.f32.xlu0 %v2730
    %v2732 = vpop.xlane.xlu0 %2731
    %v2733 = vsel %vm560, %v2725, 0.0
    %2734 = vadd.xlane.f32.xlu0 %v2733
    %v2735 = vpop.xlane.xlu0 %2734
    %v2736 = vsel %vm560, %v2727, 0.0
    %2737 = vadd.xlane.f32.xlu0 %v2736
    %v2738 = vpop.xlane.xlu0 %2737
    %v2739 = vsel %vm560, %v2729, 0.0
    %2740 = vadd.xlane.f32.xlu0 %v2739
    %v2741 = vpop.xlane.xlu0 %2740
    %v2742 = vrcp.pop %v2732
    %v2743 = vrcp.pop %v2735
    %v2744 = vrcp.pop %v2738
    %v2745 = vrcp.pop %v2741
    %v2746 = vmul.f32 %v2723, %v2742
    %v2747 = vmul.f32 %v2725, %v2743
    %v2748 = vmul.f32 %v2727, %v2744
    %v2749 = vmul.f32 %v2729, %v2745
    %v2750 = vpack.c.bf16 %v2747, %v2746
    %v2751 = vpack.c.bf16 %v2749, %v2748
    %2752 = vrot.lane.b32.xlu0 %v2289, 64
    %v2753 = vpop.permute.xlu0 %2752
    %2754 = vrot.lane.b32.xlu0 %v2292, 64
    %v2755 = vpop.permute.xlu0 %2754
    %v2759 = vsel %vm560, %v2750, 0
    %v2762 = vsel %vm560, %v2751, 0
    %2764 = vmatprep.subr.bf16.mxu0 0
    %2765 = vmatpush1.bf16.msra.mxu0 0
    %2766 = vmatprep.subr.bf16.mxu0 0
    %2767 = vmatpush1.bf16.msra.mxu0 0
    %2768 = vmatprep.subr.bf16.mxu0 0
    %2769 = vmatpush1.bf16.msra.mxu0 0
    %2770 = vmatprep.subr.bf16.mxu0 0
    %2771 = vmatpush1.bf16.msra.mxu0 0
    %2772 = vmatprep.subr.bf16.mxu0 0
    %2773 = vmatpush1.bf16.msra.mxu0 0
    %2774 = vmatprep.subr.bf16.mxu0 0
    %2775 = vmatpush1.bf16.msra.mxu0 0
    %2776 = vmatprep.subr.bf16.mxu0 0
    %2777 = vmatpush1.bf16.msra.mxu0 %v2755
    %2778 = vmatprep.subr.bf16.mxu0 0
    %2779 = vmatpush1.bf16.msra.mxu0 %v2753
    %2780 = vmatprep.subr.bf16.mxu0 0
    %2781 = vmatpush2.bf16.msra.mxu0 0
    %2782 = vmatprep.subr.bf16.mxu0 0
    %2783 = vmatpush2.bf16.msra.mxu0 0
    %2784 = vmatprep.subr.bf16.mxu0 0
    %2785 = vmatpush2.bf16.msra.mxu0 0
    %2786 = vmatprep.subr.bf16.mxu0 0
    %2787 = vmatpush2.bf16.msra.mxu0 0
    %2788 = vmatprep.subr.bf16.mxu0 0
    %2789 = vmatpush2.bf16.msra.mxu0 0
    %2790 = vmatprep.subr.bf16.mxu0 0
    %2791 = vmatpush2.bf16.msra.mxu0 0
    %2792 = vmatprep.subr.bf16.mxu0 0
    %2793 = vmatpush2.bf16.msra.mxu0 0
    %2794 = vmatprep.subr.bf16.mxu0 0
    %2795 = vmatpush2.bf16.msra.mxu0 0
    %2796 = vmatprep.mubr.bf16.mxu0 0
    %2797 = vmatmul.mubr.bf16.gmra.mxu0 %v2759
    %v2798 = vpop.f32.mrf.mxu0
    %v2799 = vadd.f32 0.0, %v2798
    %v2800 = vpop.f32.mrf.mxu0
    %v2801 = vpop.f32.mrf.mxu0
    %v2802 = vadd.f32 0.0, %v2801
    %v2803 = vpop.f32.mrf.mxu0
    %2804 = vmatprep.mubr.bf16.mxu0 0
    %2805 = vmatmul.mubr.bf16.gmra.mxu0 %v2762
    %v2806 = vpop.f32.mrf.mxu0
    %v2807 = vadd.f32 0.0, %v2806
    %v2808 = vpop.f32.mrf.mxu0
    %v2809 = vpop.f32.mrf.mxu0
    %v2810 = vadd.f32 0.0, %v2809
    %v2811 = vpop.f32.mrf.mxu0
    %2812 = vdwg.mxu0
    %2813 = vrot.lane.b32.xlu0 %v2287, 32
    %v2814 = vpop.permute.xlu0 %2813
    %2815 = vrot.lane.b32.xlu0 %v2290, 32
    %v2816 = vpop.permute.xlu0 %2815
    %2817 = vrot.lane.b32.xlu0 %v2288, 32
    %v2818 = vpop.permute.xlu0 %2817
    %2819 = vrot.lane.b32.xlu0 %v2291, 32
    %v2820 = vpop.permute.xlu0 %2819
    %v2822 = vsel %vm560, %v2814, 0
    %v2825 = vsel %vm560, %v2816, 0
    %v2828 = vsel %vm560, %v2818, 0
    %v2831 = vsel %vm560, %v2820, 0
    %2833 = vmatprep.subr.bf16.mxu0 0
    %2834 = vmatpush1.bf16.xpose.msra.mxu0 0
    %2835 = vmatprep.subr.bf16.mxu0 0
    %2836 = vmatpush1.bf16.xpose.msra.mxu0 0
    %2837 = vmatprep.subr.bf16.mxu0 0
    %2838 = vmatpush1.bf16.xpose.msra.mxu0 0
    %2839 = vmatprep.subr.bf16.mxu0 0
    %2840 = vmatpush1.bf16.xpose.msra.mxu0 0
    %2841 = vmatprep.subr.bf16.mxu0 0
    %2842 = vmatpush1.bf16.xpose.msra.mxu0 0
    %2843 = vmatprep.subr.bf16.mxu0 0
    %2844 = vmatpush1.bf16.xpose.msra.mxu0 0
    %2845 = vmatprep.subr.bf16.mxu0 0
    %2846 = vmatpush1.bf16.xpose.msra.mxu0 %v2831
    %2847 = vmatprep.subr.bf16.mxu0 0
    %2848 = vmatpush1.bf16.xpose.msra.mxu0 %v2828
    %2849 = vmatprep.subr.bf16.mxu0 0
    %2850 = vmatpush2.bf16.xpose.msra.mxu0 0
    %2851 = vmatprep.subr.bf16.mxu0 0
    %2852 = vmatpush2.bf16.xpose.msra.mxu0 0
    %2853 = vmatprep.subr.bf16.mxu0 0
    %2854 = vmatpush2.bf16.xpose.msra.mxu0 0
    %2855 = vmatprep.subr.bf16.mxu0 0
    %2856 = vmatpush2.bf16.xpose.msra.mxu0 0
    %2857 = vmatprep.subr.bf16.mxu0 0
    %2858 = vmatpush2.bf16.xpose.msra.mxu0 0
    %2859 = vmatprep.subr.bf16.mxu0 0
    %2860 = vmatpush2.bf16.xpose.msra.mxu0 0
    %2861 = vmatprep.subr.bf16.mxu0 0
    %2862 = vmatpush2.bf16.xpose.msra.mxu0 0
    %2863 = vmatprep.subr.bf16.mxu0 0
    %2864 = vmatpush2.bf16.xpose.msra.mxu0 0
    %2865 = vmatprep.mubr.bf16.mxu0 0
    %2866 = vmatmul.mubr.bf16.gmra.mxu0 %v2822
    %v2867 = vpop.f32.mrf.mxu0
    %v2868 = vadd.f32 %v198, %v2867
    %v2869 = vpop.f32.mrf.mxu0
    %v2870 = vpop.f32.mrf.mxu0
    %v2871 = vadd.f32 %v199, %v2870
    %v2872 = vpop.f32.mrf.mxu0
    %2873 = vmatprep.mubr.bf16.mxu0 0
    %2874 = vmatmul.mubr.bf16.gmra.mxu0 %v2825
    %v2875 = vpop.f32.mrf.mxu0
    %v2876 = vadd.f32 %v200, %v2875
    %v2877 = vpop.f32.mrf.mxu0
    %v2878 = vpop.f32.mrf.mxu0
    %v2879 = vadd.f32 %v201, %v2878
    %v2880 = vpop.f32.mrf.mxu0
    %2881 = vdwg.mxu0
    %v2882 = vsel %vm560, %v2868, -inf
    %2883 = vmax.xlane.f32.xlu0 %v2882
    %v2884 = vpop.xlane.xlu0 %2883
    %v2885 = vsel %vm560, %v2871, -inf
    %2886 = vmax.xlane.f32.xlu0 %v2885
    %v2887 = vpop.xlane.xlu0 %2886
    %v2888 = vsel %vm560, %v2876, -inf
    %2889 = vmax.xlane.f32.xlu0 %v2888
    %v2890 = vpop.xlane.xlu0 %2889
    %v2891 = vsel %vm560, %v2879, -inf
    %2892 = vmax.xlane.f32.xlu0 %v2891
    %v2893 = vpop.xlane.xlu0 %2892
    %v2894 = vsub.f32 %v2868, %v2884
    %v2895 = vsub.f32 %v2871, %v2887
    %v2896 = vsub.f32 %v2876, %v2890
    %v2897 = vsub.f32 %v2879, %v2893
    %v2898 = vmul.f32 %v2894, 1.442695
    %v2899 = vpow.pop %v2898
    %v2900 = vmul.f32 %v2895, 1.442695
    %v2901 = vpow.pop %v2900
    %v2902 = vmul.f32 %v2896, 1.442695
    %v2903 = vpow.pop %v2902
    %v2904 = vmul.f32 %v2897, 1.442695
    %v2905 = vpow.pop %v2904
    %v2906 = vsel %vm560, %v2899, 0.0
    %2907 = vadd.xlane.f32.xlu0 %v2906
    %v2908 = vpop.xlane.xlu0 %2907
    %v2909 = vsel %vm560, %v2901, 0.0
    %2910 = vadd.xlane.f32.xlu0 %v2909
    %v2911 = vpop.xlane.xlu0 %2910
    %v2912 = vsel %vm560, %v2903, 0.0
    %2913 = vadd.xlane.f32.xlu0 %v2912
    %v2914 = vpop.xlane.xlu0 %2913
    %v2915 = vsel %vm560, %v2905, 0.0
    %2916 = vadd.xlane.f32.xlu0 %v2915
    %v2917 = vpop.xlane.xlu0 %2916
    %v2918 = vrcp.pop %v2908
    %v2919 = vrcp.pop %v2911
    %v2920 = vrcp.pop %v2914
    %v2921 = vrcp.pop %v2917
    %v2922 = vmul.f32 %v2899, %v2918
    %v2923 = vmul.f32 %v2901, %v2919
    %v2924 = vmul.f32 %v2903, %v2920
    %v2925 = vmul.f32 %v2905, %v2921
    %v2926 = vpack.c.bf16 %v2923, %v2922
    %v2927 = vpack.c.bf16 %v2925, %v2924
    %2928 = vrot.lane.b32.xlu0 %v2289, 32
    %v2929 = vpop.permute.xlu0 %2928
    %2930 = vrot.lane.b32.xlu0 %v2292, 32
    %v2931 = vpop.permute.xlu0 %2930
    %v2935 = vsel %vm560, %v2926, 0
    %v2938 = vsel %vm560, %v2927, 0
    %2940 = vmatprep.subr.bf16.mxu0 0
    %2941 = vmatpush1.bf16.msra.mxu0 0
    %2942 = vmatprep.subr.bf16.mxu0 0
    %2943 = vmatpush1.bf16.msra.mxu0 0
    %2944 = vmatprep.subr.bf16.mxu0 0
    %2945 = vmatpush1.bf16.msra.mxu0 0
    %2946 = vmatprep.subr.bf16.mxu0 0
    %2947 = vmatpush1.bf16.msra.mxu0 0
    %2948 = vmatprep.subr.bf16.mxu0 0
    %2949 = vmatpush1.bf16.msra.mxu0 0
    %2950 = vmatprep.subr.bf16.mxu0 0
    %2951 = vmatpush1.bf16.msra.mxu0 0
    %2952 = vmatprep.subr.bf16.mxu0 0
    %2953 = vmatpush1.bf16.msra.mxu0 %v2931
    %2954 = vmatprep.subr.bf16.mxu0 0
    %2955 = vmatpush1.bf16.msra.mxu0 %v2929
    %2956 = vmatprep.subr.bf16.mxu0 0
    %2957 = vmatpush2.bf16.msra.mxu0 0
    %2958 = vmatprep.subr.bf16.mxu0 0
    %2959 = vmatpush2.bf16.msra.mxu0 0
    %2960 = vmatprep.subr.bf16.mxu0 0
    %2961 = vmatpush2.bf16.msra.mxu0 0
    %2962 = vmatprep.subr.bf16.mxu0 0
    %2963 = vmatpush2.bf16.msra.mxu0 0
    %2964 = vmatprep.subr.bf16.mxu0 0
    %2965 = vmatpush2.bf16.msra.mxu0 0
    %2966 = vmatprep.subr.bf16.mxu0 0
    %2967 = vmatpush2.bf16.msra.mxu0 0
    %2968 = vmatprep.subr.bf16.mxu0 0
    %2969 = vmatpush2.bf16.msra.mxu0 0
    %2970 = vmatprep.subr.bf16.mxu0 0
    %2971 = vmatpush2.bf16.msra.mxu0 0
    %2972 = vmatprep.mubr.bf16.mxu0 0
    %2973 = vmatmul.mubr.bf16.gmra.mxu0 %v2935
    %v2974 = vpop.f32.mrf.mxu0
    %v2975 = vadd.f32 0.0, %v2974
    %v2976 = vpop.f32.mrf.mxu0
    %v2977 = vpop.f32.mrf.mxu0
    %v2978 = vadd.f32 0.0, %v2977
    %v2979 = vpop.f32.mrf.mxu0
    %2980 = vmatprep.mubr.bf16.mxu0 0
    %2981 = vmatmul.mubr.bf16.gmra.mxu0 %v2938
    %v2982 = vpop.f32.mrf.mxu0
    %v2983 = vadd.f32 0.0, %v2982
    %v2984 = vpop.f32.mrf.mxu0
    %v2985 = vpop.f32.mrf.mxu0
    %v2986 = vadd.f32 0.0, %v2985
    %v2987 = vpop.f32.mrf.mxu0
    %2988 = vdwg.mxu0
    %2993 = vrot.lane.b32.xlu0 %v2623, 32
    %v2994 = vpop.permute.xlu0 %2993
    %2995 = vrot.lane.b32.xlu0 %v2626, 32
    %v2996 = vpop.permute.xlu0 %2995
    %2997 = vrot.lane.b32.xlu0 %v2631, 32
    %v2998 = vpop.permute.xlu0 %2997
    %2999 = vrot.lane.b32.xlu0 %v2634, 32
    %v3000 = vpop.permute.xlu0 %2999
    %3009 = vrot.lane.b32.xlu0 %v2799, 64
    %v3010 = vpop.permute.xlu0 %3009
    %3011 = vrot.lane.b32.xlu0 %v2802, 64
    %v3012 = vpop.permute.xlu0 %3011
    %3013 = vrot.lane.b32.xlu0 %v2807, 64
    %v3014 = vpop.permute.xlu0 %3013
    %3015 = vrot.lane.b32.xlu0 %v2810, 64
    %v3016 = vpop.permute.xlu0 %3015
    %3025 = vrot.lane.b32.xlu0 %v2975, 96
    %v3026 = vpop.permute.xlu0 %3025
    %3027 = vrot.lane.b32.xlu0 %v2978, 96
    %v3028 = vpop.permute.xlu0 %3027
    %3029 = vrot.lane.b32.xlu0 %v2983, 96
    %v3030 = vpop.permute.xlu0 %3029
    %3031 = vrot.lane.b32.xlu0 %v2986, 96
    %v3032 = vpop.permute.xlu0 %3031
    %v3037 = vsel %vm560, %v2441, %v2994
    %v3038 = vsel %vm560, %v2444, %v2996
    %v3039 = vsel %vm560, %v2449, %v2998
    %v3040 = vsel %vm560, %v2452, %v3000
    %v3041 = vsel %vm1309, %v3037, %v3010
    %v3042 = vsel %vm1309, %v3038, %v3012
    %v3043 = vsel %vm1309, %v3039, %v3014
    %v3044 = vsel %vm1309, %v3040, %v3016
    %v3045 = vsel %vm1314, %v3041, %v3026
    %v3046 = vsel %vm1314, %v3042, %v3028
    %v3047 = vsel %vm1314, %v3043, %v3030
    %v3048 = vsel %vm1314, %v3044, %v3032
    %v3049 = vpack.c.bf16 %v3046, %v3045
    %v3050 = vpack.c.bf16 %v3048, %v3047
    %s3051 = scalar_lea.vmem [#allocation4], 64
    %v3052 = vld [vmem:[%s3051] sm:$0xf]
    %v3053 = vld [vmem:[%s3051 + $0x4] sm:$0xf]
    %v3054 = vld [vmem:[%s3051 + $0x8] sm:$0xf]
    %v3055 = vld [vmem:[%s3051 + $0xc] sm:$0xf]
    %v3056 = vld [vmem:[%s3051 + $0x10] sm:$0xf]
    %v3057 = vld [vmem:[%s3051 + $0x14] sm:$0xf]
    %v3058 = vld [vmem:[%s3051 + $0x18] sm:$0xf]
    %v3059 = vld [vmem:[%s3051 + $0x1c] sm:$0xf]
    %v3060 = vld [vmem:[%s3051 + $0x20] sm:$0xf]
    %v3061 = vld [vmem:[%s3051 + $0x24] sm:$0xf]
    %v3062 = vld [vmem:[%s3051 + $0x28] sm:$0xf]
    %v3063 = vld [vmem:[%s3051 + $0x2c] sm:$0xf]
    %v3064 = vld [vmem:[%s3051 + $0x30] sm:$0xf]
    %v3065 = vld [vmem:[%s3051 + $0x34] sm:$0xf]
    %v3066 = vld [vmem:[%s3051 + $0x38] sm:$0xf]
    %v3067 = vld [vmem:[%s3051 + $0x3c] sm:$0xf]
    %s3068 = scalar_lea.vmem [#allocation6], 1
    %v3069 = vld [vmem:[%s3068] sm:$0x1]
    %v3071 = vlaneseq
    %v3072 = vshrl.u32 %v3071, 7
    %v3073 = vsub.s32 0, %v3072
    %v3074 = vrot.slane %v3069, %v3073
    %v3092 = vunpack.c.l.b16 %v3052
    %v3093 = vunpack.c.l.b16 %v3053
    %v3094 = vunpack.c.l.b16 %v3054
    %v3095 = vunpack.c.l.b16 %v3055
    %v3096 = vunpack.c.l.b16 %v3056
    %v3097 = vunpack.c.l.b16 %v3057
    %v3098 = vunpack.c.l.b16 %v3058
    %v3099 = vunpack.c.l.b16 %v3059
    %v3100 = vunpack.c.l.b16 %v3060
    %v3101 = vunpack.c.l.b16 %v3061
    %v3102 = vunpack.c.l.b16 %v3062
    %v3103 = vunpack.c.l.b16 %v3063
    %v3104 = vunpack.c.l.b16 %v3064
    %v3105 = vunpack.c.l.b16 %v3065
    %v3106 = vunpack.c.l.b16 %v3066
    %v3107 = vunpack.c.l.b16 %v3067
    %v3108 = vpack.c.b16 %v3093, %v3092
    %v3109 = vpack.c.b16 %v3095, %v3094
    %v3110 = vpack.c.b16 %v3097, %v3096
    %v3111 = vpack.c.b16 %v3099, %v3098
    %v3112 = vpack.c.b16 %v3101, %v3100
    %v3113 = vpack.c.b16 %v3103, %v3102
    %v3114 = vpack.c.b16 %v3105, %v3104
    %v3115 = vpack.c.b16 %v3107, %v3106
    %3124 = vmatprep.subr.bf16.mxu0 0
    %3125 = vmatpush1.bf16.msra.mxu0 %v3115
    %3126 = vmatprep.subr.bf16.mxu0 0
    %3127 = vmatpush1.bf16.msra.mxu0 %v3114
    %3128 = vmatprep.subr.bf16.mxu0 0
    %3129 = vmatpush1.bf16.msra.mxu0 %v3113
    %3130 = vmatprep.subr.bf16.mxu0 0
    %3131 = vmatpush1.bf16.msra.mxu0 %v3112
    %3132 = vmatprep.subr.bf16.mxu0 0
    %3133 = vmatpush1.bf16.msra.mxu0 %v3111
    %3134 = vmatprep.subr.bf16.mxu0 0
    %3135 = vmatpush1.bf16.msra.mxu0 %v3110
    %3136 = vmatprep.subr.bf16.mxu0 0
    %3137 = vmatpush1.bf16.msra.mxu0 %v3109
    %3138 = vmatprep.subr.bf16.mxu0 0
    %3139 = vmatpush1.bf16.msra.mxu0 %v3108
    %3140 = vmatprep.subr.bf16.mxu0 0
    %3141 = vmatpush2.bf16.msra.mxu0 0
    %3142 = vmatprep.subr.bf16.mxu0 0
    %3143 = vmatpush2.bf16.msra.mxu0 0
    %3144 = vmatprep.subr.bf16.mxu0 0
    %3145 = vmatpush2.bf16.msra.mxu0 0
    %3146 = vmatprep.subr.bf16.mxu0 0
    %3147 = vmatpush2.bf16.msra.mxu0 0
    %3148 = vmatprep.subr.bf16.mxu0 0
    %3149 = vmatpush2.bf16.msra.mxu0 0
    %3150 = vmatprep.subr.bf16.mxu0 0
    %3151 = vmatpush2.bf16.msra.mxu0 0
    %3152 = vmatprep.subr.bf16.mxu0 0
    %3153 = vmatpush2.bf16.msra.mxu0 0
    %3154 = vmatprep.subr.bf16.mxu0 0
    %3155 = vmatpush2.bf16.msra.mxu0 0
    %3156 = vmatprep.mubr.bf16.mxu0 0
    %3157 = vmatmul.mubr.bf16.gmra.mxu0 %v3049
    %v3158 = vpop.f32.mrf.mxu0
    %v3159 = vadd.f32 %v3074, %v3158
    %v3160 = vpop.f32.mrf.mxu0
    %v3161 = vpop.f32.mrf.mxu0
    %v3162 = vadd.f32 %v3074, %v3161
    %v3163 = vpop.f32.mrf.mxu0
    %3164 = vmatprep.mubr.bf16.mxu0 0
    %3165 = vmatmul.mubr.bf16.gmra.mxu0 %v3050
    %v3166 = vpop.f32.mrf.mxu0
    %v3167 = vadd.f32 %v3074, %v3166
    %v3168 = vpop.f32.mrf.mxu0
    %v3169 = vpop.f32.mrf.mxu0
    %v3170 = vadd.f32 %v3074, %v3169
    %v3171 = vpop.f32.mrf.mxu0
    %3172 = vdwg.mxu0
    %v3173 = vadd.f32 %v2000, %v3159
    %v3174 = vadd.f32 %v2001, %v3162
    %v3175 = vadd.f32 %v2002, %v3167
    %v3176 = vadd.f32 %v2003, %v3170
    %s3177 = scalar_lea.vmem [#allocation7], 1
    %v3178 = vld [vmem:[%s3177] sm:$0x1]
    %s3179 = scalar_lea.vmem [#allocation9], 1
    %v3180 = vld [vmem:[%s3179] sm:$0x1]
    %3181 = vadd.xlane.f32.xlu0 %v3173
    %v3182 = vpop.xlane.xlu0 %3181
    %3183 = vadd.xlane.f32.xlu0 %v3174
    %v3184 = vpop.xlane.xlu0 %3183
    %3185 = vadd.xlane.f32.xlu0 %v3175
    %v3186 = vpop.xlane.xlu0 %3185
    %3187 = vadd.xlane.f32.xlu0 %v3176
    %v3188 = vpop.xlane.xlu0 %3187
    %v3189 = vmul.f32 %v3182, %v216
    %v3190 = vmul.f32 %v3184, %v216
    %v3191 = vmul.f32 %v3186, %v216
    %v3192 = vmul.f32 %v3188, %v216
    %v3193 = vsub.f32 %v3173, %v3189
    %v3194 = vsub.f32 %v3174, %v3190
    %v3195 = vsub.f32 %v3175, %v3191
    %v3196 = vsub.f32 %v3176, %v3192
    %v3197 = vmul.f32 %v3193, %v3193
    %v3198 = vmul.f32 %v3194, %v3194
    %v3199 = vmul.f32 %v3195, %v3195
    %v3200 = vmul.f32 %v3196, %v3196
    %3201 = vadd.xlane.f32.xlu0 %v3197
    %v3202 = vpop.xlane.xlu0 %3201
    %3203 = vadd.xlane.f32.xlu0 %v3198
    %v3204 = vpop.xlane.xlu0 %3203
    %3205 = vadd.xlane.f32.xlu0 %v3199
    %v3206 = vpop.xlane.xlu0 %3205
    %3207 = vadd.xlane.f32.xlu0 %v3200
    %v3208 = vpop.xlane.xlu0 %3207
    %v3209 = vmul.f32 %v3202, %v216
    %v3210 = vmul.f32 %v3204, %v216
    %v3211 = vmul.f32 %v3206, %v216
    %v3212 = vmul.f32 %v3208, %v216
    %v3213 = vadd.f32 %v3209, 1e-12
    %v3214 = vadd.f32 %v3210, 1e-12
    %v3215 = vadd.f32 %v3211, 1e-12
    %v3216 = vadd.f32 %v3212, 1e-12
    %v3217 = vrsqrt.pop %v3213
    %v3218 = vrsqrt.pop %v3214
    %v3219 = vrsqrt.pop %v3215
    %v3220 = vrsqrt.pop %v3216
    %v3221 = vmul.f32 %v3193, %v3217
    %v3222 = vmul.f32 %v3194, %v3218
    %v3223 = vmul.f32 %v3195, %v3219
    %v3224 = vmul.f32 %v3196, %v3220
    %v3226 = vlaneseq
    %v3227 = vshrl.u32 %v3226, 7
    %v3228 = vsub.s32 0, %v3227
    %v3229 = vrot.slane %v3178, %v3228
    %v3231 = vmul.f32 %v3221, %v3229
    %v3232 = vmul.f32 %v3222, %v3229
    %v3233 = vmul.f32 %v3223, %v3229
    %v3234 = vmul.f32 %v3224, %v3229
    %v3236 = vlaneseq
    %v3237 = vshrl.u32 %v3236, 7
    %v3238 = vsub.s32 0, %v3237
    %v3239 = vrot.slane %v3180, %v3238
    %v3241 = vadd.f32 %v3231, %v3239
    %v3242 = vadd.f32 %v3232, %v3239
    %v3243 = vadd.f32 %v3233, %v3239
    %v3244 = vadd.f32 %v3234, %v3239
    %v3245 = vpack.c.bf16 %v3242, %v3241
    %v3246 = vpack.c.bf16 %v3244, %v3243
    %s3247 = scalar_lea.vmem %s10, 128
    %v3248 = vld [vmem:[%s3247] sm:$0xff]
    %v3249 = vld [vmem:[%s3247 + $0x8] sm:$0xff]
    %v3250 = vld [vmem:[%s3247 + $0x10] sm:$0xff]
    %v3251 = vld [vmem:[%s3247 + $0x18] sm:$0xff]
    %v3252 = vld [vmem:[%s3247 + $0x20] sm:$0xff]
    %v3253 = vld [vmem:[%s3247 + $0x28] sm:$0xff]
    %v3254 = vld [vmem:[%s3247 + $0x30] sm:$0xff]
    %v3255 = vld [vmem:[%s3247 + $0x38] sm:$0xff]
    %v3256 = vld [vmem:[%s3247 + $0x40] sm:$0xff]
    %v3257 = vld [vmem:[%s3247 + $0x48] sm:$0xff]
    %v3258 = vld [vmem:[%s3247 + $0x50] sm:$0xff]
    %v3259 = vld [vmem:[%s3247 + $0x58] sm:$0xff]
    %v3260 = vld [vmem:[%s3247 + $0x60] sm:$0xff]
    %v3261 = vld [vmem:[%s3247 + $0x68] sm:$0xff]
    %v3262 = vld [vmem:[%s3247 + $0x70] sm:$0xff]
    %v3263 = vld [vmem:[%s3247 + $0x78] sm:$0xff]
    %s3264 = scalar_lea.vmem %s11, 2
    %v3265 = vld [vmem:[%s3264] sm:$0x3]
    %v3267 = vlaneseq
    %v3268 = vshrl.u32 %v3267, 7
    %v3269 = vsub.s32 0, %v3268
    %v3270 = vrot.slane %v3265, %v3269
    %v3271 = vlaneseq
    %v3272 = vshrl.u32 %v3271, 7
    %v3273 = vsub.s32 1, %v3272
    %v3274 = vrot.slane %v3265, %v3273
    %v3293 = vunpack.c.l.b16 %v3248
    %v3294 = vunpack.c.h.b16 %v3248
    %v3295 = vunpack.c.l.b16 %v3249
    %v3296 = vunpack.c.h.b16 %v3249
    %v3297 = vunpack.c.l.b16 %v3250
    %v3298 = vunpack.c.h.b16 %v3250
    %v3299 = vunpack.c.l.b16 %v3251
    %v3300 = vunpack.c.h.b16 %v3251
    %v3301 = vunpack.c.l.b16 %v3252
    %v3302 = vunpack.c.h.b16 %v3252
    %v3303 = vunpack.c.l.b16 %v3253
    %v3304 = vunpack.c.h.b16 %v3253
    %v3305 = vunpack.c.l.b16 %v3254
    %v3306 = vunpack.c.h.b16 %v3254
    %v3307 = vunpack.c.l.b16 %v3255
    %v3308 = vunpack.c.h.b16 %v3255
    %v3309 = vunpack.c.l.b16 %v3256
    %v3310 = vunpack.c.h.b16 %v3256
    %v3311 = vunpack.c.l.b16 %v3257
    %v3312 = vunpack.c.h.b16 %v3257
    %v3313 = vunpack.c.l.b16 %v3258
    %v3314 = vunpack.c.h.b16 %v3258
    %v3315 = vunpack.c.l.b16 %v3259
    %v3316 = vunpack.c.h.b16 %v3259
    %v3317 = vunpack.c.l.b16 %v3260
    %v3318 = vunpack.c.h.b16 %v3260
    %v3319 = vunpack.c.l.b16 %v3261
    %v3320 = vunpack.c.h.b16 %v3261
    %v3321 = vunpack.c.l.b16 %v3262
    %v3322 = vunpack.c.h.b16 %v3262
    %v3323 = vunpack.c.l.b16 %v3263
    %v3324 = vunpack.c.h.b16 %v3263
    %v3325 = vpack.c.b16 %v3295, %v3293
    %v3326 = vpack.c.b16 %v3296, %v3294
    %v3327 = vpack.c.b16 %v3299, %v3297
    %v3328 = vpack.c.b16 %v3300, %v3298
    %v3329 = vpack.c.b16 %v3303, %v3301
    %v3330 = vpack.c.b16 %v3304, %v3302
    %v3331 = vpack.c.b16 %v3307, %v3305
    %v3332 = vpack.c.b16 %v3308, %v3306
    %v3333 = vpack.c.b16 %v3311, %v3309
    %v3334 = vpack.c.b16 %v3312, %v3310
    %v3335 = vpack.c.b16 %v3315, %v3313
    %v3336 = vpack.c.b16 %v3316, %v3314
    %v3337 = vpack.c.b16 %v3319, %v3317
    %v3338 = vpack.c.b16 %v3320, %v3318
    %v3339 = vpack.c.b16 %v3323, %v3321
    %v3340 = vpack.c.b16 %v3324, %v3322
    %3357 = vmatprep.subr.bf16.mxu0 %v3340
    %3358 = vmatpush1.bf16.msra.mxu0 %v3339
    %3359 = vmatprep.subr.bf16.mxu0 %v3338
    %3360 = vmatpush1.bf16.msra.mxu0 %v3337
    %3361 = vmatprep.subr.bf16.mxu0 %v3336
    %3362 = vmatpush1.bf16.msra.mxu0 %v3335
    %3363 = vmatprep.subr.bf16.mxu0 %v3334
    %3364 = vmatpush1.bf16.msra.mxu0 %v3333
    %3365 = vmatprep.subr.bf16.mxu0 %v3332
    %3366 = vmatpush1.bf16.msra.mxu0 %v3331
    %3367 = vmatprep.subr.bf16.mxu0 %v3330
    %3368 = vmatpush1.bf16.msra.mxu0 %v3329
    %3369 = vmatprep.subr.bf16.mxu0 %v3328
    %3370 = vmatpush1.bf16.msra.mxu0 %v3327
    %3371 = vmatprep.subr.bf16.mxu0 %v3326
    %3372 = vmatpush1.bf16.msra.mxu0 %v3325
    %3373 = vmatprep.subr.bf16.mxu0 0
    %3374 = vmatpush2.bf16.msra.mxu0 0
    %3375 = vmatprep.subr.bf16.mxu0 0
    %3376 = vmatpush2.bf16.msra.mxu0 0
    %3377 = vmatprep.subr.bf16.mxu0 0
    %3378 = vmatpush2.bf16.msra.mxu0 0
    %3379 = vmatprep.subr.bf16.mxu0 0
    %3380 = vmatpush2.bf16.msra.mxu0 0
    %3381 = vmatprep.subr.bf16.mxu0 0
    %3382 = vmatpush2.bf16.msra.mxu0 0
    %3383 = vmatprep.subr.bf16.mxu0 0
    %3384 = vmatpush2.bf16.msra.mxu0 0
    %3385 = vmatprep.subr.bf16.mxu0 0
    %3386 = vmatpush2.bf16.msra.mxu0 0
    %3387 = vmatprep.subr.bf16.mxu0 0
    %3388 = vmatpush2.bf16.msra.mxu0 0
    %3389 = vmatprep.mubr.bf16.mxu0 0
    %3390 = vmatmul.mubr.bf16.gmra.mxu0 %v3245
    %v3391 = vpop.f32.mrf.mxu0
    %v3392 = vadd.f32 %v3270, %v3391
    %v3393 = vpop.f32.mrf.mxu0
    %v3394 = vadd.f32 %v3274, %v3393
    %v3395 = vpop.f32.mrf.mxu0
    %v3396 = vadd.f32 %v3270, %v3395
    %v3397 = vpop.f32.mrf.mxu0
    %v3398 = vadd.f32 %v3274, %v3397
    %3399 = vmatprep.mubr.bf16.mxu0 0
    %3400 = vmatmul.mubr.bf16.gmra.mxu0 %v3246
    %v3401 = vpop.f32.mrf.mxu0
    %v3402 = vadd.f32 %v3270, %v3401
    %v3403 = vpop.f32.mrf.mxu0
    %v3404 = vadd.f32 %v3274, %v3403
    %v3405 = vpop.f32.mrf.mxu0
    %v3406 = vadd.f32 %v3270, %v3405
    %v3407 = vpop.f32.mrf.mxu0
    %v3408 = vadd.f32 %v3274, %v3407
    %3409 = vdwg.mxu0
    %v3410 = vmul.f32 %v3392, 0.5
    %v3411 = vmul.f32 %v3394, 0.5
    %v3412 = vmul.f32 %v3396, 0.5
    %v3413 = vmul.f32 %v3398, 0.5
    %v3414 = vmul.f32 %v3402, 0.5
    %v3415 = vmul.f32 %v3404, 0.5
    %v3416 = vmul.f32 %v3406, 0.5
    %v3417 = vmul.f32 %v3408, 0.5
    %v3418 = vmul.f32 %v3392, 0.044715
    %v3419 = vmul.f32 %v3394, 0.044715
    %v3420 = vmul.f32 %v3396, 0.044715
    %v3421 = vmul.f32 %v3398, 0.044715
    %v3422 = vmul.f32 %v3402, 0.044715
    %v3423 = vmul.f32 %v3404, 0.044715
    %v3424 = vmul.f32 %v3406, 0.044715
    %v3425 = vmul.f32 %v3408, 0.044715
    %v3426 = vmul.f32 %v3418, %v3392
    %v3427 = vmul.f32 %v3419, %v3394
    %v3428 = vmul.f32 %v3420, %v3396
    %v3429 = vmul.f32 %v3421, %v3398
    %v3430 = vmul.f32 %v3422, %v3402
    %v3431 = vmul.f32 %v3423, %v3404
    %v3432 = vmul.f32 %v3424, %v3406
    %v3433 = vmul.f32 %v3425, %v3408
    %v3434 = vmul.f32 %v3426, %v3392
    %v3435 = vmul.f32 %v3427, %v3394
    %v3436 = vmul.f32 %v3428, %v3396
    %v3437 = vmul.f32 %v3429, %v3398
    %v3438 = vmul.f32 %v3430, %v3402
    %v3439 = vmul.f32 %v3431, %v3404
    %v3440 = vmul.f32 %v3432, %v3406
    %v3441 = vmul.f32 %v3433, %v3408
    %v3442 = vadd.f32 %v3392, %v3434
    %v3443 = vadd.f32 %v3394, %v3435
    %v3444 = vadd.f32 %v3396, %v3436
    %v3445 = vadd.f32 %v3398, %v3437
    %v3446 = vadd.f32 %v3402, %v3438
    %v3447 = vadd.f32 %v3404, %v3439
    %v3448 = vadd.f32 %v3406, %v3440
    %v3449 = vadd.f32 %v3408, %v3441
    %v3450 = vmul.f32 %v3442, 0.7978846
    %v3451 = vmul.f32 %v3443, 0.7978846
    %v3452 = vmul.f32 %v3444, 0.7978846
    %v3453 = vmul.f32 %v3445, 0.7978846
    %v3454 = vmul.f32 %v3446, 0.7978846
    %v3455 = vmul.f32 %v3447, 0.7978846
    %v3456 = vmul.f32 %v3448, 0.7978846
    %v3457 = vmul.f32 %v3449, 0.7978846
    %v3458 = vtanh.pop %v3450
    %v3459 = vtanh.pop %v3451
    %v3460 = vtanh.pop %v3452
    %v3461 = vtanh.pop %v3453
    %v3462 = vtanh.pop %v3454
    %v3463 = vtanh.pop %v3455
    %v3464 = vtanh.pop %v3456
    %v3465 = vtanh.pop %v3457
    %v3466 = vadd.f32 %v3458, 1.0
    %v3467 = vadd.f32 %v3459, 1.0
    %v3468 = vadd.f32 %v3460, 1.0
    %v3469 = vadd.f32 %v3461, 1.0
    %v3470 = vadd.f32 %v3462, 1.0
    %v3471 = vadd.f32 %v3463, 1.0
    %v3472 = vadd.f32 %v3464, 1.0
    %v3473 = vadd.f32 %v3465, 1.0
    %v3474 = vmul.f32 %v3410, %v3466
    %v3475 = vmul.f32 %v3411, %v3467
    %v3476 = vmul.f32 %v3412, %v3468
    %v3477 = vmul.f32 %v3413, %v3469
    %v3478 = vmul.f32 %v3414, %v3470
    %v3479 = vmul.f32 %v3415, %v3471
    %v3480 = vmul.f32 %v3416, %v3472
    %v3481 = vmul.f32 %v3417, %v3473
    %v3482 = vpack.c.bf16 %v3476, %v3474
    %v3483 = vpack.c.bf16 %v3477, %v3475
    %v3484 = vpack.c.bf16 %v3480, %v3478
    %v3485 = vpack.c.bf16 %v3481, %v3479
    %s3486 = scalar_lea.vmem [#allocation10], 128
    %v3487 = vld [vmem:[%s3486] sm:$0xf]
    %v3488 = vld [vmem:[%s3486 + $0x4] sm:$0xf]
    %v3489 = vld [vmem:[%s3486 + $0x8] sm:$0xf]
    %v3490 = vld [vmem:[%s3486 + $0xc] sm:$0xf]
    %v3491 = vld [vmem:[%s3486 + $0x10] sm:$0xf]
    %v3492 = vld [vmem:[%s3486 + $0x14] sm:$0xf]
    %v3493 = vld [vmem:[%s3486 + $0x18] sm:$0xf]
    %v3494 = vld [vmem:[%s3486 + $0x1c] sm:$0xf]
    %v3495 = vld [vmem:[%s3486 + $0x20] sm:$0xf]
    %v3496 = vld [vmem:[%s3486 + $0x24] sm:$0xf]
    %v3497 = vld [vmem:[%s3486 + $0x28] sm:$0xf]
    %v3498 = vld [vmem:[%s3486 + $0x2c] sm:$0xf]
    %v3499 = vld [vmem:[%s3486 + $0x30] sm:$0xf]
    %v3500 = vld [vmem:[%s3486 + $0x34] sm:$0xf]
    %v3501 = vld [vmem:[%s3486 + $0x38] sm:$0xf]
    %v3502 = vld [vmem:[%s3486 + $0x3c] sm:$0xf]
    %v3503 = vld [vmem:[%s3486 + $0x40] sm:$0xf]
    %v3504 = vld [vmem:[%s3486 + $0x44] sm:$0xf]
    %v3505 = vld [vmem:[%s3486 + $0x48] sm:$0xf]
    %v3506 = vld [vmem:[%s3486 + $0x4c] sm:$0xf]
    %v3507 = vld [vmem:[%s3486 + $0x50] sm:$0xf]
    %v3508 = vld [vmem:[%s3486 + $0x54] sm:$0xf]
    %v3509 = vld [vmem:[%s3486 + $0x58] sm:$0xf]
    %v3510 = vld [vmem:[%s3486 + $0x5c] sm:$0xf]
    %v3511 = vld [vmem:[%s3486 + $0x60] sm:$0xf]
    %v3512 = vld [vmem:[%s3486 + $0x64] sm:$0xf]
    %v3513 = vld [vmem:[%s3486 + $0x68] sm:$0xf]
    %v3514 = vld [vmem:[%s3486 + $0x6c] sm:$0xf]
    %v3515 = vld [vmem:[%s3486 + $0x70] sm:$0xf]
    %v3516 = vld [vmem:[%s3486 + $0x74] sm:$0xf]
    %v3517 = vld [vmem:[%s3486 + $0x78] sm:$0xf]
    %v3518 = vld [vmem:[%s3486 + $0x7c] sm:$0xf]
    %s3519 = scalar_lea.vmem %s13, 1
    %v3520 = vld [vmem:[%s3519] sm:$0x1]
    %v3522 = vlaneseq
    %v3523 = vshrl.u32 %v3522, 7
    %v3524 = vsub.s32 0, %v3523
    %v3525 = vrot.slane %v3520, %v3524
    %v3559 = vunpack.c.l.b16 %v3487
    %v3560 = vunpack.c.l.b16 %v3488
    %v3561 = vunpack.c.l.b16 %v3489
    %v3562 = vunpack.c.l.b16 %v3490
    %v3563 = vunpack.c.l.b16 %v3491
    %v3564 = vunpack.c.l.b16 %v3492
    %v3565 = vunpack.c.l.b16 %v3493
    %v3566 = vunpack.c.l.b16 %v3494
    %v3567 = vunpack.c.l.b16 %v3495
    %v3568 = vunpack.c.l.b16 %v3496
    %v3569 = vunpack.c.l.b16 %v3497
    %v3570 = vunpack.c.l.b16 %v3498
    %v3571 = vunpack.c.l.b16 %v3499
    %v3572 = vunpack.c.l.b16 %v3500
    %v3573 = vunpack.c.l.b16 %v3501
    %v3574 = vunpack.c.l.b16 %v3502
    %v3575 = vunpack.c.l.b16 %v3503
    %v3576 = vunpack.c.l.b16 %v3504
    %v3577 = vunpack.c.l.b16 %v3505
    %v3578 = vunpack.c.l.b16 %v3506
    %v3579 = vunpack.c.l.b16 %v3507
    %v3580 = vunpack.c.l.b16 %v3508
    %v3581 = vunpack.c.l.b16 %v3509
    %v3582 = vunpack.c.l.b16 %v3510
    %v3583 = vunpack.c.l.b16 %v3511
    %v3584 = vunpack.c.l.b16 %v3512
    %v3585 = vunpack.c.l.b16 %v3513
    %v3586 = vunpack.c.l.b16 %v3514
    %v3587 = vunpack.c.l.b16 %v3515
    %v3588 = vunpack.c.l.b16 %v3516
    %v3589 = vunpack.c.l.b16 %v3517
    %v3590 = vunpack.c.l.b16 %v3518
    %v3591 = vpack.c.b16 %v3560, %v3559
    %v3592 = vpack.c.b16 %v3562, %v3561
    %v3593 = vpack.c.b16 %v3564, %v3563
    %v3594 = vpack.c.b16 %v3566, %v3565
    %v3595 = vpack.c.b16 %v3568, %v3567
    %v3596 = vpack.c.b16 %v3570, %v3569
    %v3597 = vpack.c.b16 %v3572, %v3571
    %v3598 = vpack.c.b16 %v3574, %v3573
    %v3599 = vpack.c.b16 %v3576, %v3575
    %v3600 = vpack.c.b16 %v3578, %v3577
    %v3601 = vpack.c.b16 %v3580, %v3579
    %v3602 = vpack.c.b16 %v3582, %v3581
    %v3603 = vpack.c.b16 %v3584, %v3583
    %v3604 = vpack.c.b16 %v3586, %v3585
    %v3605 = vpack.c.b16 %v3588, %v3587
    %v3606 = vpack.c.b16 %v3590, %v3589
    %3623 = vmatprep.subr.bf16.mxu0 0
    %3624 = vmatpush1.bf16.msra.mxu0 %v3598
    %3625 = vmatprep.subr.bf16.mxu0 0
    %3626 = vmatpush1.bf16.msra.mxu0 %v3597
    %3627 = vmatprep.subr.bf16.mxu0 0
    %3628 = vmatpush1.bf16.msra.mxu0 %v3596
    %3629 = vmatprep.subr.bf16.mxu0 0
    %3630 = vmatpush1.bf16.msra.mxu0 %v3595
    %3631 = vmatprep.subr.bf16.mxu0 0
    %3632 = vmatpush1.bf16.msra.mxu0 %v3594
    %3633 = vmatprep.subr.bf16.mxu0 0
    %3634 = vmatpush1.bf16.msra.mxu0 %v3593
    %3635 = vmatprep.subr.bf16.mxu0 0
    %3636 = vmatpush1.bf16.msra.mxu0 %v3592
    %3637 = vmatprep.subr.bf16.mxu0 0
    %3638 = vmatpush1.bf16.msra.mxu0 %v3591
    %3639 = vmatprep.subr.bf16.mxu0 0
    %3640 = vmatpush2.bf16.msra.mxu0 %v3606
    %3641 = vmatprep.subr.bf16.mxu0 0
    %3642 = vmatpush2.bf16.msra.mxu0 %v3605
    %3643 = vmatprep.subr.bf16.mxu0 0
    %3644 = vmatpush2.bf16.msra.mxu0 %v3604
    %3645 = vmatprep.subr.bf16.mxu0 0
    %3646 = vmatpush2.bf16.msra.mxu0 %v3603
    %3647 = vmatprep.subr.bf16.mxu0 0
    %3648 = vmatpush2.bf16.msra.mxu0 %v3602
    %3649 = vmatprep.subr.bf16.mxu0 0
    %3650 = vmatpush2.bf16.msra.mxu0 %v3601
    %3651 = vmatprep.subr.bf16.mxu0 0
    %3652 = vmatpush2.bf16.msra.mxu0 %v3600
    %3653 = vmatprep.subr.bf16.mxu0 0
    %3654 = vmatpush2.bf16.msra.mxu0 %v3599
    %3655 = vmatprep.mubr.bf16.mxu0 %v3483
    %3656 = vmatmul.mubr.bf16.gmra.mxu0 %v3482
    %v3657 = vpop.f32.mrf.mxu0
    %v3658 = vadd.f32 %v3525, %v3657
    %v3659 = vpop.f32.mrf.mxu0
    %v3660 = vpop.f32.mrf.mxu0
    %v3661 = vadd.f32 %v3525, %v3660
    %v3662 = vpop.f32.mrf.mxu0
    %3663 = vmatprep.mubr.bf16.mxu0 %v3485
    %3664 = vmatmul.mubr.bf16.gmra.mxu0 %v3484
    %v3665 = vpop.f32.mrf.mxu0
    %v3666 = vadd.f32 %v3525, %v3665
    %v3667 = vpop.f32.mrf.mxu0
    %v3668 = vpop.f32.mrf.mxu0
    %v3669 = vadd.f32 %v3525, %v3668
    %v3670 = vpop.f32.mrf.mxu0
    %3671 = vdwg.mxu0
    %v3672 = vadd.f32 %v3241, %v3658
    %v3673 = vadd.f32 %v3242, %v3661
    %v3674 = vadd.f32 %v3243, %v3666
    %v3675 = vadd.f32 %v3244, %v3669
    %s3676 = scalar_lea.vmem [#allocation12], 1
    %v3677 = vld [vmem:[%s3676] sm:$0x1]
    %s3678 = scalar_lea.vmem [#allocation13], 1
    %v3679 = vld [vmem:[%s3678] sm:$0x1]
    %3680 = vadd.xlane.f32.xlu0 %v3672
    %v3681 = vpop.xlane.xlu0 %3680
    %3682 = vadd.xlane.f32.xlu0 %v3673
    %v3683 = vpop.xlane.xlu0 %3682
    %3684 = vadd.xlane.f32.xlu0 %v3674
    %v3685 = vpop.xlane.xlu0 %3684
    %3686 = vadd.xlane.f32.xlu0 %v3675
    %v3687 = vpop.xlane.xlu0 %3686
    %v3688 = vmul.f32 %v3681, %v216
    %v3689 = vmul.f32 %v3683, %v216
    %v3690 = vmul.f32 %v3685, %v216
    %v3691 = vmul.f32 %v3687, %v216
    %v3692 = vsub.f32 %v3672, %v3688
    %v3693 = vsub.f32 %v3673, %v3689
    %v3694 = vsub.f32 %v3674, %v3690
    %v3695 = vsub.f32 %v3675, %v3691
    %v3696 = vmul.f32 %v3692, %v3692
    %v3697 = vmul.f32 %v3693, %v3693
    %v3698 = vmul.f32 %v3694, %v3694
    %v3699 = vmul.f32 %v3695, %v3695
    %3700 = vadd.xlane.f32.xlu0 %v3696
    %v3701 = vpop.xlane.xlu0 %3700
    %3702 = vadd.xlane.f32.xlu0 %v3697
    %v3703 = vpop.xlane.xlu0 %3702
    %3704 = vadd.xlane.f32.xlu0 %v3698
    %v3705 = vpop.xlane.xlu0 %3704
    %3706 = vadd.xlane.f32.xlu0 %v3699
    %v3707 = vpop.xlane.xlu0 %3706
    %v3708 = vmul.f32 %v3701, %v216
    %v3709 = vmul.f32 %v3703, %v216
    %v3710 = vmul.f32 %v3705, %v216
    %v3711 = vmul.f32 %v3707, %v216
    %v3712 = vadd.f32 %v3708, 1e-12
    %v3713 = vadd.f32 %v3709, 1e-12
    %v3714 = vadd.f32 %v3710, 1e-12
    %v3715 = vadd.f32 %v3711, 1e-12
    %v3716 = vrsqrt.pop %v3712
    %v3717 = vrsqrt.pop %v3713
    %v3718 = vrsqrt.pop %v3714
    %v3719 = vrsqrt.pop %v3715
    %v3720 = vmul.f32 %v3692, %v3716
    %v3721 = vmul.f32 %v3693, %v3717
    %v3722 = vmul.f32 %v3694, %v3718
    %v3723 = vmul.f32 %v3695, %v3719
    %v3725 = vlaneseq
    %v3726 = vshrl.u32 %v3725, 7
    %v3727 = vsub.s32 0, %v3726
    %v3728 = vrot.slane %v3677, %v3727
    %v3730 = vmul.f32 %v3720, %v3728
    %v3731 = vmul.f32 %v3721, %v3728
    %v3732 = vmul.f32 %v3722, %v3728
    %v3733 = vmul.f32 %v3723, %v3728
    %v3735 = vlaneseq
    %v3736 = vshrl.u32 %v3735, 7
    %v3737 = vsub.s32 0, %v3736
    %v3738 = vrot.slane %v3679, %v3737
    %v3740 = vadd.f32 %v3730, %v3738
    %v3741 = vadd.f32 %v3731, %v3738
    %v3742 = vadd.f32 %v3732, %v3738
    %v3743 = vadd.f32 %v3733, %v3738
    %v3744 = vpack.c.bf16 %v3741, %v3740
    %v3745 = vpack.c.bf16 %v3743, %v3742
    %v3746 = vld [vmem:[%s16] sm:$0xf]
    %v3747 = vld [vmem:[%s16 + $0x4] sm:$0xf]
    %v3748 = vld [vmem:[%s16 + $0x8] sm:$0xf]
    %v3749 = vld [vmem:[%s16 + $0xc] sm:$0xf]
    %v3750 = vld [vmem:[%s16 + $0x10] sm:$0xf]
    %v3751 = vld [vmem:[%s16 + $0x14] sm:$0xf]
    %v3752 = vld [vmem:[%s16 + $0x18] sm:$0xf]
    %v3753 = vld [vmem:[%s16 + $0x1c] sm:$0xf]
    %v3754 = vld [vmem:[%s16 + $0x20] sm:$0xf]
    %v3755 = vld [vmem:[%s16 + $0x24] sm:$0xf]
    %v3756 = vld [vmem:[%s16 + $0x28] sm:$0xf]
    %v3757 = vld [vmem:[%s16 + $0x2c] sm:$0xf]
    %v3758 = vld [vmem:[%s16 + $0x30] sm:$0xf]
    %v3759 = vld [vmem:[%s16 + $0x34] sm:$0xf]
    %v3760 = vld [vmem:[%s16 + $0x38] sm:$0xf]
    %v3761 = vld [vmem:[%s16 + $0x3c] sm:$0xf]
    %v3762 = vld [vmem:[#allocation15] sm:$0x1]
    %v3764 = vlaneseq
    %v3765 = vshrl.u32 %v3764, 7
    %v3766 = vsub.s32 0, %v3765
    %v3767 = vrot.slane %v3762, %v3766
    %v3785 = vunpack.c.l.b16 %v3746
    %v3786 = vunpack.c.l.b16 %v3747
    %v3787 = vunpack.c.l.b16 %v3748
    %v3788 = vunpack.c.l.b16 %v3749
    %v3789 = vunpack.c.l.b16 %v3750
    %v3790 = vunpack.c.l.b16 %v3751
    %v3791 = vunpack.c.l.b16 %v3752
    %v3792 = vunpack.c.l.b16 %v3753
    %v3793 = vunpack.c.l.b16 %v3754
    %v3794 = vunpack.c.l.b16 %v3755
    %v3795 = vunpack.c.l.b16 %v3756
    %v3796 = vunpack.c.l.b16 %v3757
    %v3797 = vunpack.c.l.b16 %v3758
    %v3798 = vunpack.c.l.b16 %v3759
    %v3799 = vunpack.c.l.b16 %v3760
    %v3800 = vunpack.c.l.b16 %v3761
    %v3801 = vpack.c.b16 %v3786, %v3785
    %v3802 = vpack.c.b16 %v3788, %v3787
    %v3803 = vpack.c.b16 %v3790, %v3789
    %v3804 = vpack.c.b16 %v3792, %v3791
    %v3805 = vpack.c.b16 %v3794, %v3793
    %v3806 = vpack.c.b16 %v3796, %v3795
    %v3807 = vpack.c.b16 %v3798, %v3797
    %v3808 = vpack.c.b16 %v3800, %v3799
    %3817 = vmatprep.subr.bf16.mxu0 0
    %3818 = vmatpush1.bf16.msra.mxu0 %v3808
    %3819 = vmatprep.subr.bf16.mxu0 0
    %3820 = vmatpush1.bf16.msra.mxu0 %v3807
    %3821 = vmatprep.subr.bf16.mxu0 0
    %3822 = vmatpush1.bf16.msra.mxu0 %v3806
    %3823 = vmatprep.subr.bf16.mxu0 0
    %3824 = vmatpush1.bf16.msra.mxu0 %v3805
    %3825 = vmatprep.subr.bf16.mxu0 0
    %3826 = vmatpush1.bf16.msra.mxu0 %v3804
    %3827 = vmatprep.subr.bf16.mxu0 0
    %3828 = vmatpush1.bf16.msra.mxu0 %v3803
    %3829 = vmatprep.subr.bf16.mxu0 0
    %3830 = vmatpush1.bf16.msra.mxu0 %v3802
    %3831 = vmatprep.subr.bf16.mxu0 0
    %3832 = vmatpush1.bf16.msra.mxu0 %v3801
    %3833 = vmatprep.subr.bf16.mxu0 0
    %3834 = vmatpush2.bf16.msra.mxu0 0
    %3835 = vmatprep.subr.bf16.mxu0 0
    %3836 = vmatpush2.bf16.msra.mxu0 0
    %3837 = vmatprep.subr.bf16.mxu0 0
    %3838 = vmatpush2.bf16.msra.mxu0 0
    %3839 = vmatprep.subr.bf16.mxu0 0
    %3840 = vmatpush2.bf16.msra.mxu0 0
    %3841 = vmatprep.subr.bf16.mxu0 0
    %3842 = vmatpush2.bf16.msra.mxu0 0
    %3843 = vmatprep.subr.bf16.mxu0 0
    %3844 = vmatpush2.bf16.msra.mxu0 0
    %3845 = vmatprep.subr.bf16.mxu0 0
    %3846 = vmatpush2.bf16.msra.mxu0 0
    %3847 = vmatprep.subr.bf16.mxu0 0
    %3848 = vmatpush2.bf16.msra.mxu0 0
    %3849 = vmatprep.mubr.bf16.mxu0 0
    %3850 = vmatmul.mubr.bf16.gmra.mxu0 %v3744
    %v3851 = vpop.f32.mrf.mxu0
    %v3852 = vadd.f32 %v3767, %v3851
    %v3853 = vpop.f32.mrf.mxu0
    %v3854 = vpop.f32.mrf.mxu0
    %v3855 = vadd.f32 %v3767, %v3854
    %v3856 = vpop.f32.mrf.mxu0
    %3857 = vmatprep.mubr.bf16.mxu0 0
    %3858 = vmatmul.mubr.bf16.gmra.mxu0 %v3745
    %v3859 = vpop.f32.mrf.mxu0
    %v3860 = vadd.f32 %v3767, %v3859
    %v3861 = vpop.f32.mrf.mxu0
    %v3862 = vpop.f32.mrf.mxu0
    %v3863 = vadd.f32 %v3767, %v3862
    %v3864 = vpop.f32.mrf.mxu0
    %3865 = vdwg.mxu0
    %v3866 = vtanh.pop %v3852
    %v3867 = vtanh.pop %v3855
    %v3868 = vtanh.pop %v3860
    %v3869 = vtanh.pop %v3863
    %v3870 = vpack.c.bf16 %v3867, %v3866
    %v3871 = vpack.c.bf16 %v3869, %v3868
    %v3872 = vld [vmem:[%s18] sm:$0xf]
    %v3873 = vld [vmem:[%s18 + $0x4] sm:$0xf]
    %v3874 = vld [vmem:[%s18 + $0x8] sm:$0xf]
    %v3875 = vld [vmem:[%s18 + $0xc] sm:$0xf]
    %v3876 = vld [vmem:[%s18 + $0x10] sm:$0xf]
    %v3877 = vld [vmem:[%s18 + $0x14] sm:$0xf]
    %v3878 = vld [vmem:[%s18 + $0x18] sm:$0xf]
    %v3879 = vld [vmem:[%s18 + $0x1c] sm:$0xf]
    %v3880 = vld [vmem:[%s18 + $0x20] sm:$0xf]
    %v3881 = vld [vmem:[%s18 + $0x24] sm:$0xf]
    %v3882 = vld [vmem:[%s18 + $0x28] sm:$0xf]
    %v3883 = vld [vmem:[%s18 + $0x2c] sm:$0xf]
    %v3884 = vld [vmem:[%s18 + $0x30] sm:$0xf]
    %v3885 = vld [vmem:[%s18 + $0x34] sm:$0xf]
    %v3886 = vld [vmem:[%s18 + $0x38] sm:$0xf]
    %v3887 = vld [vmem:[%s18 + $0x3c] sm:$0xf]
    %v3888 = vld [vmem:[#allocation16] sm:$0x1]
    %v3890 = vlaneseq
    %v3891 = vshrl.u32 %v3890, 7
    %v3892 = vsub.s32 0, %v3891
    %v3893 = vrot.slane %v3888, %v3892
    %v3911 = vunpack.c.l.b16 %v3872
    %v3912 = vunpack.c.l.b16 %v3873
    %v3913 = vunpack.c.l.b16 %v3874
    %v3914 = vunpack.c.l.b16 %v3875
    %v3915 = vunpack.c.l.b16 %v3876
    %v3916 = vunpack.c.l.b16 %v3877
    %v3917 = vunpack.c.l.b16 %v3878
    %v3918 = vunpack.c.l.b16 %v3879
    %v3919 = vunpack.c.l.b16 %v3880
    %v3920 = vunpack.c.l.b16 %v3881
    %v3921 = vunpack.c.l.b16 %v3882
    %v3922 = vunpack.c.l.b16 %v3883
    %v3923 = vunpack.c.l.b16 %v3884
    %v3924 = vunpack.c.l.b16 %v3885
    %v3925 = vunpack.c.l.b16 %v3886
    %v3926 = vunpack.c.l.b16 %v3887
    %v3927 = vpack.c.b16 %v3912, %v3911
    %v3928 = vpack.c.b16 %v3914, %v3913
    %v3929 = vpack.c.b16 %v3916, %v3915
    %v3930 = vpack.c.b16 %v3918, %v3917
    %v3931 = vpack.c.b16 %v3920, %v3919
    %v3932 = vpack.c.b16 %v3922, %v3921
    %v3933 = vpack.c.b16 %v3924, %v3923
    %v3934 = vpack.c.b16 %v3926, %v3925
    %3943 = vmatprep.subr.bf16.mxu0 0
    %3944 = vmatpush1.bf16.msra.mxu0 %v3934
    %3945 = vmatprep.subr.bf16.mxu0 0
    %3946 = vmatpush1.bf16.msra.mxu0 %v3933
    %3947 = vmatprep.subr.bf16.mxu0 0
    %3948 = vmatpush1.bf16.msra.mxu0 %v3932
    %3949 = vmatprep.subr.bf16.mxu0 0
    %3950 = vmatpush1.bf16.msra.mxu0 %v3931
    %3951 = vmatprep.subr.bf16.mxu0 0
    %3952 = vmatpush1.bf16.msra.mxu0 %v3930
    %3953 = vmatprep.subr.bf16.mxu0 0
    %3954 = vmatpush1.bf16.msra.mxu0 %v3929
    %3955 = vmatprep.subr.bf16.mxu0 0
    %3956 = vmatpush1.bf16.msra.mxu0 %v3928
    %3957 = vmatprep.subr.bf16.mxu0 0
    %3958 = vmatpush1.bf16.msra.mxu0 %v3927
    %3959 = vmatprep.subr.bf16.mxu0 0
    %3960 = vmatpush2.bf16.msra.mxu0 0
    %3961 = vmatprep.subr.bf16.mxu0 0
    %3962 = vmatpush2.bf16.msra.mxu0 0
    %3963 = vmatprep.subr.bf16.mxu0 0
    %3964 = vmatpush2.bf16.msra.mxu0 0
    %3965 = vmatprep.subr.bf16.mxu0 0
    %3966 = vmatpush2.bf16.msra.mxu0 0
    %3967 = vmatprep.subr.bf16.mxu0 0
    %3968 = vmatpush2.bf16.msra.mxu0 0
    %3969 = vmatprep.subr.bf16.mxu0 0
    %3970 = vmatpush2.bf16.msra.mxu0 0
    %3971 = vmatprep.subr.bf16.mxu0 0
    %3972 = vmatpush2.bf16.msra.mxu0 0
    %3973 = vmatprep.subr.bf16.mxu0 0
    %3974 = vmatpush2.bf16.msra.mxu0 0
    %3975 = vmatprep.mubr.bf16.mxu0 0
    %3976 = vmatmul.mubr.bf16.gmra.mxu0 %v3870
    %v3977 = vpop.f32.mrf.mxu0
    %v3978 = vadd.f32 %v3893, %v3977
    %v3979 = vpop.f32.mrf.mxu0
    %v3980 = vpop.f32.mrf.mxu0
    %v3981 = vadd.f32 %v3893, %v3980
    %v3982 = vpop.f32.mrf.mxu0
    %3983 = vmatprep.mubr.bf16.mxu0 0
    %3984 = vmatmul.mubr.bf16.gmra.mxu0 %v3871
    %v3985 = vpop.f32.mrf.mxu0
    %v3986 = vadd.f32 %v3893, %v3985
    %v3987 = vpop.f32.mrf.mxu0
    %v3988 = vpop.f32.mrf.mxu0
    %v3989 = vadd.f32 %v3893, %v3988
    %v3990 = vpop.f32.mrf.mxu0
    %3991 = vdwg.mxu0
    %3992 = vst [vmem:[%s20] sm:$0xff] %v3978
    %3993 = vst [vmem:[%s20 + $0x8] sm:$0xff] %v3981
    %3994 = vst [vmem:[%s20 + $0x10] sm:$0xff] %v3986
    %3995 = vst [vmem:[%s20 + $0x18] sm:$0xff] %v3989
    // Predicated region
    $region122: #{bert_class_forward.1} parent=1 // pred_check
      _
    $region123: #{bert_class_forward.1} parent=1 // pred_check_branch
      %3997 = sbr.rel (0) target = $region125
    $region124: #{bert_class_forward.1} parent=1 // pred_region
      _
    $region125: #{bert_class_forward.1} parent=1 // pred_fallthru
      _
    // Predicated region
    $region126: #{bert_class_forward.1} parent=1 // pred_check
      _
    $region127: #{bert_class_forward.1} parent=1 // pred_check_branch
      %3999 = sbr.rel (0) target = $region129
    $region128: #{bert_class_forward.1} parent=1 // pred_region
      _
    $region129: #{bert_class_forward.1} parent=1 // pred_fallthru
      _
    %4000 = vsyncpa [#allocation3], 1
    %4001 = vsyncpa [#allocation5], 1
    %4002 = vsyncpa [#allocation8], 1
    %4003 = vsyncpa [#allocation11], 1
    %4004 = vsyncpa [#allocation14], 1
    %4005 = vsyncpa [#allocation17], 1

</llo_original>
